<compile_context>
chip_gen: v5e
topology: v5e:2x2
jax: 0.10.0
libtpu: 0.0.40
codegen_flags: <defaults>
</compile_context>

<pallas_src>
import functools

import jax
import jax.numpy as jnp
from jax.experimental import pallas as pl
from jax.experimental.pallas import tpu as pltpu


def _vmem_spec():
    return pl.BlockSpec(memory_space=pltpu.MemorySpace.VMEM)


# ---------------------------------------------------------------------------
# Kernel 1: one-time prep.  Computes the adaptive Chebyshev supports (shared by
# all layers) and the per-node weight/bias matmuls for every layer.  Its outputs
# become VMEM-resident constants of the fused recurrent kernel below.
# ---------------------------------------------------------------------------
def _prep_kernel(*refs, cheb_k, num_layers):
    num_in = 3 + 4 * num_layers
    nv1_ref, nv2_ref, nv2t_ref = refs[0], refs[1], refs[2]
    in_layers = [refs[3 + 4 * l: 3 + 4 * (l + 1)] for l in range(num_layers)]
    outs = refs[num_in:]
    sup_ref = outs[0]
    out_layers = [outs[1 + 4 * l: 1 + 4 * (l + 1)] for l in range(num_layers)]

    nv1 = nv1_ref[...]            # (N, D)
    nv2 = nv2_ref[...]            # (D, N)
    n = nv1.shape[0]

    # supports = softmax(relu(nv1 @ nv2), axis=1)   (kept in f32: cancellation)
    a = jnp.dot(nv1, nv2, preferred_element_type=jnp.float32)
    a = jnp.maximum(a, 0.0)
    a = a - jnp.max(a, axis=1, keepdims=True)
    e = jnp.exp(a)
    supports = e / jnp.sum(e, axis=1, keepdims=True)

    row = jax.lax.broadcasted_iota(jnp.int32, (n, n), 0)
    col = jax.lax.broadcasted_iota(jnp.int32, (n, n), 1)
    eye = (row == col).astype(jnp.float32)

    sup_ref[0] = eye
    sup_ref[1] = supports
    prev2, prev1 = eye, supports
    for k in range(2, cheb_k):                       # Chebyshev recursion (f32)
        cur = jnp.dot(2.0 * supports, prev1,
                      preferred_element_type=jnp.float32) - prev2
        sup_ref[k] = cur
        prev2, prev1 = prev1, cur

    nv = nv1 + nv2t_ref[...]                         # nodevec1 + nodevec2.T
    for (wpg_ref, bpg_ref, wpu_ref, bpu_ref), \
        (wg_ref, bg_ref, wu_ref, bu_ref) in zip(in_layers, out_layers):
        wg_ref[...] = jnp.dot(nv, wpg_ref[...], preferred_element_type=jnp.float32)
        bg_ref[...] = jnp.dot(nv, bpg_ref[...], preferred_element_type=jnp.float32)
        wu_ref[...] = jnp.dot(nv, wpu_ref[...], preferred_element_type=jnp.float32)
        bu_ref[...] = jnp.dot(nv, bpu_ref[...], preferred_element_type=jnp.float32)


def prep_constants(nodevec1, nodevec2, params, dim_in_first, hidden_dim):
    """Returns (sup (K,N,N), per-layer (wx_all, wgh, wuh, b_all))."""
    n, d = nodevec1.shape
    num_layers = len(params)
    cheb_k = params[0][0].shape[1]
    num_sup = max(2, cheb_k)

    flat_ins = [nodevec1, nodevec2, nodevec2.T]
    out_shapes = [jax.ShapeDtypeStruct((num_sup, n, n), jnp.float32)]
    meta = []
    for (wpg, bpg, wpu, bpu) in params:
        cg, og = wpg.shape[2], wpg.shape[3]
        cu, ou = wpu.shape[2], wpu.shape[3]
        flat_ins += [wpg.reshape(d, -1), bpg, wpu.reshape(d, -1), bpu]
        out_shapes += [
            jax.ShapeDtypeStruct((n, cheb_k * cg * og), jnp.float32),
            jax.ShapeDtypeStruct((n, og), jnp.float32),
            jax.ShapeDtypeStruct((n, cheb_k * cu * ou), jnp.float32),
            jax.ShapeDtypeStruct((n, ou), jnp.float32),
        ]
        meta.append((cg, og, cu, ou))

    outs = pl.pallas_call(
        functools.partial(_prep_kernel, cheb_k=cheb_k, num_layers=num_layers),
        out_shape=tuple(out_shapes),
        in_specs=[_vmem_spec()] * len(flat_ins),
        out_specs=tuple(_vmem_spec() for _ in out_shapes),
    )(*flat_ins)

    sup = outs[0][:cheb_k]                           # (K, N, N)

    layer_consts = []
    din = dim_in_first
    for l, (cg, og, cu, ou) in enumerate(meta):
        wg_flat, bg, wu_flat, bu = outs[1 + 4 * l: 1 + 4 * (l + 1)]
        wg = wg_flat.reshape(n, cheb_k, cg, og)      # (N, K, Din+H, 2H)
        wu = wu_flat.reshape(n, cheb_k, cu, ou)      # (N, K, Din+H,  H)
        # split into x-slab / h-slab; fuse gate/update x-slabs along output axis
        wgx = wg[:, :, :din, :].reshape(n, cheb_k * din, og)
        wgh = wg[:, :, din:, :].reshape(n, cheb_k * hidden_dim, og)
        wux = wu[:, :, :din, :].reshape(n, cheb_k * din, ou)
        wuh = wu[:, :, din:, :].reshape(n, cheb_k * hidden_dim, ou)
        wx_all = jnp.concatenate([wgx, wux], axis=-1)        # (N, K*Din, 3H)
        b_all = jnp.concatenate([bg, bu], axis=-1)[:, None, :]  # (N, 1, 3H)
        layer_consts.append((wx_all, wgh, wuh, b_all))
        din = hidden_dim
    return sup, layer_consts


# ---------------------------------------------------------------------------
# Kernel 2: fully fused AVWDCRNN recurrence.  grid=(T,), all layers computed in
# the same grid step; hidden states live in a VMEM scratch across steps.
# ---------------------------------------------------------------------------
def _fused_kernel(*refs, num_layers, hidden_dim, cheb_k, batch, in_dims):
    x_ref, h0_ref, sup_ref = refs[0], refs[1], refs[2]
    layer_refs = [refs[3 + 4 * l: 3 + 4 * (l + 1)] for l in range(num_layers)]
    base = 3 + 4 * num_layers
    out_ref, hfin_ref, state_ref = refs[base], refs[base + 1], refs[base + 2]

    t = pl.program_id(0)

    @pl.when(t == 0)
    def _():
        state_ref[...] = h0_ref[...]

    sup = sup_ref[...]                                # (K, N, N)
    n = sup.shape[1]
    b = batch
    h = hidden_dim

    def diffuse(v2d, c):
        # v2d: (N, B*C) lane-dense; one MXU dot per Chebyshev order (batch is
        # folded into the RHS lanes).  Result reordered to match the (N, K*C, O)
        # weight slab layout (k outer, c inner).
        parts = [
            jnp.dot(sup[k], v2d,
                    preferred_element_type=jnp.float32).reshape(n, b, c)
            for k in range(cheb_k)
        ]
        return jnp.concatenate(parts, axis=-1)        # (N, B, K*C)

    def contract(d3, w_ref):
        # node-batched MXU contraction: (N, B, J) x (N, J, O) -> (N, B, O).
        # NOTE: only B rows of the MXU are used per node matmul; intrinsic to
        # the tiny batch, not a code issue.
        return jnp.einsum('nbj,njo->nbo', d3, w_ref[...],
                          preferred_element_type=jnp.float32)

    v2d = x_ref[0]                                    # (N, B*Din) for layer 0
    for l in range(num_layers):
        wx_ref, wgh_ref, wuh_ref, ball_ref = layer_refs[l]
        c_in = in_dims[l]
        s2d = state_ref[l]                            # (N, B*H)
        s3 = s2d.reshape(n, b, h)

        dx = diffuse(v2d, c_in)                       # (N, B, K*Cin) — reused
        ds = diffuse(s2d, h)                          # (N, B, K*H)

        # fused gate+candidate x contraction + bias: [:2H] gate, [2H:] candidate
        pre = contract(dx, wx_ref) + ball_ref[...]    # (N, B, 3H)
        zr = jax.nn.sigmoid(pre[..., :2 * h] + contract(ds, wgh_ref))
        z = zr[..., :h]
        r = zr[..., h:]
        dzs = diffuse((z * s3).reshape(n, b * h), h)
        hc = jnp.tanh(pre[..., 2 * h:] + contract(dzs, wuh_ref))
        h_new = r * s3 + (1.0 - r) * hc               # (N, B, H)

        v2d = h_new.reshape(n, b * h)                 # feeds the next layer
        state_ref[l] = v2d

    out_ref[0] = v2d                                  # last layer's h[t], (N, B*H)

    @pl.when(t == pl.num_programs(0) - 1)
    def _():
        hfin_ref[...] = state_ref[...]                # final state of every layer


def avwdcrnn_fused(x_seq2d, h0_2d, sup, layer_consts, hidden_dim, batch, in_dims):
    """x_seq2d: (T, N, B*Din); h0_2d: (L, N, B*H).  Returns (h_seq, h_fin)."""
    t, n, xw = x_seq2d.shape
    num_layers = len(layer_consts)
    cheb_k = sup.shape[0]
    hw = batch * hidden_dim

    def resident(arr):
        nd = arr.ndim
        return pl.BlockSpec(arr.shape, lambda i, _nd=nd: (0,) * _nd)

    flat_consts = [c for lc in layer_consts for c in lc]
    in_specs = [
        pl.BlockSpec((1, n, xw), lambda i: (i, 0, 0)),        # x[t], lane-dense
        resident(h0_2d),
        resident(sup),
    ] + [resident(c) for c in flat_consts]

    out_shapes = (
        jax.ShapeDtypeStruct((t, n, hw), jnp.float32),        # last-layer h seq
        jax.ShapeDtypeStruct((num_layers, n, hw), jnp.float32),  # final states
    )
    out_specs = [
        pl.BlockSpec((1, n, hw), lambda i: (i, 0, 0)),
        pl.BlockSpec((num_layers, n, hw), lambda i: (0, 0, 0)),
    ]

    h_seq, h_fin = pl.pallas_call(
        functools.partial(_fused_kernel, num_layers=num_layers,
                          hidden_dim=hidden_dim, cheb_k=cheb_k,
                          batch=batch, in_dims=tuple(in_dims)),
        out_shape=out_shapes,
        grid_spec=pltpu.PrefetchScalarGridSpec(
            num_scalar_prefetch=0,
            grid=(t,),
            in_specs=in_specs,
            out_specs=out_specs,
            scratch_shapes=[pltpu.VMEM((num_layers, n, hw), jnp.float32)]),
        compiler_params=pltpu.CompilerParams(
            dimension_semantics=("arbitrary",),
            vmem_limit_bytes=32 * 1024 * 1024),
    )(x_seq2d, h0_2d, sup, *flat_consts)
    return h_seq, h_fin


# ---------------------------------------------------------------------------
# AVWDCRNN forward: layout plumbing at the XLA level, all compute in the kernels.
# ---------------------------------------------------------------------------
def avwdcrnn_forward(x, init_state, nodevec1, nodevec2, params, hidden_dim):
    bsz, t, n, din = x.shape
    num_layers = len(params)

    sup, layer_consts = prep_constants(nodevec1, nodevec2, params, din, hidden_dim)

    # lane-dense, node-major, time-leading layouts for the fused kernel
    x2d = jnp.transpose(x, (1, 2, 0, 3)).reshape(t, n, bsz * din)          # (T,N,B*Din)
    h0_2d = jnp.transpose(init_state, (0, 2, 1, 3)).reshape(
        num_layers, n, bsz * hidden_dim)                                   # (L,N,B*H)
    in_dims = [din] + [hidden_dim] * (num_layers - 1)

    h_seq, h_fin = avwdcrnn_fused(x2d, h0_2d, sup, layer_consts,
                                  hidden_dim, bsz, in_dims)

    out_seq = jnp.transpose(h_seq.reshape(t, n, bsz, hidden_dim),
                            (2, 0, 1, 3))                                  # (B,T,N,H)
    fin = h_fin.reshape(num_layers, n, bsz, hidden_dim)
    output_hidden = [jnp.transpose(fin[l], (1, 0, 2))                      # (B,N,H)
                     for l in range(num_layers)]
    return out_seq, output_hidden


# ---------------------------------------------------------------------------
# Pure-JAX reference (mirrors the PyTorch code 1:1) for correctness check.
# ---------------------------------------------------------------------------
def _ref_avwgcn(x, nv1, nv2, wpool, bpool, cheb_k):
    n = nv1.shape[0]
    supports = jax.nn.softmax(jax.nn.relu(nv1 @ nv2), axis=1)
    support_set = [jnp.eye(n, dtype=jnp.float32), supports]
    for _ in range(2, cheb_k):
        support_set.append(2.0 * supports @ support_set[-1] - support_set[-2])
    sup = jnp.stack(support_set, axis=0)
    nv = nv1 + nv2.T
    weights = jnp.einsum('nd,dkio->nkio', nv, wpool)
    bias = nv @ bpool
    x_g = jnp.einsum('knm,bmc->bknc', sup, x)
    x_g = jnp.transpose(x_g, (0, 2, 1, 3))
    return jnp.einsum('bnki,nkio->bno', x_g, weights) + bias


def _ref_cell(x, state, nv1, nv2, p, hidden_dim, cheb_k):
    wpg, bpg, wpu, bpu = p
    ins = jnp.concatenate([x, state], axis=-1)
    z_r = jax.nn.sigmoid(_ref_avwgcn(ins, nv1, nv2, wpg, bpg, cheb_k))
    z, r = z_r[..., :hidden_dim], z_r[..., hidden_dim:]
    cand = jnp.concatenate([x, z * state], axis=-1)
    hc = jnp.tanh(_ref_avwgcn(cand, nv1, nv2, wpu, bpu, cheb_k))
    return r * state + (1.0 - r) * hc


def _ref_forward(x, init_state, nv1, nv2, params, hidden_dim, cheb_k):
    b, t, n, _ = x.shape
    current = x
    output_hidden = []
    for i, p in enumerate(params):
        state = init_state[i]
        inner = []
        for tt in range(t):
            state = _ref_cell(current[:, tt], state, nv1, nv2, p, hidden_dim,
                              cheb_k)
            inner.append(state)
        output_hidden.append(state)
        current = jnp.stack(inner, axis=1)
    return current, output_hidden


# ---------------------------------------------------------------------------
if __name__ == "__main__":
    B, T, NUM_NODES = 2, 8, 16
    FEATURE_USED, HIDDEN, EMBED, CHEB_K, LAYERS = 4, 32, 10, 2, 2

    key = jax.random.PRNGKey(0)
    key, kx, kn1, kn2 = jax.random.split(key, 4)
    x = jax.random.normal(kx, (B, T, NUM_NODES, FEATURE_USED), jnp.float32)
    nodevec1 = jax.random.normal(kn1, (NUM_NODES, EMBED), jnp.float32) * 0.5
    nodevec2 = jax.random.normal(kn2, (EMBED, NUM_NODES), jnp.float32) * 0.5
    # init_hidden(): zeros per layer.
    init_state = jnp.zeros((LAYERS, B, NUM_NODES, HIDDEN), jnp.float32)

    # Deterministic parameter init (nn.Parameter shapes from __init__).
    params = []
    dim_in = FEATURE_USED
    for _ in range(LAYERS):
        c = dim_in + HIDDEN
        key, k0, k1, k2, k3 = jax.random.split(key, 5)
        wpool_g = jax.random.normal(k0, (EMBED, CHEB_K, c, 2 * HIDDEN),
                                    jnp.float32) * 0.1
        bpool_g = jax.random.normal(k1, (EMBED, 2 * HIDDEN), jnp.float32) * 0.1
        wpool_u = jax.random.normal(k2, (EMBED, CHEB_K, c, HIDDEN),
                                    jnp.float32) * 0.1
        bpool_u = jax.random.normal(k3, (EMBED, HIDDEN), jnp.float32) * 0.1
        params.append((wpool_g, bpool_g, wpool_u, bpool_u))
        dim_in = HIDDEN

    out_seq, out_hidden = avwdcrnn_forward(x, init_state, nodevec1, nodevec2,
                                           params, HIDDEN)
    out_seq = jax.block_until_ready(out_seq)
    out_hidden = [jax.block_until_ready(h) for h in out_hidden]

    ref_seq, ref_hidden = _ref_forward(x, init_state, nodevec1, nodevec2,
                                       params, HIDDEN, CHEB_K)
    assert out_seq.shape == (B, T, NUM_NODES, HIDDEN)
    assert len(out_hidden) == LAYERS
    assert jnp.allclose(out_seq, ref_seq, rtol=2e-3, atol=2e-3)
    for a, b_ in zip(out_hidden, ref_hidden):
        assert a.shape == (B, NUM_NODES, HIDDEN)
        assert jnp.allclose(a, b_, rtol=2e-3, atol=2e-3)

    print("KERNEL_OK")
</pallas_src>

<mosaic_0001>
module attributes {stable_mosaic.version = 11 : i64} {
  func.func @_prep_kernel(%arg0: memref<16x10xf32, #tpu.memory_space<vmem>>, %arg1: memref<10x16xf32, #tpu.memory_space<vmem>>, %arg2: memref<16x10xf32, #tpu.memory_space<vmem>>, %arg3: memref<10x4608xf32, #tpu.memory_space<vmem>>, %arg4: memref<10x64xf32, #tpu.memory_space<vmem>>, %arg5: memref<10x2304xf32, #tpu.memory_space<vmem>>, %arg6: memref<10x32xf32, #tpu.memory_space<vmem>>, %arg7: memref<10x8192xf32, #tpu.memory_space<vmem>>, %arg8: memref<10x64xf32, #tpu.memory_space<vmem>>, %arg9: memref<10x4096xf32, #tpu.memory_space<vmem>>, %arg10: memref<10x32xf32, #tpu.memory_space<vmem>>, %arg11: memref<2x16x16xf32, #tpu.memory_space<vmem>>, %arg12: memref<16x4608xf32, #tpu.memory_space<vmem>>, %arg13: memref<16x64xf32, #tpu.memory_space<vmem>>, %arg14: memref<16x2304xf32, #tpu.memory_space<vmem>>, %arg15: memref<16x32xf32, #tpu.memory_space<vmem>>, %arg16: memref<16x8192xf32, #tpu.memory_space<vmem>>, %arg17: memref<16x64xf32, #tpu.memory_space<vmem>>, %arg18: memref<16x4096xf32, #tpu.memory_space<vmem>>, %arg19: memref<16x32xf32, #tpu.memory_space<vmem>>) attributes {dimension_semantics = [], scalar_prefetch = 0 : i64, scratch_operands = 0 : i64, tpu.core_type = #tpu.core_type<tc>} {
    %c0 = arith.constant 0 : index
    %c0_0 = arith.constant 0 : index
    %0 = vector.load %arg0[%c0, %c0_0] : memref<16x10xf32, #tpu.memory_space<vmem>>, vector<16x10xf32>
    %c0_1 = arith.constant 0 : index
    %c0_2 = arith.constant 0 : index
    %1 = vector.load %arg1[%c0_1, %c0_2] : memref<10x16xf32, #tpu.memory_space<vmem>>, vector<10x16xf32>
    %cst = arith.constant dense<0.000000e+00> : vector<16x16xf32>
    %2 = tpu.matmul %0, %1, %cst {dimension_numbers = #tpu.dot_dimension_numbers<[1], [0], [0], [1], [0, 0, 1, 1], [], []>} : vector<16x10xf32>, vector<10x16xf32>, vector<16x16xf32> -> vector<16x16xf32>
    %cst_3 = arith.constant 0.000000e+00 : f32
    %3 = vector.broadcast %cst_3 : f32 to vector<16x16xf32>
    %4 = arith.maximumf %2, %3 : vector<16x16xf32>
    %cst_4 = arith.constant dense<0xFF800000> : vector<16xf32>
    %5 = vector.multi_reduction <maximumf>, %4, %cst_4 [1] : vector<16x16xf32> to vector<16xf32>
    %6 = vector.shape_cast %5 : vector<16xf32> to vector<16x1xf32>
    %7 = vector.broadcast %6 : vector<16x1xf32> to vector<16x16xf32>
    %8 = arith.subf %4, %7 : vector<16x16xf32>
    %9 = math.exp %8 : vector<16x16xf32>
    %cst_5 = arith.constant dense<0.000000e+00> : vector<16xf32>
    %10 = vector.multi_reduction <add>, %9, %cst_5 [1] : vector<16x16xf32> to vector<16xf32>
    %11 = vector.shape_cast %10 : vector<16xf32> to vector<16x1xf32>
    %12 = vector.broadcast %11 : vector<16x1xf32> to vector<16x16xf32>
    %13 = arith.divf %9, %12 : vector<16x16xf32>
    %14 = tpu.iota {dimensions = array<i32: 0>} : vector<16x16xi32>
    %15 = tpu.iota {dimensions = array<i32: 1>} : vector<16x16xi32>
    %16 = arith.cmpi eq, %14, %15 : vector<16x16xi32>
    %17 = arith.extui %16 : vector<16x16xi1> to vector<16x16xi32>
    %18 = arith.sitofp %17 : vector<16x16xi32> to vector<16x16xf32>
    %c0_6 = arith.constant 0 : index
    %c0_7 = arith.constant 0 : index
    %c0_8 = arith.constant 0 : index
    %19 = vector.load %arg11[%c0_6, %c0_7, %c0_8] : memref<2x16x16xf32, #tpu.memory_space<vmem>>, vector<1x16x16xf32>
    %20 = vector.shape_cast %19 : vector<1x16x16xf32> to vector<16x16xf32>
    %21 = vector.shape_cast %18 : vector<16x16xf32> to vector<1x16x16xf32>
    tpu.vector_store %arg11[%c0_6, %c0_7, %c0_8], %21 {strides = array<i32>} : memref<2x16x16xf32, #tpu.memory_space<vmem>>, vector<1x16x16xf32>,
    %c1 = arith.constant 1 : index
    %c0_9 = arith.constant 0 : index
    %c0_10 = arith.constant 0 : index
    %22 = vector.load %arg11[%c1, %c0_9, %c0_10] : memref<2x16x16xf32, #tpu.memory_space<vmem>>, vector<1x16x16xf32>
    %23 = vector.shape_cast %22 : vector<1x16x16xf32> to vector<16x16xf32>
    %24 = vector.shape_cast %13 : vector<16x16xf32> to vector<1x16x16xf32>
    tpu.vector_store %arg11[%c1, %c0_9, %c0_10], %24 {strides = array<i32>} : memref<2x16x16xf32, #tpu.memory_space<vmem>>, vector<1x16x16xf32>,
    %c0_11 = arith.constant 0 : index
    %c0_12 = arith.constant 0 : index
    %25 = vector.load %arg2[%c0_11, %c0_12] : memref<16x10xf32, #tpu.memory_space<vmem>>, vector<16x10xf32>
    %26 = arith.addf %0, %25 : vector<16x10xf32>
    %c0_13 = arith.constant 0 : index
    %c0_14 = arith.constant 0 : index
    %27 = vector.load %arg3[%c0_13, %c0_14] : memref<10x4608xf32, #tpu.memory_space<vmem>>, vector<10x4608xf32>
    %cst_15 = arith.constant dense<0.000000e+00> : vector<16x4608xf32>
    %28 = tpu.matmul %26, %27, %cst_15 {dimension_numbers = #tpu.dot_dimension_numbers<[1], [0], [0], [1], [0, 0, 1, 1], [], []>} : vector<16x10xf32>, vector<10x4608xf32>, vector<16x4608xf32> -> vector<16x4608xf32>
    %c0_16 = arith.constant 0 : index
    %c0_17 = arith.constant 0 : index
    %29 = vector.load %arg12[%c0_16, %c0_17] : memref<16x4608xf32, #tpu.memory_space<vmem>>, vector<16x4608xf32>
    tpu.vector_store %arg12[%c0_16, %c0_17], %28 {strides = array<i32>} : memref<16x4608xf32, #tpu.memory_space<vmem>>, vector<16x4608xf32>,
    %c0_18 = arith.constant 0 : index
    %c0_19 = arith.constant 0 : index
    %30 = vector.load %arg4[%c0_18, %c0_19] : memref<10x64xf32, #tpu.memory_space<vmem>>, vector<10x64xf32>
    %cst_20 = arith.constant dense<0.000000e+00> : vector<16x64xf32>
    %31 = tpu.matmul %26, %30, %cst_20 {dimension_numbers = #tpu.dot_dimension_numbers<[1], [0], [0], [1], [0, 0, 1, 1], [], []>} : vector<16x10xf32>, vector<10x64xf32>, vector<16x64xf32> -> vector<16x64xf32>
    %c0_21 = arith.constant 0 : index
    %c0_22 = arith.constant 0 : index
    %32 = vector.load %arg13[%c0_21, %c0_22] : memref<16x64xf32, #tpu.memory_space<vmem>>, vector<16x64xf32>
    tpu.vector_store %arg13[%c0_21, %c0_22], %31 {strides = array<i32>} : memref<16x64xf32, #tpu.memory_space<vmem>>, vector<16x64xf32>,
    %c0_23 = arith.constant 0 : index
    %c0_24 = arith.constant 0 : index
    %33 = vector.load %arg5[%c0_23, %c0_24] : memref<10x2304xf32, #tpu.memory_space<vmem>>, vector<10x2304xf32>
    %cst_25 = arith.constant dense<0.000000e+00> : vector<16x2304xf32>
    %34 = tpu.matmul %26, %33, %cst_25 {dimension_numbers = #tpu.dot_dimension_numbers<[1], [0], [0], [1], [0, 0, 1, 1], [], []>} : vector<16x10xf32>, vector<10x2304xf32>, vector<16x2304xf32> -> vector<16x2304xf32>
    %c0_26 = arith.constant 0 : index
    %c0_27 = arith.constant 0 : index
    %35 = vector.load %arg14[%c0_26, %c0_27] : memref<16x2304xf32, #tpu.memory_space<vmem>>, vector<16x2304xf32>
    tpu.vector_store %arg14[%c0_26, %c0_27], %34 {strides = array<i32>} : memref<16x2304xf32, #tpu.memory_space<vmem>>, vector<16x2304xf32>,
    %c0_28 = arith.constant 0 : index
    %c0_29 = arith.constant 0 : index
    %36 = vector.load %arg6[%c0_28, %c0_29] : memref<10x32xf32, #tpu.memory_space<vmem>>, vector<10x32xf32>
    %cst_30 = arith.constant dense<0.000000e+00> : vector<16x32xf32>
    %37 = tpu.matmul %26, %36, %cst_30 {dimension_numbers = #tpu.dot_dimension_numbers<[1], [0], [0], [1], [0, 0, 1, 1], [], []>} : vector<16x10xf32>, vector<10x32xf32>, vector<16x32xf32> -> vector<16x32xf32>
    %c0_31 = arith.constant 0 : index
    %c0_32 = arith.constant 0 : index
    %38 = vector.load %arg15[%c0_31, %c0_32] : memref<16x32xf32, #tpu.memory_space<vmem>>, vector<16x32xf32>
    tpu.vector_store %arg15[%c0_31, %c0_32], %37 {strides = array<i32>} : memref<16x32xf32, #tpu.memory_space<vmem>>, vector<16x32xf32>,
    %c0_33 = arith.constant 0 : index
    %c0_34 = arith.constant 0 : index
    %39 = vector.load %arg7[%c0_33, %c0_34] : memref<10x8192xf32, #tpu.memory_space<vmem>>, vector<10x8192xf32>
    %cst_35 = arith.constant dense<0.000000e+00> : vector<16x8192xf32>
    %40 = tpu.matmul %26, %39, %cst_35 {dimension_numbers = #tpu.dot_dimension_numbers<[1], [0], [0], [1], [0, 0, 1, 1], [], []>} : vector<16x10xf32>, vector<10x8192xf32>, vector<16x8192xf32> -> vector<16x8192xf32>
    %c0_36 = arith.constant 0 : index
    %c0_37 = arith.constant 0 : index
    %41 = vector.load %arg16[%c0_36, %c0_37] : memref<16x8192xf32, #tpu.memory_space<vmem>>, vector<16x8192xf32>
    tpu.vector_store %arg16[%c0_36, %c0_37], %40 {strides = array<i32>} : memref<16x8192xf32, #tpu.memory_space<vmem>>, vector<16x8192xf32>,
    %c0_38 = arith.constant 0 : index
    %c0_39 = arith.constant 0 : index
    %42 = vector.load %arg8[%c0_38, %c0_39] : memref<10x64xf32, #tpu.memory_space<vmem>>, vector<10x64xf32>
    %cst_40 = arith.constant dense<0.000000e+00> : vector<16x64xf32>
    %43 = tpu.matmul %26, %42, %cst_40 {dimension_numbers = #tpu.dot_dimension_numbers<[1], [0], [0], [1], [0, 0, 1, 1], [], []>} : vector<16x10xf32>, vector<10x64xf32>, vector<16x64xf32> -> vector<16x64xf32>
    %c0_41 = arith.constant 0 : index
    %c0_42 = arith.constant 0 : index
    %44 = vector.load %arg17[%c0_41, %c0_42] : memref<16x64xf32, #tpu.memory_space<vmem>>, vector<16x64xf32>
    tpu.vector_store %arg17[%c0_41, %c0_42], %43 {strides = array<i32>} : memref<16x64xf32, #tpu.memory_space<vmem>>, vector<16x64xf32>,
    %c0_43 = arith.constant 0 : index
    %c0_44 = arith.constant 0 : index
    %45 = vector.load %arg9[%c0_43, %c0_44] : memref<10x4096xf32, #tpu.memory_space<vmem>>, vector<10x4096xf32>
    %cst_45 = arith.constant dense<0.000000e+00> : vector<16x4096xf32>
    %46 = tpu.matmul %26, %45, %cst_45 {dimension_numbers = #tpu.dot_dimension_numbers<[1], [0], [0], [1], [0, 0, 1, 1], [], []>} : vector<16x10xf32>, vector<10x4096xf32>, vector<16x4096xf32> -> vector<16x4096xf32>
    %c0_46 = arith.constant 0 : index
    %c0_47 = arith.constant 0 : index
    %47 = vector.load %arg18[%c0_46, %c0_47] : memref<16x4096xf32, #tpu.memory_space<vmem>>, vector<16x4096xf32>
    tpu.vector_store %arg18[%c0_46, %c0_47], %46 {strides = array<i32>} : memref<16x4096xf32, #tpu.memory_space<vmem>>, vector<16x4096xf32>,
    %c0_48 = arith.constant 0 : index
    %c0_49 = arith.constant 0 : index
    %48 = vector.load %arg10[%c0_48, %c0_49] : memref<10x32xf32, #tpu.memory_space<vmem>>, vector<10x32xf32>
    %cst_50 = arith.constant dense<0.000000e+00> : vector<16x32xf32>
    %49 = tpu.matmul %26, %48, %cst_50 {dimension_numbers = #tpu.dot_dimension_numbers<[1], [0], [0], [1], [0, 0, 1, 1], [], []>} : vector<16x10xf32>, vector<10x32xf32>, vector<16x32xf32> -> vector<16x32xf32>
    %c0_51 = arith.constant 0 : index
    %c0_52 = arith.constant 0 : index
    %50 = vector.load %arg19[%c0_51, %c0_52] : memref<16x32xf32, #tpu.memory_space<vmem>>, vector<16x32xf32>
    tpu.vector_store %arg19[%c0_51, %c0_52], %49 {strides = array<i32>} : memref<16x32xf32, #tpu.memory_space<vmem>>, vector<16x32xf32>,
    return
  }
}

</mosaic_0001>

<llo_original>
// kernel: tpu_custom_call.1
$region0: #{tpu_custom_call.1}
  #allocation0 [shape = 'u32[]', space=smem, size = 0x4, offset = 0x4, fixed_abs, tag = 'smem constant byte address 0x4 - core index']
  #allocation1 [shape = 'u32[72,128]{1,0:T(1,128)}', space=vmem, size = 0x9000, scoped, tag = 'internal scratch']
  %s0 = inlined_call_operand.hbm [shape: f32[16,10], index: 0, kind: input, shape index: {}]
  %s1 = inlined_call_operand.hbm [shape: f32[10,16], index: 1, kind: input, shape index: {}]
  %s2 = inlined_call_operand.hbm [shape: f32[16,10], index: 2, kind: input, shape index: {}]
  %s3 = inlined_call_operand.hbm [shape: f32[10,4608], index: 3, kind: input, shape index: {}]
  %s4 = inlined_call_operand.hbm [shape: f32[10,64], index: 4, kind: input, shape index: {}]
  %s5 = inlined_call_operand.hbm [shape: f32[10,2304], index: 5, kind: input, shape index: {}]
  %s6 = inlined_call_operand.hbm [shape: f32[10,32], index: 6, kind: input, shape index: {}]
  %s7 = inlined_call_operand.hbm [shape: f32[10,8192], index: 7, kind: input, shape index: {}]
  %s8 = inlined_call_operand.hbm [shape: f32[10,64], index: 8, kind: input, shape index: {}]
  %s9 = inlined_call_operand.hbm [shape: f32[10,4096], index: 9, kind: input, shape index: {}]
  %s10 = inlined_call_operand.hbm [shape: f32[10,32], index: 10, kind: input, shape index: {}]
  %s11 = inlined_call_operand.hbm [shape: f32[2,16,16], index: 11, kind: output, shape index: {0}]
  %s12 = inlined_call_operand.hbm [shape: f32[16,4608], index: 12, kind: output, shape index: {1}]
  %s13 = inlined_call_operand.hbm [shape: f32[16,64], index: 13, kind: output, shape index: {2}]
  %s14 = inlined_call_operand.hbm [shape: f32[16,2304], index: 14, kind: output, shape index: {3}]
  %s15 = inlined_call_operand.hbm [shape: f32[16,32], index: 15, kind: output, shape index: {4}]
  %s16 = inlined_call_operand.hbm [shape: f32[16,8192], index: 16, kind: output, shape index: {5}]
  %s17 = inlined_call_operand.hbm [shape: f32[16,64], index: 17, kind: output, shape index: {6}]
  %s18 = inlined_call_operand.hbm [shape: f32[16,4096], index: 18, kind: output, shape index: {7}]
  %s19 = inlined_call_operand.hbm [shape: f32[16,32], index: 19, kind: output, shape index: {8}]
  %20 = xla_tuple %s11, %s12, %s13, %s14, %s15, %s16, %s17, %s18, %s19
  %s21 = sld [smem:[#allocation0]]
  $region162: #{tpu_custom_call.1} parent=0
    _
  %s23 = ssub.s32 1, %s21
  %s24 = scalar_select 0, %s23, %s21
  $region1: #{tpu_custom_call.1} parent=0
    #allocation2 [shape = 'u8[8192]{0}', space=vmem, size = 0x2000, scoped, tag = 'input window, operand 0, single buffered']
    #allocation3 [shape = 's32[1]{0}', space=sflag, size = 0x4, scoped, tag = 'scoped memory for tpu_custom_call.1']
    #allocation4 [shape = 's32[1]{0}', space=sflag, size = 0x4, scoped, tag = 'scoped memory for tpu_custom_call.1']
    #allocation5 [shape = 'u8[8192]{0}', space=vmem, size = 0x2000, scoped, tag = 'input window, operand 1, single buffered']
    #allocation6 [shape = 's32[1]{0}', space=sflag, size = 0x4, scoped, tag = 'scoped memory for tpu_custom_call.1']
    #allocation7 [shape = 'u8[8192]{0}', space=vmem, size = 0x2000, scoped, tag = 'input window, operand 2, single buffered']
    #allocation8 [shape = 'u8[294912]{0}', space=vmem, size = 0x48000, scoped, tag = 'input window, operand 3, single buffered']
    #allocation9 [shape = 's32[1]{0}', space=sflag, size = 0x4, scoped, tag = 'scoped memory for tpu_custom_call.1']
    #allocation10 [shape = 'u8[8192]{0}', space=vmem, size = 0x2000, scoped, tag = 'input window, operand 4, single buffered']
    #allocation11 [shape = 'u8[147456]{0}', space=vmem, size = 0x24000, scoped, tag = 'input window, operand 5, single buffered']
    #allocation12 [shape = 's32[1]{0}', space=sflag, size = 0x4, scoped, tag = 'scoped memory for tpu_custom_call.1']
    #allocation13 [shape = 'u8[8192]{0}', space=vmem, size = 0x2000, scoped, tag = 'input window, operand 6, single buffered']
    #allocation14 [shape = 'u8[524288]{0}', space=vmem, size = 0x80000, scoped, tag = 'input window, operand 7, single buffered']
    #allocation15 [shape = 's32[1]{0}', space=sflag, size = 0x4, scoped, tag = 'scoped memory for tpu_custom_call.1']
    #allocation16 [shape = 'u8[8192]{0}', space=vmem, size = 0x2000, scoped, tag = 'input window, operand 8, single buffered']
    #allocation17 [shape = 'u8[262144]{0}', space=vmem, size = 0x40000, scoped, tag = 'input window, operand 9, single buffered']
    #allocation18 [shape = 's32[1]{0}', space=sflag, size = 0x4, scoped, tag = 'scoped memory for tpu_custom_call.1']
    #allocation19 [shape = 'u8[8192]{0}', space=vmem, size = 0x2000, scoped, tag = 'input window, operand 10, single buffered']
    #allocation20 [shape = 'u8[16384]{0}', space=vmem, size = 0x4000, scoped, tag = 'output window, operand 0, single buffered']
    #allocation21 [shape = 'u8[294912]{0}', space=vmem, size = 0x48000, scoped, tag = 'output window, operand 1, single buffered']
    #allocation22 [shape = 's32[1]{0}', space=sflag, size = 0x4, scoped, tag = 'scoped memory for tpu_custom_call.1']
    #allocation23 [shape = 'u8[8192]{0}', space=vmem, size = 0x2000, scoped, tag = 'output window, operand 2, single buffered']
    #allocation24 [shape = 'u8[147456]{0}', space=vmem, size = 0x24000, scoped, tag = 'output window, operand 3, single buffered']
    #allocation25 [shape = 's32[1]{0}', space=sflag, size = 0x4, scoped, tag = 'scoped memory for tpu_custom_call.1']
    #allocation26 [shape = 'u8[8192]{0}', space=vmem, size = 0x2000, scoped, tag = 'output window, operand 4, single buffered']
    #allocation27 [shape = 'u8[524288]{0}', space=vmem, size = 0x80000, scoped, tag = 'output window, operand 5, single buffered']
    #allocation28 [shape = 's32[1]{0}', space=sflag, size = 0x4, scoped, tag = 'scoped memory for tpu_custom_call.1']
    #allocation29 [shape = 'u8[8192]{0}', space=vmem, size = 0x2000, scoped, tag = 'output window, operand 6, single buffered']
    #allocation30 [shape = 'u8[262144]{0}', space=vmem, size = 0x40000, scoped, tag = 'output window, operand 7, single buffered']
    #allocation31 [shape = 's32[1]{0}', space=sflag, size = 0x4, scoped, tag = 'scoped memory for tpu_custom_call.1']
    #allocation32 [shape = 'u8[8192]{0}', space=vmem, size = 0x2000, scoped, tag = 'output window, operand 8, single buffered']
    %25 = vsyncpa [#allocation3], 0
    %26 = vsyncpa [#allocation6], 0
    %27 = vsyncpa [#allocation9], 0
    %28 = vsyncpa [#allocation12], 0
    %29 = vsyncpa [#allocation15], 0
    %30 = vsyncpa [#allocation18], 0
    %31 = vsyncpa [#allocation4], 0
    %32 = vsyncpa [#allocation22], 0
    %33 = vsyncpa [#allocation25], 0
    %34 = vsyncpa [#allocation28], 0
    %35 = vsyncpa [#allocation31], 0
    // Predicated region
    $region2: #{tpu_custom_call.1} parent=1 // pred_check
      _
    $region3: #{tpu_custom_call.1} parent=1 // pred_check_branch
      %37 = sbr.rel (0) target = $region5
    $region4: #{tpu_custom_call.1} parent=1 // pred_region
      %39 = vsyncadd [#allocation3], 0
      %s40 = sshll.u32 %s0, 4
      %s41 = int_to_ptr.hbm [resolvable:$true] %s40
      %s42 = sshll.u32 [#allocation2], 4
      %s43 = int_to_ptr.vmem [resolvable:$true] %s42
      %48 = dma.hbm_to_vmem [thread:$0]  %s41, 256, %s43, [#allocation3], 128, 128, 8
    $region5: #{tpu_custom_call.1} parent=1 // pred_fallthru
      _
    // Predicated region
    $region6: #{tpu_custom_call.1} parent=1 // pred_check
      _
    $region7: #{tpu_custom_call.1} parent=1 // pred_check_branch
      %50 = sbr.rel (0) target = $region9
    $region8: #{tpu_custom_call.1} parent=1 // pred_region
      %52 = vsyncadd [#allocation6], 0
      %s53 = sshll.u32 %s1, 4
      %s54 = int_to_ptr.hbm [resolvable:$true] %s53
      %s55 = sshll.u32 [#allocation5], 4
      %s56 = int_to_ptr.vmem [resolvable:$true] %s55
      %61 = dma.hbm_to_vmem [thread:$0]  %s54, 256, %s56, [#allocation6], 128, 128, 8
    $region9: #{tpu_custom_call.1} parent=1 // pred_fallthru
      _
    // Predicated region
    $region10: #{tpu_custom_call.1} parent=1 // pred_check
      _
    $region11: #{tpu_custom_call.1} parent=1 // pred_check_branch
      %63 = sbr.rel (0) target = $region13
    $region12: #{tpu_custom_call.1} parent=1 // pred_region
      %65 = vsyncadd [#allocation6], 0
      %s66 = sshll.u32 %s2, 4
      %s67 = int_to_ptr.hbm [resolvable:$true] %s66
      %s68 = sshll.u32 [#allocation7], 4
      %s69 = int_to_ptr.vmem [resolvable:$true] %s68
      %74 = dma.hbm_to_vmem [thread:$0]  %s67, 256, %s69, [#allocation6], 128, 128, 8
    $region13: #{tpu_custom_call.1} parent=1 // pred_fallthru
      _
    // Predicated region
    $region14: #{tpu_custom_call.1} parent=1 // pred_check
      _
    $region15: #{tpu_custom_call.1} parent=1 // pred_check_branch
      %76 = sbr.rel (0) target = $region17
    $region16: #{tpu_custom_call.1} parent=1 // pred_region
      %78 = vsyncadd [#allocation9], 0
      %s79 = sshll.u32 %s3, 4
      %s80 = int_to_ptr.hbm [resolvable:$true] %s79
      %s81 = sshll.u32 [#allocation8], 4
      %s82 = int_to_ptr.vmem [resolvable:$true] %s81
      %87 = dma.hbm_to_vmem [thread:$0]  %s80, 9216, %s82, [#allocation9], 4608, 4608, 288
    $region17: #{tpu_custom_call.1} parent=1 // pred_fallthru
      _
    // Predicated region
    $region18: #{tpu_custom_call.1} parent=1 // pred_check
      _
    $region19: #{tpu_custom_call.1} parent=1 // pred_check_branch
      %89 = sbr.rel (0) target = $region21
    $region20: #{tpu_custom_call.1} parent=1 // pred_region
      %91 = vsyncadd [#allocation9], 0
      %s92 = sshll.u32 %s4, 4
      %s93 = int_to_ptr.hbm [resolvable:$true] %s92
      %s94 = sshll.u32 [#allocation10], 4
      %s95 = int_to_ptr.vmem [resolvable:$true] %s94
      %100 = dma.hbm_to_vmem [thread:$0]  %s93, 256, %s95, [#allocation9], 128, 128, 8
    $region21: #{tpu_custom_call.1} parent=1 // pred_fallthru
      _
    // Predicated region
    $region22: #{tpu_custom_call.1} parent=1 // pred_check
      _
    $region23: #{tpu_custom_call.1} parent=1 // pred_check_branch
      %102 = sbr.rel (0) target = $region25
    $region24: #{tpu_custom_call.1} parent=1 // pred_region
      %104 = vsyncadd [#allocation12], 0
      %s105 = sshll.u32 %s5, 4
      %s106 = int_to_ptr.hbm [resolvable:$true] %s105
      %s107 = sshll.u32 [#allocation11], 4
      %s108 = int_to_ptr.vmem [resolvable:$true] %s107
      %113 = dma.hbm_to_vmem [thread:$0]  %s106, 4608, %s108, [#allocation12], 2304, 2304, 144
    $region25: #{tpu_custom_call.1} parent=1 // pred_fallthru
      _
    // Predicated region
    $region26: #{tpu_custom_call.1} parent=1 // pred_check
      _
    $region27: #{tpu_custom_call.1} parent=1 // pred_check_branch
      %115 = sbr.rel (0) target = $region29
    $region28: #{tpu_custom_call.1} parent=1 // pred_region
      %117 = vsyncadd [#allocation12], 0
      %s118 = sshll.u32 %s6, 4
      %s119 = int_to_ptr.hbm [resolvable:$true] %s118
      %s120 = sshll.u32 [#allocation13], 4
      %s121 = int_to_ptr.vmem [resolvable:$true] %s120
      %126 = dma.hbm_to_vmem [thread:$0]  %s119, 256, %s121, [#allocation12], 128, 128, 8
    $region29: #{tpu_custom_call.1} parent=1 // pred_fallthru
      _
    // Predicated region
    $region30: #{tpu_custom_call.1} parent=1 // pred_check
      _
    $region31: #{tpu_custom_call.1} parent=1 // pred_check_branch
      %128 = sbr.rel (0) target = $region33
    $region32: #{tpu_custom_call.1} parent=1 // pred_region
      %130 = vsyncadd [#allocation15], 0
      %s131 = sshll.u32 %s7, 4
      %s132 = int_to_ptr.hbm [resolvable:$true] %s131
      %s133 = sshll.u32 [#allocation14], 4
      %s134 = int_to_ptr.vmem [resolvable:$true] %s133
      %139 = dma.hbm_to_vmem [thread:$0]  %s132, 16384, %s134, [#allocation15], 8192, 8192, 512
    $region33: #{tpu_custom_call.1} parent=1 // pred_fallthru
      _
    // Predicated region
    $region34: #{tpu_custom_call.1} parent=1 // pred_check
      _
    $region35: #{tpu_custom_call.1} parent=1 // pred_check_branch
      %141 = sbr.rel (0) target = $region37
    $region36: #{tpu_custom_call.1} parent=1 // pred_region
      %143 = vsyncadd [#allocation15], 0
      %s144 = sshll.u32 %s8, 4
      %s145 = int_to_ptr.hbm [resolvable:$true] %s144
      %s146 = sshll.u32 [#allocation16], 4
      %s147 = int_to_ptr.vmem [resolvable:$true] %s146
      %152 = dma.hbm_to_vmem [thread:$0]  %s145, 256, %s147, [#allocation15], 128, 128, 8
    $region37: #{tpu_custom_call.1} parent=1 // pred_fallthru
      _
    // Predicated region
    $region38: #{tpu_custom_call.1} parent=1 // pred_check
      _
    $region39: #{tpu_custom_call.1} parent=1 // pred_check_branch
      %154 = sbr.rel (0) target = $region41
    $region40: #{tpu_custom_call.1} parent=1 // pred_region
      %156 = vsyncadd [#allocation18], 0
      %s157 = sshll.u32 %s9, 4
      %s158 = int_to_ptr.hbm [resolvable:$true] %s157
      %s159 = sshll.u32 [#allocation17], 4
      %s160 = int_to_ptr.vmem [resolvable:$true] %s159
      %165 = dma.hbm_to_vmem [thread:$0]  %s158, 8192, %s160, [#allocation18], 4096, 4096, 256
    $region41: #{tpu_custom_call.1} parent=1 // pred_fallthru
      _
    // Predicated region
    $region42: #{tpu_custom_call.1} parent=1 // pred_check
      _
    $region43: #{tpu_custom_call.1} parent=1 // pred_check_branch
      %167 = sbr.rel (0) target = $region45
    $region44: #{tpu_custom_call.1} parent=1 // pred_region
      %169 = vsyncadd [#allocation18], 0
      %s170 = sshll.u32 %s10, 4
      %s171 = int_to_ptr.hbm [resolvable:$true] %s170
      %s172 = sshll.u32 [#allocation19], 4
      %s173 = int_to_ptr.vmem [resolvable:$true] %s172
      %178 = dma.hbm_to_vmem [thread:$0]  %s171, 256, %s173, [#allocation18], 128, 128, 8
    $region45: #{tpu_custom_call.1} parent=1 // pred_fallthru
      _
    // Predicated region
    $region46: #{tpu_custom_call.1} parent=1 // pred_check
      _
    $region47: #{tpu_custom_call.1} parent=1 // pred_check_branch
      %180 = sbr.rel (0) target = $region49
    $region48: #{tpu_custom_call.1} parent=1 // pred_region
      %182 = dma.done [#allocation3], 256
    $region49: #{tpu_custom_call.1} parent=1 // pred_fallthru
      _
    // Predicated region
    $region50: #{tpu_custom_call.1} parent=1 // pred_check
      _
    $region51: #{tpu_custom_call.1} parent=1 // pred_check_branch
      %184 = sbr.rel (0) target = $region53
    $region52: #{tpu_custom_call.1} parent=1 // pred_region
      %186 = dma.done [#allocation6], 256
    $region53: #{tpu_custom_call.1} parent=1 // pred_fallthru
      _
    // Predicated region
    $region54: #{tpu_custom_call.1} parent=1 // pred_check
      _
    $region55: #{tpu_custom_call.1} parent=1 // pred_check_branch
      %188 = sbr.rel (0) target = $region57
    $region56: #{tpu_custom_call.1} parent=1 // pred_region
      %190 = dma.done [#allocation6], 256
    $region57: #{tpu_custom_call.1} parent=1 // pred_fallthru
      _
    // Predicated region
    $region58: #{tpu_custom_call.1} parent=1 // pred_check
      _
    $region59: #{tpu_custom_call.1} parent=1 // pred_check_branch
      %192 = sbr.rel (0) target = $region61
    $region60: #{tpu_custom_call.1} parent=1 // pred_region
      %194 = dma.done [#allocation9], 9216
    $region61: #{tpu_custom_call.1} parent=1 // pred_fallthru
      _
    // Predicated region
    $region62: #{tpu_custom_call.1} parent=1 // pred_check
      _
    $region63: #{tpu_custom_call.1} parent=1 // pred_check_branch
      %196 = sbr.rel (0) target = $region65
    $region64: #{tpu_custom_call.1} parent=1 // pred_region
      %198 = dma.done [#allocation9], 256
    $region65: #{tpu_custom_call.1} parent=1 // pred_fallthru
      _
    // Predicated region
    $region66: #{tpu_custom_call.1} parent=1 // pred_check
      _
    $region67: #{tpu_custom_call.1} parent=1 // pred_check_branch
      %200 = sbr.rel (0) target = $region69
    $region68: #{tpu_custom_call.1} parent=1 // pred_region
      %202 = dma.done [#allocation12], 4608
    $region69: #{tpu_custom_call.1} parent=1 // pred_fallthru
      _
    // Predicated region
    $region70: #{tpu_custom_call.1} parent=1 // pred_check
      _
    $region71: #{tpu_custom_call.1} parent=1 // pred_check_branch
      %204 = sbr.rel (0) target = $region73
    $region72: #{tpu_custom_call.1} parent=1 // pred_region
      %206 = dma.done [#allocation12], 256
    $region73: #{tpu_custom_call.1} parent=1 // pred_fallthru
      _
    // Predicated region
    $region74: #{tpu_custom_call.1} parent=1 // pred_check
      _
    $region75: #{tpu_custom_call.1} parent=1 // pred_check_branch
      %208 = sbr.rel (0) target = $region77
    $region76: #{tpu_custom_call.1} parent=1 // pred_region
      %210 = dma.done [#allocation15], 16384
    $region77: #{tpu_custom_call.1} parent=1 // pred_fallthru
      _
    // Predicated region
    $region78: #{tpu_custom_call.1} parent=1 // pred_check
      _
    $region79: #{tpu_custom_call.1} parent=1 // pred_check_branch
      %212 = sbr.rel (0) target = $region81
    $region80: #{tpu_custom_call.1} parent=1 // pred_region
      %214 = dma.done [#allocation15], 256
    $region81: #{tpu_custom_call.1} parent=1 // pred_fallthru
      _
    // Predicated region
    $region82: #{tpu_custom_call.1} parent=1 // pred_check
      _
    $region83: #{tpu_custom_call.1} parent=1 // pred_check_branch
      %216 = sbr.rel (0) target = $region85
    $region84: #{tpu_custom_call.1} parent=1 // pred_region
      %218 = dma.done [#allocation18], 8192
    $region85: #{tpu_custom_call.1} parent=1 // pred_fallthru
      _
    // Predicated region
    $region86: #{tpu_custom_call.1} parent=1 // pred_check
      _
    $region87: #{tpu_custom_call.1} parent=1 // pred_check_branch
      %220 = sbr.rel (0) target = $region89
    $region88: #{tpu_custom_call.1} parent=1 // pred_region
      %222 = dma.done [#allocation18], 256
    $region89: #{tpu_custom_call.1} parent=1 // pred_fallthru
      _
    %v223 = vld [vmem:[#allocation2] sm:$0xff]
    %v224 = vld [vmem:[#allocation2 + $0x8] sm:$0xff]
    %v225 = vld [vmem:[#allocation5] sm:$0xff]
    %v226 = vld [vmem:[#allocation5 + $0x8] sm:$0x3]
    %vm227 = vcmask 80896
    %v229 = vsel %vm227, %v223, 0
    %v232 = vsel %vm227, %v224, 0
    %vm234 = vcmask 1041408
    %v236 = vsel %vm234, %v226, 0
    %238 = vmatpush.msra.mxu0 0.0
    %239 = vmatpush.msra.mxu0 0.0
    %240 = vmatpush.msra.mxu0 0.0
    %241 = vmatpush.msra.mxu0 0.0
    %242 = vmatpush.msra.mxu0 0.0
    %243 = vmatpush.msra.mxu0 0.0
    %244 = vmatpush.msra.mxu0 0.0
    %245 = vmatpush.msra.mxu0 0.0
    %246 = vmatpush.msra.mxu0 0.0
    %247 = vmatpush.msra.mxu0 0.0
    %248 = vmatpush.msra.mxu0 0.0
    %249 = vmatpush.msra.mxu0 0.0
    %250 = vmatpush.msra.mxu0 0.0
    %251 = vmatpush.msra.mxu0 0.0
    %252 = vmatpush.msra.mxu0 %v236
    %253 = vmatpush.msra.mxu0 %v225
    %254 = vmatmul.f32.gmra.mxu0 %v229
    %v255 = vpop.f32.mrf.mxu0
    %v256 = vadd.f32 0.0, %v255
    %257 = vmatmul.f32.gmra.mxu0 %v232
    %v258 = vpop.f32.mrf.mxu0
    %v259 = vadd.f32 0.0, %v258
    %260 = vdwg.mxu0
    %v261 = vmax.f32 %v256, 0.0
    %v262 = vmax.f32 %v259, 0.0
    %vm263 = vcmask 130048
    %v264 = vsel %vm263, %v261, -inf
    %265 = vmax.xlane.f32.xlu0 %v264
    %v266 = vpop.xlane.xlu0 %265
    %v267 = vsel %vm263, %v262, -inf
    %268 = vmax.xlane.f32.xlu0 %v267
    %v269 = vpop.xlane.xlu0 %268
    %v270 = vsub.f32 %v261, %v266
    %v271 = vsub.f32 %v262, %v269
    %v272 = vmul.f32 %v270, 1.442695
    %v273 = vpow.pop %v272
    %v274 = vmul.f32 %v271, 1.442695
    %v275 = vpow.pop %v274
    %v276 = vsel %vm263, %v273, 0.0
    %277 = vadd.xlane.f32.xlu0 %v276
    %v278 = vpop.xlane.xlu0 %277
    %v279 = vsel %vm263, %v275, 0.0
    %280 = vadd.xlane.f32.xlu0 %v279
    %v281 = vpop.xlane.xlu0 %280
    %v282 = vrcp.pop %v278
    %v283 = vmul.f32 %v278, %v282
    %v284 = vsub.f32 1.0, %v283
    %v285 = vmul.f32 %v282, %v284
    %v286 = vadd.f32 %v282, %v285
    %vm287 = vweird.f32 %v278
    %vm288 = vweird.f32 %v282
    %vm289 = vmor %vm287, %vm288
    %v290 = vsel %vm289, %v282, %v286
    %v291 = vand.u32 2147483647, %v278
    %vm292 = vcmp.eq.f32.partialorder %v291, 8.507059e+37
    %v293 = vand.u32 %v278, 2147483648
    %v294 = vor.u32 1.1754944e-38, %v293
    %v295 = vsel %vm292, %v294, %v290
    %v296 = vmul.f32 %v273, %v295
    %v297 = vrcp.pop %v281
    %v298 = vmul.f32 %v281, %v297
    %v299 = vsub.f32 1.0, %v298
    %v300 = vmul.f32 %v297, %v299
    %v301 = vadd.f32 %v297, %v300
    %vm302 = vweird.f32 %v281
    %vm303 = vweird.f32 %v297
    %vm304 = vmor %vm302, %vm303
    %v305 = vsel %vm304, %v297, %v301
    %v306 = vand.u32 2147483647, %v281
    %vm307 = vcmp.eq.f32.partialorder %v306, 8.507059e+37
    %v308 = vand.u32 %v281, 2147483648
    %v309 = vor.u32 1.1754944e-38, %v308
    %v310 = vsel %vm307, %v309, %v305
    %v311 = vmul.f32 %v275, %v310
    %v312 = vlaneseq
    %v313 = vshrl.u32 %v312, 7
    %v314 = vadd.s32 %v313, 8
    %v315 = vlaneseq
    %v316 = vand.u32 %v315, 127
    %vm317 = vcmp.eq.s32.totalorder %v313, %v316
    %vm318 = vcmp.eq.s32.totalorder %v314, %v316
    %v319 = vsel %vm317, 1, 0
    %v320 = vsel %vm318, 1, 0
    %v321 = vcvt.s32.f32 %v319
    %v322 = vcvt.s32.f32 %v320
    %323 = vst.msk [vmem:[#allocation20] sm:$0xff] %vm263, %v321
    %324 = vst.msk [vmem:[#allocation20 + $0x8] sm:$0xff] %vm263, %v322
    %s325 = scalar_lea.vmem [#allocation20], 16
    %326 = vst.msk [vmem:[%s325] sm:$0xff] %vm263, %v296
    %327 = vst.msk [vmem:[%s325 + $0x8] sm:$0xff] %vm263, %v311
    %v328 = vld [vmem:[#allocation7] sm:$0xff]
    %v329 = vld [vmem:[#allocation7 + $0x8] sm:$0xff]
    %v330 = vadd.f32 %v223, %v328
    %v331 = vadd.f32 %v224, %v329
    %v332 = vld [vmem:[#allocation8] sm:$0xff]
    %v333 = vld [vmem:[#allocation8 + $0x8] sm:$0xff]
    %v334 = vld [vmem:[#allocation8 + $0x10] sm:$0xff]
    %v335 = vld [vmem:[#allocation8 + $0x18] sm:$0xff]
    %v336 = vld [vmem:[#allocation8 + $0x20] sm:$0xff]
    %v337 = vld [vmem:[#allocation8 + $0x28] sm:$0xff]
    %v338 = vld [vmem:[#allocation8 + $0x30] sm:$0xff]
    %v339 = vld [vmem:[#allocation8 + $0x38] sm:$0xff]
    %v340 = vld [vmem:[#allocation8 + $0x40] sm:$0xff]
    %v341 = vld [vmem:[#allocation8 + $0x48] sm:$0xff]
    %v342 = vld [vmem:[#allocation8 + $0x50] sm:$0xff]
    %v343 = vld [vmem:[#allocation8 + $0x58] sm:$0xff]
    %v344 = vld [vmem:[#allocation8 + $0x60] sm:$0xff]
    %v345 = vld [vmem:[#allocation8 + $0x68] sm:$0xff]
    %v346 = vld [vmem:[#allocation8 + $0x70] sm:$0xff]
    %v347 = vld [vmem:[#allocation8 + $0x78] sm:$0xff]
    %v348 = vld [vmem:[#allocation8 + $0x80] sm:$0xff]
    %v349 = vld [vmem:[#allocation8 + $0x88] sm:$0xff]
    %v350 = vld [vmem:[#allocation8 + $0x90] sm:$0xff]
    %v351 = vld [vmem:[#allocation8 + $0x98] sm:$0xff]
    %v352 = vld [vmem:[#allocation8 + $0xa0] sm:$0xff]
    %v353 = vld [vmem:[#allocation8 + $0xa8] sm:$0xff]
    %v354 = vld [vmem:[#allocation8 + $0xb0] sm:$0xff]
    %v355 = vld [vmem:[#allocation8 + $0xb8] sm:$0xff]
    %v356 = vld [vmem:[#allocation8 + $0xc0] sm:$0xff]
    %v357 = vld [vmem:[#allocation8 + $0xc8] sm:$0xff]
    %v358 = vld [vmem:[#allocation8 + $0xd0] sm:$0xff]
    %v359 = vld [vmem:[#allocation8 + $0xd8] sm:$0xff]
    %v360 = vld [vmem:[#allocation8 + $0xe0] sm:$0xff]
    %v361 = vld [vmem:[#allocation8 + $0xe8] sm:$0xff]
    %v362 = vld [vmem:[#allocation8 + $0xf0] sm:$0xff]
    %v363 = vld [vmem:[#allocation8 + $0xf8] sm:$0xff]
    %v364 = vld [vmem:[#allocation8 + $0x100] sm:$0xff]
    %v365 = vld [vmem:[#allocation8 + $0x108] sm:$0xff]
    %v366 = vld [vmem:[#allocation8 + $0x110] sm:$0xff]
    %v367 = vld [vmem:[#allocation8 + $0x118] sm:$0xff]
    %v368 = vld [vmem:[#allocation8 + $0x120] sm:$0x3]
    %v369 = vld [vmem:[#allocation8 + $0x128] sm:$0x3]
    %v370 = vld [vmem:[#allocation8 + $0x130] sm:$0x3]
    %v371 = vld [vmem:[#allocation8 + $0x138] sm:$0x3]
    %v372 = vld [vmem:[#allocation8 + $0x140] sm:$0x3]
    %v373 = vld [vmem:[#allocation8 + $0x148] sm:$0x3]
    %v374 = vld [vmem:[#allocation8 + $0x150] sm:$0x3]
    %v375 = vld [vmem:[#allocation8 + $0x158] sm:$0x3]
    %v376 = vld [vmem:[#allocation8 + $0x160] sm:$0x3]
    %v377 = vld [vmem:[#allocation8 + $0x168] sm:$0x3]
    %v378 = vld [vmem:[#allocation8 + $0x170] sm:$0x3]
    %v379 = vld [vmem:[#allocation8 + $0x178] sm:$0x3]
    %v380 = vld [vmem:[#allocation8 + $0x180] sm:$0x3]
    %v381 = vld [vmem:[#allocation8 + $0x188] sm:$0x3]
    %v382 = vld [vmem:[#allocation8 + $0x190] sm:$0x3]
    %v383 = vld [vmem:[#allocation8 + $0x198] sm:$0x3]
    %v384 = vld [vmem:[#allocation8 + $0x1a0] sm:$0x3]
    %v385 = vld [vmem:[#allocation8 + $0x1a8] sm:$0x3]
    %v386 = vld [vmem:[#allocation8 + $0x1b0] sm:$0x3]
    %v387 = vld [vmem:[#allocation8 + $0x1b8] sm:$0x3]
    %v388 = vld [vmem:[#allocation8 + $0x1c0] sm:$0x3]
    %v389 = vld [vmem:[#allocation8 + $0x1c8] sm:$0x3]
    %v390 = vld [vmem:[#allocation8 + $0x1d0] sm:$0x3]
    %v391 = vld [vmem:[#allocation8 + $0x1d8] sm:$0x3]
    %v392 = vld [vmem:[#allocation8 + $0x1e0] sm:$0x3]
    %v393 = vld [vmem:[#allocation8 + $0x1e8] sm:$0x3]
    %v394 = vld [vmem:[#allocation8 + $0x1f0] sm:$0x3]
    %v395 = vld [vmem:[#allocation8 + $0x1f8] sm:$0x3]
    %v396 = vld [vmem:[#allocation8 + $0x200] sm:$0x3]
    %v397 = vld [vmem:[#allocation8 + $0x208] sm:$0x3]
    %v398 = vld [vmem:[#allocation8 + $0x210] sm:$0x3]
    %v399 = vld [vmem:[#allocation8 + $0x218] sm:$0x3]
    %v400 = vld [vmem:[#allocation8 + $0x220] sm:$0x3]
    %v401 = vld [vmem:[#allocation8 + $0x228] sm:$0x3]
    %v402 = vld [vmem:[#allocation8 + $0x230] sm:$0x3]
    %v403 = vld [vmem:[#allocation8 + $0x238] sm:$0x3]
    %v405 = vsel %vm227, %v330, 0
    %v408 = vsel %vm227, %v331, 0
    %v411 = vsel %vm234, %v368, 0
    %v414 = vsel %vm234, %v369, 0
    %v417 = vsel %vm234, %v370, 0
    %v420 = vsel %vm234, %v371, 0
    %v423 = vsel %vm234, %v372, 0
    %v426 = vsel %vm234, %v373, 0
    %v429 = vsel %vm234, %v374, 0
    %v432 = vsel %vm234, %v375, 0
    %v435 = vsel %vm234, %v376, 0
    %v438 = vsel %vm234, %v377, 0
    %v441 = vsel %vm234, %v378, 0
    %v444 = vsel %vm234, %v379, 0
    %v447 = vsel %vm234, %v380, 0
    %v450 = vsel %vm234, %v381, 0
    %v453 = vsel %vm234, %v382, 0
    %v456 = vsel %vm234, %v383, 0
    %v459 = vsel %vm234, %v384, 0
    %v462 = vsel %vm234, %v385, 0
    %v465 = vsel %vm234, %v386, 0
    %v468 = vsel %vm234, %v387, 0
    %v471 = vsel %vm234, %v388, 0
    %v474 = vsel %vm234, %v389, 0
    %v477 = vsel %vm234, %v390, 0
    %v480 = vsel %vm234, %v391, 0
    %v483 = vsel %vm234, %v392, 0
    %v486 = vsel %vm234, %v393, 0
    %v489 = vsel %vm234, %v394, 0
    %v492 = vsel %vm234, %v395, 0
    %v495 = vsel %vm234, %v396, 0
    %v498 = vsel %vm234, %v397, 0
    %v501 = vsel %vm234, %v398, 0
    %v504 = vsel %vm234, %v399, 0
    %v507 = vsel %vm234, %v400, 0
    %v510 = vsel %vm234, %v401, 0
    %v513 = vsel %vm234, %v402, 0
    %v516 = vsel %vm234, %v403, 0
    %518 = vmatpush.msra.mxu0 0.0
    %519 = vmatpush.msra.mxu0 0.0
    %520 = vmatpush.msra.mxu0 0.0
    %521 = vmatpush.msra.mxu0 0.0
    %522 = vmatpush.msra.mxu0 0.0
    %523 = vmatpush.msra.mxu0 0.0
    %524 = vmatpush.msra.mxu0 0.0
    %525 = vmatpush.msra.mxu0 0.0
    %526 = vmatpush.msra.mxu0 0.0
    %527 = vmatpush.msra.mxu0 0.0
    %528 = vmatpush.msra.mxu0 0.0
    %529 = vmatpush.msra.mxu0 0.0
    %530 = vmatpush.msra.mxu0 0.0
    %531 = vmatpush.msra.mxu0 0.0
    %532 = vmatpush.msra.mxu0 %v411
    %533 = vmatpush.msra.mxu0 %v332
    %534 = vmatmul.f32.gmra.mxu0 %v405
    %v535 = vpop.f32.mrf.mxu0
    %v536 = vadd.f32 0.0, %v535
    %537 = vmatmul.f32.gmra.mxu0 %v408
    %v538 = vpop.f32.mrf.mxu0
    %v539 = vadd.f32 0.0, %v538
    %540 = vdwg.mxu0
    %541 = vmatpush.msra.mxu0 0.0
    %542 = vmatpush.msra.mxu0 0.0
    %543 = vmatpush.msra.mxu0 0.0
    %544 = vmatpush.msra.mxu0 0.0
    %545 = vmatpush.msra.mxu0 0.0
    %546 = vmatpush.msra.mxu0 0.0
    %547 = vmatpush.msra.mxu0 0.0
    %548 = vmatpush.msra.mxu0 0.0
    %549 = vmatpush.msra.mxu0 0.0
    %550 = vmatpush.msra.mxu0 0.0
    %551 = vmatpush.msra.mxu0 0.0
    %552 = vmatpush.msra.mxu0 0.0
    %553 = vmatpush.msra.mxu0 0.0
    %554 = vmatpush.msra.mxu0 0.0
    %555 = vmatpush.msra.mxu0 %v414
    %556 = vmatpush.msra.mxu0 %v333
    %557 = vmatmul.f32.gmra.mxu0 %v405
    %v558 = vpop.f32.mrf.mxu0
    %v559 = vadd.f32 0.0, %v558
    %560 = vmatmul.f32.gmra.mxu0 %v408
    %v561 = vpop.f32.mrf.mxu0
    %v562 = vadd.f32 0.0, %v561
    %563 = vdwg.mxu0
    %564 = vmatpush.msra.mxu0 0.0
    %565 = vmatpush.msra.mxu0 0.0
    %566 = vmatpush.msra.mxu0 0.0
    %567 = vmatpush.msra.mxu0 0.0
    %568 = vmatpush.msra.mxu0 0.0
    %569 = vmatpush.msra.mxu0 0.0
    %570 = vmatpush.msra.mxu0 0.0
    %571 = vmatpush.msra.mxu0 0.0
    %572 = vmatpush.msra.mxu0 0.0
    %573 = vmatpush.msra.mxu0 0.0
    %574 = vmatpush.msra.mxu0 0.0
    %575 = vmatpush.msra.mxu0 0.0
    %576 = vmatpush.msra.mxu0 0.0
    %577 = vmatpush.msra.mxu0 0.0
    %578 = vmatpush.msra.mxu0 %v417
    %579 = vmatpush.msra.mxu0 %v334
    %580 = vmatmul.f32.gmra.mxu0 %v405
    %v581 = vpop.f32.mrf.mxu0
    %v582 = vadd.f32 0.0, %v581
    %583 = vmatmul.f32.gmra.mxu0 %v408
    %v584 = vpop.f32.mrf.mxu0
    %v585 = vadd.f32 0.0, %v584
    %586 = vdwg.mxu0
    %587 = vmatpush.msra.mxu0 0.0
    %588 = vmatpush.msra.mxu0 0.0
    %589 = vmatpush.msra.mxu0 0.0
    %590 = vmatpush.msra.mxu0 0.0
    %591 = vmatpush.msra.mxu0 0.0
    %592 = vmatpush.msra.mxu0 0.0
    %593 = vmatpush.msra.mxu0 0.0
    %594 = vmatpush.msra.mxu0 0.0
    %595 = vmatpush.msra.mxu0 0.0
    %596 = vmatpush.msra.mxu0 0.0
    %597 = vmatpush.msra.mxu0 0.0
    %598 = vmatpush.msra.mxu0 0.0
    %599 = vmatpush.msra.mxu0 0.0
    %600 = vmatpush.msra.mxu0 0.0
    %601 = vmatpush.msra.mxu0 %v420
    %602 = vmatpush.msra.mxu0 %v335
    %603 = vmatmul.f32.gmra.mxu0 %v405
    %v604 = vpop.f32.mrf.mxu0
    %v605 = vadd.f32 0.0, %v604
    %606 = vmatmul.f32.gmra.mxu0 %v408
    %v607 = vpop.f32.mrf.mxu0
    %v608 = vadd.f32 0.0, %v607
    %609 = vdwg.mxu0
    %610 = vmatpush.msra.mxu0 0.0
    %611 = vmatpush.msra.mxu0 0.0
    %612 = vmatpush.msra.mxu0 0.0
    %613 = vmatpush.msra.mxu0 0.0
    %614 = vmatpush.msra.mxu0 0.0
    %615 = vmatpush.msra.mxu0 0.0
    %616 = vmatpush.msra.mxu0 0.0
    %617 = vmatpush.msra.mxu0 0.0
    %618 = vmatpush.msra.mxu0 0.0
    %619 = vmatpush.msra.mxu0 0.0
    %620 = vmatpush.msra.mxu0 0.0
    %621 = vmatpush.msra.mxu0 0.0
    %622 = vmatpush.msra.mxu0 0.0
    %623 = vmatpush.msra.mxu0 0.0
    %624 = vmatpush.msra.mxu0 %v423
    %625 = vmatpush.msra.mxu0 %v336
    %626 = vmatmul.f32.gmra.mxu0 %v405
    %v627 = vpop.f32.mrf.mxu0
    %v628 = vadd.f32 0.0, %v627
    %629 = vmatmul.f32.gmra.mxu0 %v408
    %v630 = vpop.f32.mrf.mxu0
    %v631 = vadd.f32 0.0, %v630
    %632 = vdwg.mxu0
    %633 = vmatpush.msra.mxu0 0.0
    %634 = vmatpush.msra.mxu0 0.0
    %635 = vmatpush.msra.mxu0 0.0
    %636 = vmatpush.msra.mxu0 0.0
    %637 = vmatpush.msra.mxu0 0.0
    %638 = vmatpush.msra.mxu0 0.0
    %639 = vmatpush.msra.mxu0 0.0
    %640 = vmatpush.msra.mxu0 0.0
    %641 = vmatpush.msra.mxu0 0.0
    %642 = vmatpush.msra.mxu0 0.0
    %643 = vmatpush.msra.mxu0 0.0
    %644 = vmatpush.msra.mxu0 0.0
    %645 = vmatpush.msra.mxu0 0.0
    %646 = vmatpush.msra.mxu0 0.0
    %647 = vmatpush.msra.mxu0 %v426
    %648 = vmatpush.msra.mxu0 %v337
    %649 = vmatmul.f32.gmra.mxu0 %v405
    %v650 = vpop.f32.mrf.mxu0
    %v651 = vadd.f32 0.0, %v650
    %652 = vmatmul.f32.gmra.mxu0 %v408
    %v653 = vpop.f32.mrf.mxu0
    %v654 = vadd.f32 0.0, %v653
    %655 = vdwg.mxu0
    %656 = vmatpush.msra.mxu0 0.0
    %657 = vmatpush.msra.mxu0 0.0
    %658 = vmatpush.msra.mxu0 0.0
    %659 = vmatpush.msra.mxu0 0.0
    %660 = vmatpush.msra.mxu0 0.0
    %661 = vmatpush.msra.mxu0 0.0
    %662 = vmatpush.msra.mxu0 0.0
    %663 = vmatpush.msra.mxu0 0.0
    %664 = vmatpush.msra.mxu0 0.0
    %665 = vmatpush.msra.mxu0 0.0
    %666 = vmatpush.msra.mxu0 0.0
    %667 = vmatpush.msra.mxu0 0.0
    %668 = vmatpush.msra.mxu0 0.0
    %669 = vmatpush.msra.mxu0 0.0
    %670 = vmatpush.msra.mxu0 %v429
    %671 = vmatpush.msra.mxu0 %v338
    %672 = vmatmul.f32.gmra.mxu0 %v405
    %v673 = vpop.f32.mrf.mxu0
    %v674 = vadd.f32 0.0, %v673
    %675 = vmatmul.f32.gmra.mxu0 %v408
    %v676 = vpop.f32.mrf.mxu0
    %v677 = vadd.f32 0.0, %v676
    %678 = vdwg.mxu0
    %679 = vmatpush.msra.mxu0 0.0
    %680 = vmatpush.msra.mxu0 0.0
    %681 = vmatpush.msra.mxu0 0.0
    %682 = vmatpush.msra.mxu0 0.0
    %683 = vmatpush.msra.mxu0 0.0
    %684 = vmatpush.msra.mxu0 0.0
    %685 = vmatpush.msra.mxu0 0.0
    %686 = vmatpush.msra.mxu0 0.0
    %687 = vmatpush.msra.mxu0 0.0
    %688 = vmatpush.msra.mxu0 0.0
    %689 = vmatpush.msra.mxu0 0.0
    %690 = vmatpush.msra.mxu0 0.0
    %691 = vmatpush.msra.mxu0 0.0
    %692 = vmatpush.msra.mxu0 0.0
    %693 = vmatpush.msra.mxu0 %v432
    %694 = vmatpush.msra.mxu0 %v339
    %695 = vmatmul.f32.gmra.mxu0 %v405
    %v696 = vpop.f32.mrf.mxu0
    %v697 = vadd.f32 0.0, %v696
    %698 = vmatmul.f32.gmra.mxu0 %v408
    %v699 = vpop.f32.mrf.mxu0
    %v700 = vadd.f32 0.0, %v699
    %701 = vdwg.mxu0
    %702 = vmatpush.msra.mxu0 0.0
    %703 = vmatpush.msra.mxu0 0.0
    %704 = vmatpush.msra.mxu0 0.0
    %705 = vmatpush.msra.mxu0 0.0
    %706 = vmatpush.msra.mxu0 0.0
    %707 = vmatpush.msra.mxu0 0.0
    %708 = vmatpush.msra.mxu0 0.0
    %709 = vmatpush.msra.mxu0 0.0
    %710 = vmatpush.msra.mxu0 0.0
    %711 = vmatpush.msra.mxu0 0.0
    %712 = vmatpush.msra.mxu0 0.0
    %713 = vmatpush.msra.mxu0 0.0
    %714 = vmatpush.msra.mxu0 0.0
    %715 = vmatpush.msra.mxu0 0.0
    %716 = vmatpush.msra.mxu0 %v435
    %717 = vmatpush.msra.mxu0 %v340
    %718 = vmatmul.f32.gmra.mxu0 %v405
    %v719 = vpop.f32.mrf.mxu0
    %v720 = vadd.f32 0.0, %v719
    %721 = vmatmul.f32.gmra.mxu0 %v408
    %v722 = vpop.f32.mrf.mxu0
    %v723 = vadd.f32 0.0, %v722
    %724 = vdwg.mxu0
    %725 = vmatpush.msra.mxu0 0.0
    %726 = vmatpush.msra.mxu0 0.0
    %727 = vmatpush.msra.mxu0 0.0
    %728 = vmatpush.msra.mxu0 0.0
    %729 = vmatpush.msra.mxu0 0.0
    %730 = vmatpush.msra.mxu0 0.0
    %731 = vmatpush.msra.mxu0 0.0
    %732 = vmatpush.msra.mxu0 0.0
    %733 = vmatpush.msra.mxu0 0.0
    %734 = vmatpush.msra.mxu0 0.0
    %735 = vmatpush.msra.mxu0 0.0
    %736 = vmatpush.msra.mxu0 0.0
    %737 = vmatpush.msra.mxu0 0.0
    %738 = vmatpush.msra.mxu0 0.0
    %739 = vmatpush.msra.mxu0 %v438
    %740 = vmatpush.msra.mxu0 %v341
    %741 = vmatmul.f32.gmra.mxu0 %v405
    %v742 = vpop.f32.mrf.mxu0
    %v743 = vadd.f32 0.0, %v742
    %744 = vmatmul.f32.gmra.mxu0 %v408
    %v745 = vpop.f32.mrf.mxu0
    %v746 = vadd.f32 0.0, %v745
    %747 = vdwg.mxu0
    %748 = vmatpush.msra.mxu0 0.0
    %749 = vmatpush.msra.mxu0 0.0
    %750 = vmatpush.msra.mxu0 0.0
    %751 = vmatpush.msra.mxu0 0.0
    %752 = vmatpush.msra.mxu0 0.0
    %753 = vmatpush.msra.mxu0 0.0
    %754 = vmatpush.msra.mxu0 0.0
    %755 = vmatpush.msra.mxu0 0.0
    %756 = vmatpush.msra.mxu0 0.0
    %757 = vmatpush.msra.mxu0 0.0
    %758 = vmatpush.msra.mxu0 0.0
    %759 = vmatpush.msra.mxu0 0.0
    %760 = vmatpush.msra.mxu0 0.0
    %761 = vmatpush.msra.mxu0 0.0
    %762 = vmatpush.msra.mxu0 %v441
    %763 = vmatpush.msra.mxu0 %v342
    %764 = vmatmul.f32.gmra.mxu0 %v405
    %v765 = vpop.f32.mrf.mxu0
    %v766 = vadd.f32 0.0, %v765
    %767 = vmatmul.f32.gmra.mxu0 %v408
    %v768 = vpop.f32.mrf.mxu0
    %v769 = vadd.f32 0.0, %v768
    %770 = vdwg.mxu0
    %771 = vmatpush.msra.mxu0 0.0
    %772 = vmatpush.msra.mxu0 0.0
    %773 = vmatpush.msra.mxu0 0.0
    %774 = vmatpush.msra.mxu0 0.0
    %775 = vmatpush.msra.mxu0 0.0
    %776 = vmatpush.msra.mxu0 0.0
    %777 = vmatpush.msra.mxu0 0.0
    %778 = vmatpush.msra.mxu0 0.0
    %779 = vmatpush.msra.mxu0 0.0
    %780 = vmatpush.msra.mxu0 0.0
    %781 = vmatpush.msra.mxu0 0.0
    %782 = vmatpush.msra.mxu0 0.0
    %783 = vmatpush.msra.mxu0 0.0
    %784 = vmatpush.msra.mxu0 0.0
    %785 = vmatpush.msra.mxu0 %v444
    %786 = vmatpush.msra.mxu0 %v343
    %787 = vmatmul.f32.gmra.mxu0 %v405
    %v788 = vpop.f32.mrf.mxu0
    %v789 = vadd.f32 0.0, %v788
    %790 = vmatmul.f32.gmra.mxu0 %v408
    %v791 = vpop.f32.mrf.mxu0
    %v792 = vadd.f32 0.0, %v791
    %793 = vdwg.mxu0
    %794 = vmatpush.msra.mxu0 0.0
    %795 = vmatpush.msra.mxu0 0.0
    %796 = vmatpush.msra.mxu0 0.0
    %797 = vmatpush.msra.mxu0 0.0
    %798 = vmatpush.msra.mxu0 0.0
    %799 = vmatpush.msra.mxu0 0.0
    %800 = vmatpush.msra.mxu0 0.0
    %801 = vmatpush.msra.mxu0 0.0
    %802 = vmatpush.msra.mxu0 0.0
    %803 = vmatpush.msra.mxu0 0.0
    %804 = vmatpush.msra.mxu0 0.0
    %805 = vmatpush.msra.mxu0 0.0
    %806 = vmatpush.msra.mxu0 0.0
    %807 = vmatpush.msra.mxu0 0.0
    %808 = vmatpush.msra.mxu0 %v447
    %809 = vmatpush.msra.mxu0 %v344
    %810 = vmatmul.f32.gmra.mxu0 %v405
    %v811 = vpop.f32.mrf.mxu0
    %v812 = vadd.f32 0.0, %v811
    %813 = vmatmul.f32.gmra.mxu0 %v408
    %v814 = vpop.f32.mrf.mxu0
    %v815 = vadd.f32 0.0, %v814
    %816 = vdwg.mxu0
    %817 = vmatpush.msra.mxu0 0.0
    %818 = vmatpush.msra.mxu0 0.0
    %819 = vmatpush.msra.mxu0 0.0
    %820 = vmatpush.msra.mxu0 0.0
    %821 = vmatpush.msra.mxu0 0.0
    %822 = vmatpush.msra.mxu0 0.0
    %823 = vmatpush.msra.mxu0 0.0
    %824 = vmatpush.msra.mxu0 0.0
    %825 = vmatpush.msra.mxu0 0.0
    %826 = vmatpush.msra.mxu0 0.0
    %827 = vmatpush.msra.mxu0 0.0
    %828 = vmatpush.msra.mxu0 0.0
    %829 = vmatpush.msra.mxu0 0.0
    %830 = vmatpush.msra.mxu0 0.0
    %831 = vmatpush.msra.mxu0 %v450
    %832 = vmatpush.msra.mxu0 %v345
    %833 = vmatmul.f32.gmra.mxu0 %v405
    %v834 = vpop.f32.mrf.mxu0
    %v835 = vadd.f32 0.0, %v834
    %836 = vmatmul.f32.gmra.mxu0 %v408
    %v837 = vpop.f32.mrf.mxu0
    %v838 = vadd.f32 0.0, %v837
    %839 = vdwg.mxu0
    %840 = vmatpush.msra.mxu0 0.0
    %841 = vmatpush.msra.mxu0 0.0
    %842 = vmatpush.msra.mxu0 0.0
    %843 = vmatpush.msra.mxu0 0.0
    %844 = vmatpush.msra.mxu0 0.0
    %845 = vmatpush.msra.mxu0 0.0
    %846 = vmatpush.msra.mxu0 0.0
    %847 = vmatpush.msra.mxu0 0.0
    %848 = vmatpush.msra.mxu0 0.0
    %849 = vmatpush.msra.mxu0 0.0
    %850 = vmatpush.msra.mxu0 0.0
    %851 = vmatpush.msra.mxu0 0.0
    %852 = vmatpush.msra.mxu0 0.0
    %853 = vmatpush.msra.mxu0 0.0
    %854 = vmatpush.msra.mxu0 %v453
    %855 = vmatpush.msra.mxu0 %v346
    %856 = vmatmul.f32.gmra.mxu0 %v405
    %v857 = vpop.f32.mrf.mxu0
    %v858 = vadd.f32 0.0, %v857
    %859 = vmatmul.f32.gmra.mxu0 %v408
    %v860 = vpop.f32.mrf.mxu0
    %v861 = vadd.f32 0.0, %v860
    %862 = vdwg.mxu0
    %863 = vmatpush.msra.mxu0 0.0
    %864 = vmatpush.msra.mxu0 0.0
    %865 = vmatpush.msra.mxu0 0.0
    %866 = vmatpush.msra.mxu0 0.0
    %867 = vmatpush.msra.mxu0 0.0
    %868 = vmatpush.msra.mxu0 0.0
    %869 = vmatpush.msra.mxu0 0.0
    %870 = vmatpush.msra.mxu0 0.0
    %871 = vmatpush.msra.mxu0 0.0
    %872 = vmatpush.msra.mxu0 0.0
    %873 = vmatpush.msra.mxu0 0.0
    %874 = vmatpush.msra.mxu0 0.0
    %875 = vmatpush.msra.mxu0 0.0
    %876 = vmatpush.msra.mxu0 0.0
    %877 = vmatpush.msra.mxu0 %v456
    %878 = vmatpush.msra.mxu0 %v347
    %879 = vmatmul.f32.gmra.mxu0 %v405
    %v880 = vpop.f32.mrf.mxu0
    %v881 = vadd.f32 0.0, %v880
    %882 = vmatmul.f32.gmra.mxu0 %v408
    %v883 = vpop.f32.mrf.mxu0
    %v884 = vadd.f32 0.0, %v883
    %885 = vdwg.mxu0
    %886 = vmatpush.msra.mxu0 0.0
    %887 = vmatpush.msra.mxu0 0.0
    %888 = vmatpush.msra.mxu0 0.0
    %889 = vmatpush.msra.mxu0 0.0
    %890 = vmatpush.msra.mxu0 0.0
    %891 = vmatpush.msra.mxu0 0.0
    %892 = vmatpush.msra.mxu0 0.0
    %893 = vmatpush.msra.mxu0 0.0
    %894 = vmatpush.msra.mxu0 0.0
    %895 = vmatpush.msra.mxu0 0.0
    %896 = vmatpush.msra.mxu0 0.0
    %897 = vmatpush.msra.mxu0 0.0
    %898 = vmatpush.msra.mxu0 0.0
    %899 = vmatpush.msra.mxu0 0.0
    %900 = vmatpush.msra.mxu0 %v459
    %901 = vmatpush.msra.mxu0 %v348
    %902 = vmatmul.f32.gmra.mxu0 %v405
    %v903 = vpop.f32.mrf.mxu0
    %v904 = vadd.f32 0.0, %v903
    %905 = vmatmul.f32.gmra.mxu0 %v408
    %v906 = vpop.f32.mrf.mxu0
    %v907 = vadd.f32 0.0, %v906
    %908 = vdwg.mxu0
    %909 = vmatpush.msra.mxu0 0.0
    %910 = vmatpush.msra.mxu0 0.0
    %911 = vmatpush.msra.mxu0 0.0
    %912 = vmatpush.msra.mxu0 0.0
    %913 = vmatpush.msra.mxu0 0.0
    %914 = vmatpush.msra.mxu0 0.0
    %915 = vmatpush.msra.mxu0 0.0
    %916 = vmatpush.msra.mxu0 0.0
    %917 = vmatpush.msra.mxu0 0.0
    %918 = vmatpush.msra.mxu0 0.0
    %919 = vmatpush.msra.mxu0 0.0
    %920 = vmatpush.msra.mxu0 0.0
    %921 = vmatpush.msra.mxu0 0.0
    %922 = vmatpush.msra.mxu0 0.0
    %923 = vmatpush.msra.mxu0 %v462
    %924 = vmatpush.msra.mxu0 %v349
    %925 = vmatmul.f32.gmra.mxu0 %v405
    %v926 = vpop.f32.mrf.mxu0
    %v927 = vadd.f32 0.0, %v926
    %928 = vmatmul.f32.gmra.mxu0 %v408
    %v929 = vpop.f32.mrf.mxu0
    %v930 = vadd.f32 0.0, %v929
    %931 = vdwg.mxu0
    %932 = vmatpush.msra.mxu0 0.0
    %933 = vmatpush.msra.mxu0 0.0
    %934 = vmatpush.msra.mxu0 0.0
    %935 = vmatpush.msra.mxu0 0.0
    %936 = vmatpush.msra.mxu0 0.0
    %937 = vmatpush.msra.mxu0 0.0
    %938 = vmatpush.msra.mxu0 0.0
    %939 = vmatpush.msra.mxu0 0.0
    %940 = vmatpush.msra.mxu0 0.0
    %941 = vmatpush.msra.mxu0 0.0
    %942 = vmatpush.msra.mxu0 0.0
    %943 = vmatpush.msra.mxu0 0.0
    %944 = vmatpush.msra.mxu0 0.0
    %945 = vmatpush.msra.mxu0 0.0
    %946 = vmatpush.msra.mxu0 %v465
    %947 = vmatpush.msra.mxu0 %v350
    %948 = vmatmul.f32.gmra.mxu0 %v405
    %v949 = vpop.f32.mrf.mxu0
    %v950 = vadd.f32 0.0, %v949
    %951 = vmatmul.f32.gmra.mxu0 %v408
    %v952 = vpop.f32.mrf.mxu0
    %v953 = vadd.f32 0.0, %v952
    %954 = vdwg.mxu0
    %955 = vmatpush.msra.mxu0 0.0
    %956 = vmatpush.msra.mxu0 0.0
    %957 = vmatpush.msra.mxu0 0.0
    %958 = vmatpush.msra.mxu0 0.0
    %959 = vmatpush.msra.mxu0 0.0
    %960 = vmatpush.msra.mxu0 0.0
    %961 = vmatpush.msra.mxu0 0.0
    %962 = vmatpush.msra.mxu0 0.0
    %963 = vmatpush.msra.mxu0 0.0
    %964 = vmatpush.msra.mxu0 0.0
    %965 = vmatpush.msra.mxu0 0.0
    %966 = vmatpush.msra.mxu0 0.0
    %967 = vmatpush.msra.mxu0 0.0
    %968 = vmatpush.msra.mxu0 0.0
    %969 = vmatpush.msra.mxu0 %v468
    %970 = vmatpush.msra.mxu0 %v351
    %971 = vmatmul.f32.gmra.mxu0 %v405
    %v972 = vpop.f32.mrf.mxu0
    %v973 = vadd.f32 0.0, %v972
    %974 = vmatmul.f32.gmra.mxu0 %v408
    %v975 = vpop.f32.mrf.mxu0
    %v976 = vadd.f32 0.0, %v975
    %977 = vdwg.mxu0
    %978 = vmatpush.msra.mxu0 0.0
    %979 = vmatpush.msra.mxu0 0.0
    %980 = vmatpush.msra.mxu0 0.0
    %981 = vmatpush.msra.mxu0 0.0
    %982 = vmatpush.msra.mxu0 0.0
    %983 = vmatpush.msra.mxu0 0.0
    %984 = vmatpush.msra.mxu0 0.0
    %985 = vmatpush.msra.mxu0 0.0
    %986 = vmatpush.msra.mxu0 0.0
    %987 = vmatpush.msra.mxu0 0.0
    %988 = vmatpush.msra.mxu0 0.0
    %989 = vmatpush.msra.mxu0 0.0
    %990 = vmatpush.msra.mxu0 0.0
    %991 = vmatpush.msra.mxu0 0.0
    %992 = vmatpush.msra.mxu0 %v471
    %993 = vmatpush.msra.mxu0 %v352
    %994 = vmatmul.f32.gmra.mxu0 %v405
    %v995 = vpop.f32.mrf.mxu0
    %v996 = vadd.f32 0.0, %v995
    %997 = vmatmul.f32.gmra.mxu0 %v408
    %v998 = vpop.f32.mrf.mxu0
    %v999 = vadd.f32 0.0, %v998
    %1000 = vdwg.mxu0
    %1001 = vmatpush.msra.mxu0 0.0
    %1002 = vmatpush.msra.mxu0 0.0
    %1003 = vmatpush.msra.mxu0 0.0
    %1004 = vmatpush.msra.mxu0 0.0
    %1005 = vmatpush.msra.mxu0 0.0
    %1006 = vmatpush.msra.mxu0 0.0
    %1007 = vmatpush.msra.mxu0 0.0
    %1008 = vmatpush.msra.mxu0 0.0
    %1009 = vmatpush.msra.mxu0 0.0
    %1010 = vmatpush.msra.mxu0 0.0
    %1011 = vmatpush.msra.mxu0 0.0
    %1012 = vmatpush.msra.mxu0 0.0
    %1013 = vmatpush.msra.mxu0 0.0
    %1014 = vmatpush.msra.mxu0 0.0
    %1015 = vmatpush.msra.mxu0 %v474
    %1016 = vmatpush.msra.mxu0 %v353
    %1017 = vmatmul.f32.gmra.mxu0 %v405
    %v1018 = vpop.f32.mrf.mxu0
    %v1019 = vadd.f32 0.0, %v1018
    %1020 = vmatmul.f32.gmra.mxu0 %v408
    %v1021 = vpop.f32.mrf.mxu0
    %v1022 = vadd.f32 0.0, %v1021
    %1023 = vdwg.mxu0
    %1024 = vmatpush.msra.mxu0 0.0
    %1025 = vmatpush.msra.mxu0 0.0
    %1026 = vmatpush.msra.mxu0 0.0
    %1027 = vmatpush.msra.mxu0 0.0
    %1028 = vmatpush.msra.mxu0 0.0
    %1029 = vmatpush.msra.mxu0 0.0
    %1030 = vmatpush.msra.mxu0 0.0
    %1031 = vmatpush.msra.mxu0 0.0
    %1032 = vmatpush.msra.mxu0 0.0
    %1033 = vmatpush.msra.mxu0 0.0
    %1034 = vmatpush.msra.mxu0 0.0
    %1035 = vmatpush.msra.mxu0 0.0
    %1036 = vmatpush.msra.mxu0 0.0
    %1037 = vmatpush.msra.mxu0 0.0
    %1038 = vmatpush.msra.mxu0 %v477
    %1039 = vmatpush.msra.mxu0 %v354
    %1040 = vmatmul.f32.gmra.mxu0 %v405
    %v1041 = vpop.f32.mrf.mxu0
    %v1042 = vadd.f32 0.0, %v1041
    %1043 = vmatmul.f32.gmra.mxu0 %v408
    %v1044 = vpop.f32.mrf.mxu0
    %v1045 = vadd.f32 0.0, %v1044
    %1046 = vdwg.mxu0
    %1047 = vmatpush.msra.mxu0 0.0
    %1048 = vmatpush.msra.mxu0 0.0
    %1049 = vmatpush.msra.mxu0 0.0
    %1050 = vmatpush.msra.mxu0 0.0
    %1051 = vmatpush.msra.mxu0 0.0
    %1052 = vmatpush.msra.mxu0 0.0
    %1053 = vmatpush.msra.mxu0 0.0
    %1054 = vmatpush.msra.mxu0 0.0
    %1055 = vmatpush.msra.mxu0 0.0
    %1056 = vmatpush.msra.mxu0 0.0
    %1057 = vmatpush.msra.mxu0 0.0
    %1058 = vmatpush.msra.mxu0 0.0
    %1059 = vmatpush.msra.mxu0 0.0
    %1060 = vmatpush.msra.mxu0 0.0
    %1061 = vmatpush.msra.mxu0 %v480
    %1062 = vmatpush.msra.mxu0 %v355
    %1063 = vmatmul.f32.gmra.mxu0 %v405
    %v1064 = vpop.f32.mrf.mxu0
    %v1065 = vadd.f32 0.0, %v1064
    %1066 = vmatmul.f32.gmra.mxu0 %v408
    %v1067 = vpop.f32.mrf.mxu0
    %v1068 = vadd.f32 0.0, %v1067
    %1069 = vdwg.mxu0
    %1070 = vmatpush.msra.mxu0 0.0
    %1071 = vmatpush.msra.mxu0 0.0
    %1072 = vmatpush.msra.mxu0 0.0
    %1073 = vmatpush.msra.mxu0 0.0
    %1074 = vmatpush.msra.mxu0 0.0
    %1075 = vmatpush.msra.mxu0 0.0
    %1076 = vmatpush.msra.mxu0 0.0
    %1077 = vmatpush.msra.mxu0 0.0
    %1078 = vmatpush.msra.mxu0 0.0
    %1079 = vmatpush.msra.mxu0 0.0
    %1080 = vmatpush.msra.mxu0 0.0
    %1081 = vmatpush.msra.mxu0 0.0
    %1082 = vmatpush.msra.mxu0 0.0
    %1083 = vmatpush.msra.mxu0 0.0
    %1084 = vmatpush.msra.mxu0 %v483
    %1085 = vmatpush.msra.mxu0 %v356
    %1086 = vmatmul.f32.gmra.mxu0 %v405
    %v1087 = vpop.f32.mrf.mxu0
    %v1088 = vadd.f32 0.0, %v1087
    %1089 = vmatmul.f32.gmra.mxu0 %v408
    %v1090 = vpop.f32.mrf.mxu0
    %v1091 = vadd.f32 0.0, %v1090
    %1092 = vdwg.mxu0
    %1093 = vmatpush.msra.mxu0 0.0
    %1094 = vmatpush.msra.mxu0 0.0
    %1095 = vmatpush.msra.mxu0 0.0
    %1096 = vmatpush.msra.mxu0 0.0
    %1097 = vmatpush.msra.mxu0 0.0
    %1098 = vmatpush.msra.mxu0 0.0
    %1099 = vmatpush.msra.mxu0 0.0
    %1100 = vmatpush.msra.mxu0 0.0
    %1101 = vmatpush.msra.mxu0 0.0
    %1102 = vmatpush.msra.mxu0 0.0
    %1103 = vmatpush.msra.mxu0 0.0
    %1104 = vmatpush.msra.mxu0 0.0
    %1105 = vmatpush.msra.mxu0 0.0
    %1106 = vmatpush.msra.mxu0 0.0
    %1107 = vmatpush.msra.mxu0 %v486
    %1108 = vmatpush.msra.mxu0 %v357
    %1109 = vmatmul.f32.gmra.mxu0 %v405
    %v1110 = vpop.f32.mrf.mxu0
    %v1111 = vadd.f32 0.0, %v1110
    %1112 = vmatmul.f32.gmra.mxu0 %v408
    %v1113 = vpop.f32.mrf.mxu0
    %v1114 = vadd.f32 0.0, %v1113
    %1115 = vdwg.mxu0
    %1116 = vmatpush.msra.mxu0 0.0
    %1117 = vmatpush.msra.mxu0 0.0
    %1118 = vmatpush.msra.mxu0 0.0
    %1119 = vmatpush.msra.mxu0 0.0
    %1120 = vmatpush.msra.mxu0 0.0
    %1121 = vmatpush.msra.mxu0 0.0
    %1122 = vmatpush.msra.mxu0 0.0
    %1123 = vmatpush.msra.mxu0 0.0
    %1124 = vmatpush.msra.mxu0 0.0
    %1125 = vmatpush.msra.mxu0 0.0
    %1126 = vmatpush.msra.mxu0 0.0
    %1127 = vmatpush.msra.mxu0 0.0
    %1128 = vmatpush.msra.mxu0 0.0
    %1129 = vmatpush.msra.mxu0 0.0
    %1130 = vmatpush.msra.mxu0 %v489
    %1131 = vmatpush.msra.mxu0 %v358
    %1132 = vmatmul.f32.gmra.mxu0 %v405
    %v1133 = vpop.f32.mrf.mxu0
    %v1134 = vadd.f32 0.0, %v1133
    %1135 = vmatmul.f32.gmra.mxu0 %v408
    %v1136 = vpop.f32.mrf.mxu0
    %v1137 = vadd.f32 0.0, %v1136
    %1138 = vdwg.mxu0
    %1139 = vmatpush.msra.mxu0 0.0
    %1140 = vmatpush.msra.mxu0 0.0
    %1141 = vmatpush.msra.mxu0 0.0
    %1142 = vmatpush.msra.mxu0 0.0
    %1143 = vmatpush.msra.mxu0 0.0
    %1144 = vmatpush.msra.mxu0 0.0
    %1145 = vmatpush.msra.mxu0 0.0
    %1146 = vmatpush.msra.mxu0 0.0
    %1147 = vmatpush.msra.mxu0 0.0
    %1148 = vmatpush.msra.mxu0 0.0
    %1149 = vmatpush.msra.mxu0 0.0
    %1150 = vmatpush.msra.mxu0 0.0
    %1151 = vmatpush.msra.mxu0 0.0
    %1152 = vmatpush.msra.mxu0 0.0
    %1153 = vmatpush.msra.mxu0 %v492
    %1154 = vmatpush.msra.mxu0 %v359
    %1155 = vmatmul.f32.gmra.mxu0 %v405
    %v1156 = vpop.f32.mrf.mxu0
    %v1157 = vadd.f32 0.0, %v1156
    %1158 = vmatmul.f32.gmra.mxu0 %v408
    %v1159 = vpop.f32.mrf.mxu0
    %v1160 = vadd.f32 0.0, %v1159
    %1161 = vdwg.mxu0
    %1162 = vmatpush.msra.mxu0 0.0
    %1163 = vmatpush.msra.mxu0 0.0
    %1164 = vmatpush.msra.mxu0 0.0
    %1165 = vmatpush.msra.mxu0 0.0
    %1166 = vmatpush.msra.mxu0 0.0
    %1167 = vmatpush.msra.mxu0 0.0
    %1168 = vmatpush.msra.mxu0 0.0
    %1169 = vmatpush.msra.mxu0 0.0
    %1170 = vmatpush.msra.mxu0 0.0
    %1171 = vmatpush.msra.mxu0 0.0
    %1172 = vmatpush.msra.mxu0 0.0
    %1173 = vmatpush.msra.mxu0 0.0
    %1174 = vmatpush.msra.mxu0 0.0
    %1175 = vmatpush.msra.mxu0 0.0
    %1176 = vmatpush.msra.mxu0 %v495
    %1177 = vmatpush.msra.mxu0 %v360
    %1178 = vmatmul.f32.gmra.mxu0 %v405
    %v1179 = vpop.f32.mrf.mxu0
    %v1180 = vadd.f32 0.0, %v1179
    %1181 = vmatmul.f32.gmra.mxu0 %v408
    %v1182 = vpop.f32.mrf.mxu0
    %v1183 = vadd.f32 0.0, %v1182
    %1184 = vdwg.mxu0
    %1185 = vmatpush.msra.mxu0 0.0
    %1186 = vmatpush.msra.mxu0 0.0
    %1187 = vmatpush.msra.mxu0 0.0
    %1188 = vmatpush.msra.mxu0 0.0
    %1189 = vmatpush.msra.mxu0 0.0
    %1190 = vmatpush.msra.mxu0 0.0
    %1191 = vmatpush.msra.mxu0 0.0
    %1192 = vmatpush.msra.mxu0 0.0
    %1193 = vmatpush.msra.mxu0 0.0
    %1194 = vmatpush.msra.mxu0 0.0
    %1195 = vmatpush.msra.mxu0 0.0
    %1196 = vmatpush.msra.mxu0 0.0
    %1197 = vmatpush.msra.mxu0 0.0
    %1198 = vmatpush.msra.mxu0 0.0
    %1199 = vmatpush.msra.mxu0 %v498
    %1200 = vmatpush.msra.mxu0 %v361
    %1201 = vmatmul.f32.gmra.mxu0 %v405
    %v1202 = vpop.f32.mrf.mxu0
    %v1203 = vadd.f32 0.0, %v1202
    %1204 = vmatmul.f32.gmra.mxu0 %v408
    %v1205 = vpop.f32.mrf.mxu0
    %v1206 = vadd.f32 0.0, %v1205
    %1207 = vdwg.mxu0
    %1208 = vmatpush.msra.mxu0 0.0
    %1209 = vmatpush.msra.mxu0 0.0
    %1210 = vmatpush.msra.mxu0 0.0
    %1211 = vmatpush.msra.mxu0 0.0
    %1212 = vmatpush.msra.mxu0 0.0
    %1213 = vmatpush.msra.mxu0 0.0
    %1214 = vmatpush.msra.mxu0 0.0
    %1215 = vmatpush.msra.mxu0 0.0
    %1216 = vmatpush.msra.mxu0 0.0
    %1217 = vmatpush.msra.mxu0 0.0
    %1218 = vmatpush.msra.mxu0 0.0
    %1219 = vmatpush.msra.mxu0 0.0
    %1220 = vmatpush.msra.mxu0 0.0
    %1221 = vmatpush.msra.mxu0 0.0
    %1222 = vmatpush.msra.mxu0 %v501
    %1223 = vmatpush.msra.mxu0 %v362
    %1224 = vmatmul.f32.gmra.mxu0 %v405
    %v1225 = vpop.f32.mrf.mxu0
    %v1226 = vadd.f32 0.0, %v1225
    %1227 = vmatmul.f32.gmra.mxu0 %v408
    %v1228 = vpop.f32.mrf.mxu0
    %v1229 = vadd.f32 0.0, %v1228
    %1230 = vdwg.mxu0
    %1231 = vmatpush.msra.mxu0 0.0
    %1232 = vmatpush.msra.mxu0 0.0
    %1233 = vmatpush.msra.mxu0 0.0
    %1234 = vmatpush.msra.mxu0 0.0
    %1235 = vmatpush.msra.mxu0 0.0
    %1236 = vmatpush.msra.mxu0 0.0
    %1237 = vmatpush.msra.mxu0 0.0
    %1238 = vmatpush.msra.mxu0 0.0
    %1239 = vmatpush.msra.mxu0 0.0
    %1240 = vmatpush.msra.mxu0 0.0
    %1241 = vmatpush.msra.mxu0 0.0
    %1242 = vmatpush.msra.mxu0 0.0
    %1243 = vmatpush.msra.mxu0 0.0
    %1244 = vmatpush.msra.mxu0 0.0
    %1245 = vmatpush.msra.mxu0 %v504
    %1246 = vmatpush.msra.mxu0 %v363
    %1247 = vmatmul.f32.gmra.mxu0 %v405
    %v1248 = vpop.f32.mrf.mxu0
    %v1249 = vadd.f32 0.0, %v1248
    %1250 = vmatmul.f32.gmra.mxu0 %v408
    %v1251 = vpop.f32.mrf.mxu0
    %v1252 = vadd.f32 0.0, %v1251
    %1253 = vdwg.mxu0
    %1254 = vmatpush.msra.mxu0 0.0
    %1255 = vmatpush.msra.mxu0 0.0
    %1256 = vmatpush.msra.mxu0 0.0
    %1257 = vmatpush.msra.mxu0 0.0
    %1258 = vmatpush.msra.mxu0 0.0
    %1259 = vmatpush.msra.mxu0 0.0
    %1260 = vmatpush.msra.mxu0 0.0
    %1261 = vmatpush.msra.mxu0 0.0
    %1262 = vmatpush.msra.mxu0 0.0
    %1263 = vmatpush.msra.mxu0 0.0
    %1264 = vmatpush.msra.mxu0 0.0
    %1265 = vmatpush.msra.mxu0 0.0
    %1266 = vmatpush.msra.mxu0 0.0
    %1267 = vmatpush.msra.mxu0 0.0
    %1268 = vmatpush.msra.mxu0 %v507
    %1269 = vmatpush.msra.mxu0 %v364
    %1270 = vmatmul.f32.gmra.mxu0 %v405
    %v1271 = vpop.f32.mrf.mxu0
    %v1272 = vadd.f32 0.0, %v1271
    %1273 = vmatmul.f32.gmra.mxu0 %v408
    %v1274 = vpop.f32.mrf.mxu0
    %v1275 = vadd.f32 0.0, %v1274
    %1276 = vdwg.mxu0
    %1277 = vmatpush.msra.mxu0 0.0
    %1278 = vmatpush.msra.mxu0 0.0
    %1279 = vmatpush.msra.mxu0 0.0
    %1280 = vmatpush.msra.mxu0 0.0
    %1281 = vmatpush.msra.mxu0 0.0
    %1282 = vmatpush.msra.mxu0 0.0
    %1283 = vmatpush.msra.mxu0 0.0
    %1284 = vmatpush.msra.mxu0 0.0
    %1285 = vmatpush.msra.mxu0 0.0
    %1286 = vmatpush.msra.mxu0 0.0
    %1287 = vmatpush.msra.mxu0 0.0
    %1288 = vmatpush.msra.mxu0 0.0
    %1289 = vmatpush.msra.mxu0 0.0
    %1290 = vmatpush.msra.mxu0 0.0
    %1291 = vmatpush.msra.mxu0 %v510
    %1292 = vmatpush.msra.mxu0 %v365
    %1293 = vmatmul.f32.gmra.mxu0 %v405
    %v1294 = vpop.f32.mrf.mxu0
    %v1295 = vadd.f32 0.0, %v1294
    %1296 = vmatmul.f32.gmra.mxu0 %v408
    %v1297 = vpop.f32.mrf.mxu0
    %v1298 = vadd.f32 0.0, %v1297
    %1299 = vdwg.mxu0
    %1300 = vmatpush.msra.mxu0 0.0
    %1301 = vmatpush.msra.mxu0 0.0
    %1302 = vmatpush.msra.mxu0 0.0
    %1303 = vmatpush.msra.mxu0 0.0
    %1304 = vmatpush.msra.mxu0 0.0
    %1305 = vmatpush.msra.mxu0 0.0
    %1306 = vmatpush.msra.mxu0 0.0
    %1307 = vmatpush.msra.mxu0 0.0
    %1308 = vmatpush.msra.mxu0 0.0
    %1309 = vmatpush.msra.mxu0 0.0
    %1310 = vmatpush.msra.mxu0 0.0
    %1311 = vmatpush.msra.mxu0 0.0
    %1312 = vmatpush.msra.mxu0 0.0
    %1313 = vmatpush.msra.mxu0 0.0
    %1314 = vmatpush.msra.mxu0 %v513
    %1315 = vmatpush.msra.mxu0 %v366
    %1316 = vmatmul.f32.gmra.mxu0 %v405
    %v1317 = vpop.f32.mrf.mxu0
    %v1318 = vadd.f32 0.0, %v1317
    %1319 = vmatmul.f32.gmra.mxu0 %v408
    %v1320 = vpop.f32.mrf.mxu0
    %v1321 = vadd.f32 0.0, %v1320
    %1322 = vdwg.mxu0
    %1323 = vmatpush.msra.mxu0 0.0
    %1324 = vmatpush.msra.mxu0 0.0
    %1325 = vmatpush.msra.mxu0 0.0
    %1326 = vmatpush.msra.mxu0 0.0
    %1327 = vmatpush.msra.mxu0 0.0
    %1328 = vmatpush.msra.mxu0 0.0
    %1329 = vmatpush.msra.mxu0 0.0
    %1330 = vmatpush.msra.mxu0 0.0
    %1331 = vmatpush.msra.mxu0 0.0
    %1332 = vmatpush.msra.mxu0 0.0
    %1333 = vmatpush.msra.mxu0 0.0
    %1334 = vmatpush.msra.mxu0 0.0
    %1335 = vmatpush.msra.mxu0 0.0
    %1336 = vmatpush.msra.mxu0 0.0
    %1337 = vmatpush.msra.mxu0 %v516
    %1338 = vmatpush.msra.mxu0 %v367
    %1339 = vmatmul.f32.gmra.mxu0 %v405
    %v1340 = vpop.f32.mrf.mxu0
    %v1341 = vadd.f32 0.0, %v1340
    %1342 = vmatmul.f32.gmra.mxu0 %v408
    %v1343 = vpop.f32.mrf.mxu0
    %v1344 = vadd.f32 0.0, %v1343
    %1345 = vdwg.mxu0
    %1346 = vst [vmem:[#allocation21] sm:$0xff] %v536
    %1347 = vst [vmem:[#allocation21 + $0x8] sm:$0xff] %v559
    %1348 = vst [vmem:[#allocation21 + $0x10] sm:$0xff] %v582
    %1349 = vst [vmem:[#allocation21 + $0x18] sm:$0xff] %v605
    %1350 = vst [vmem:[#allocation21 + $0x20] sm:$0xff] %v628
    %1351 = vst [vmem:[#allocation21 + $0x28] sm:$0xff] %v651
    %1352 = vst [vmem:[#allocation21 + $0x30] sm:$0xff] %v674
    %1353 = vst [vmem:[#allocation21 + $0x38] sm:$0xff] %v697
    %1354 = vst [vmem:[#allocation21 + $0x40] sm:$0xff] %v720
    %1355 = vst [vmem:[#allocation21 + $0x48] sm:$0xff] %v743
    %1356 = vst [vmem:[#allocation21 + $0x50] sm:$0xff] %v766
    %1357 = vst [vmem:[#allocation21 + $0x58] sm:$0xff] %v789
    %1358 = vst [vmem:[#allocation21 + $0x60] sm:$0xff] %v812
    %1359 = vst [vmem:[#allocation21 + $0x68] sm:$0xff] %v835
    %1360 = vst [vmem:[#allocation21 + $0x70] sm:$0xff] %v858
    %1361 = vst [vmem:[#allocation21 + $0x78] sm:$0xff] %v881
    %1362 = vst [vmem:[#allocation21 + $0x80] sm:$0xff] %v904
    %1363 = vst [vmem:[#allocation21 + $0x88] sm:$0xff] %v927
    %1364 = vst [vmem:[#allocation21 + $0x90] sm:$0xff] %v950
    %1365 = vst [vmem:[#allocation21 + $0x98] sm:$0xff] %v973
    %1366 = vst [vmem:[#allocation21 + $0xa0] sm:$0xff] %v996
    %1367 = vst [vmem:[#allocation21 + $0xa8] sm:$0xff] %v1019
    %1368 = vst [vmem:[#allocation21 + $0xb0] sm:$0xff] %v1042
    %1369 = vst [vmem:[#allocation21 + $0xb8] sm:$0xff] %v1065
    %1370 = vst [vmem:[#allocation21 + $0xc0] sm:$0xff] %v1088
    %1371 = vst [vmem:[#allocation21 + $0xc8] sm:$0xff] %v1111
    %1372 = vst [vmem:[#allocation21 + $0xd0] sm:$0xff] %v1134
    %1373 = vst [vmem:[#allocation21 + $0xd8] sm:$0xff] %v1157
    %1374 = vst [vmem:[#allocation21 + $0xe0] sm:$0xff] %v1180
    %1375 = vst [vmem:[#allocation21 + $0xe8] sm:$0xff] %v1203
    %1376 = vst [vmem:[#allocation21 + $0xf0] sm:$0xff] %v1226
    %1377 = vst [vmem:[#allocation21 + $0xf8] sm:$0xff] %v1249
    %1378 = vst [vmem:[#allocation21 + $0x100] sm:$0xff] %v1272
    %1379 = vst [vmem:[#allocation21 + $0x108] sm:$0xff] %v1295
    %1380 = vst [vmem:[#allocation21 + $0x110] sm:$0xff] %v1318
    %1381 = vst [vmem:[#allocation21 + $0x118] sm:$0xff] %v1341
    %1382 = vst [vmem:[#allocation21 + $0x120] sm:$0xff] %v539
    %1383 = vst [vmem:[#allocation21 + $0x128] sm:$0xff] %v562
    %1384 = vst [vmem:[#allocation21 + $0x130] sm:$0xff] %v585
    %1385 = vst [vmem:[#allocation21 + $0x138] sm:$0xff] %v608
    %1386 = vst [vmem:[#allocation21 + $0x140] sm:$0xff] %v631
    %1387 = vst [vmem:[#allocation21 + $0x148] sm:$0xff] %v654
    %1388 = vst [vmem:[#allocation21 + $0x150] sm:$0xff] %v677
    %1389 = vst [vmem:[#allocation21 + $0x158] sm:$0xff] %v700
    %1390 = vst [vmem:[#allocation21 + $0x160] sm:$0xff] %v723
    %1391 = vst [vmem:[#allocation21 + $0x168] sm:$0xff] %v746
    %1392 = vst [vmem:[#allocation21 + $0x170] sm:$0xff] %v769
    %1393 = vst [vmem:[#allocation21 + $0x178] sm:$0xff] %v792
    %1394 = vst [vmem:[#allocation21 + $0x180] sm:$0xff] %v815
    %1395 = vst [vmem:[#allocation21 + $0x188] sm:$0xff] %v838
    %1396 = vst [vmem:[#allocation21 + $0x190] sm:$0xff] %v861
    %1397 = vst [vmem:[#allocation21 + $0x198] sm:$0xff] %v884
    %1398 = vst [vmem:[#allocation21 + $0x1a0] sm:$0xff] %v907
    %1399 = vst [vmem:[#allocation21 + $0x1a8] sm:$0xff] %v930
    %1400 = vst [vmem:[#allocation21 + $0x1b0] sm:$0xff] %v953
    %1401 = vst [vmem:[#allocation21 + $0x1b8] sm:$0xff] %v976
    %1402 = vst [vmem:[#allocation21 + $0x1c0] sm:$0xff] %v999
    %1403 = vst [vmem:[#allocation21 + $0x1c8] sm:$0xff] %v1022
    %1404 = vst [vmem:[#allocation21 + $0x1d0] sm:$0xff] %v1045
    %1405 = vst [vmem:[#allocation21 + $0x1d8] sm:$0xff] %v1068
    %1406 = vst [vmem:[#allocation21 + $0x1e0] sm:$0xff] %v1091
    %1407 = vst [vmem:[#allocation21 + $0x1e8] sm:$0xff] %v1114
    %1408 = vst [vmem:[#allocation21 + $0x1f0] sm:$0xff] %v1137
    %1409 = vst [vmem:[#allocation21 + $0x1f8] sm:$0xff] %v1160
    %1410 = vst [vmem:[#allocation21 + $0x200] sm:$0xff] %v1183
    %1411 = vst [vmem:[#allocation21 + $0x208] sm:$0xff] %v1206
    %1412 = vst [vmem:[#allocation21 + $0x210] sm:$0xff] %v1229
    %1413 = vst [vmem:[#allocation21 + $0x218] sm:$0xff] %v1252
    %1414 = vst [vmem:[#allocation21 + $0x220] sm:$0xff] %v1275
    %1415 = vst [vmem:[#allocation21 + $0x228] sm:$0xff] %v1298
    %1416 = vst [vmem:[#allocation21 + $0x230] sm:$0xff] %v1321
    %1417 = vst [vmem:[#allocation21 + $0x238] sm:$0xff] %v1344
    %v1418 = vld [vmem:[#allocation10] sm:$0xff]
    %v1419 = vld [vmem:[#allocation10 + $0x8] sm:$0x3]
    %v1421 = vsel %vm234, %v1419, 0
    %1423 = vmatpush.msra.mxu0 0.0
    %1424 = vmatpush.msra.mxu0 0.0
    %1425 = vmatpush.msra.mxu0 0.0
    %1426 = vmatpush.msra.mxu0 0.0
    %1427 = vmatpush.msra.mxu0 0.0
    %1428 = vmatpush.msra.mxu0 0.0
    %1429 = vmatpush.msra.mxu0 0.0
    %1430 = vmatpush.msra.mxu0 0.0
    %1431 = vmatpush.msra.mxu0 0.0
    %1432 = vmatpush.msra.mxu0 0.0
    %1433 = vmatpush.msra.mxu0 0.0
    %1434 = vmatpush.msra.mxu0 0.0
    %1435 = vmatpush.msra.mxu0 0.0
    %1436 = vmatpush.msra.mxu0 0.0
    %1437 = vmatpush.msra.mxu0 %v1421
    %1438 = vmatpush.msra.mxu0 %v1418
    %1439 = vmatmul.f32.gmra.mxu0 %v405
    %v1440 = vpop.f32.mrf.mxu0
    %v1441 = vadd.f32 0.0, %v1440
    %1442 = vmatmul.f32.gmra.mxu0 %v408
    %v1443 = vpop.f32.mrf.mxu0
    %v1444 = vadd.f32 0.0, %v1443
    %1445 = vdwg.mxu0
    %vm1446 = vcmask 523264
    %1447 = vst.msk [vmem:[#allocation23] sm:$0xff] %vm1446, %v1441
    %1448 = vst.msk [vmem:[#allocation23 + $0x8] sm:$0xff] %vm1446, %v1444
    %v1449 = vld [vmem:[#allocation11] sm:$0xff]
    %v1450 = vld [vmem:[#allocation11 + $0x8] sm:$0xff]
    %v1451 = vld [vmem:[#allocation11 + $0x10] sm:$0xff]
    %v1452 = vld [vmem:[#allocation11 + $0x18] sm:$0xff]
    %v1453 = vld [vmem:[#allocation11 + $0x20] sm:$0xff]
    %v1454 = vld [vmem:[#allocation11 + $0x28] sm:$0xff]
    %v1455 = vld [vmem:[#allocation11 + $0x30] sm:$0xff]
    %v1456 = vld [vmem:[#allocation11 + $0x38] sm:$0xff]
    %v1457 = vld [vmem:[#allocation11 + $0x40] sm:$0xff]
    %v1458 = vld [vmem:[#allocation11 + $0x48] sm:$0xff]
    %v1459 = vld [vmem:[#allocation11 + $0x50] sm:$0xff]
    %v1460 = vld [vmem:[#allocation11 + $0x58] sm:$0xff]
    %v1461 = vld [vmem:[#allocation11 + $0x60] sm:$0xff]
    %v1462 = vld [vmem:[#allocation11 + $0x68] sm:$0xff]
    %v1463 = vld [vmem:[#allocation11 + $0x70] sm:$0xff]
    %v1464 = vld [vmem:[#allocation11 + $0x78] sm:$0xff]
    %v1465 = vld [vmem:[#allocation11 + $0x80] sm:$0xff]
    %v1466 = vld [vmem:[#allocation11 + $0x88] sm:$0xff]
    %v1467 = vld [vmem:[#allocation11 + $0x90] sm:$0x3]
    %v1468 = vld [vmem:[#allocation11 + $0x98] sm:$0x3]
    %v1469 = vld [vmem:[#allocation11 + $0xa0] sm:$0x3]
    %v1470 = vld [vmem:[#allocation11 + $0xa8] sm:$0x3]
    %v1471 = vld [vmem:[#allocation11 + $0xb0] sm:$0x3]
    %v1472 = vld [vmem:[#allocation11 + $0xb8] sm:$0x3]
    %v1473 = vld [vmem:[#allocation11 + $0xc0] sm:$0x3]
    %v1474 = vld [vmem:[#allocation11 + $0xc8] sm:$0x3]
    %v1475 = vld [vmem:[#allocation11 + $0xd0] sm:$0x3]
    %v1476 = vld [vmem:[#allocation11 + $0xd8] sm:$0x3]
    %v1477 = vld [vmem:[#allocation11 + $0xe0] sm:$0x3]
    %v1478 = vld [vmem:[#allocation11 + $0xe8] sm:$0x3]
    %v1479 = vld [vmem:[#allocation11 + $0xf0] sm:$0x3]
    %v1480 = vld [vmem:[#allocation11 + $0xf8] sm:$0x3]
    %v1481 = vld [vmem:[#allocation11 + $0x100] sm:$0x3]
    %v1482 = vld [vmem:[#allocation11 + $0x108] sm:$0x3]
    %v1483 = vld [vmem:[#allocation11 + $0x110] sm:$0x3]
    %v1484 = vld [vmem:[#allocation11 + $0x118] sm:$0x3]
    %v1486 = vsel %vm234, %v1467, 0
    %v1489 = vsel %vm234, %v1468, 0
    %v1492 = vsel %vm234, %v1469, 0
    %v1495 = vsel %vm234, %v1470, 0
    %v1498 = vsel %vm234, %v1471, 0
    %v1501 = vsel %vm234, %v1472, 0
    %v1504 = vsel %vm234, %v1473, 0
    %v1507 = vsel %vm234, %v1474, 0
    %v1510 = vsel %vm234, %v1475, 0
    %v1513 = vsel %vm234, %v1476, 0
    %v1516 = vsel %vm234, %v1477, 0
    %v1519 = vsel %vm234, %v1478, 0
    %v1522 = vsel %vm234, %v1479, 0
    %v1525 = vsel %vm234, %v1480, 0
    %v1528 = vsel %vm234, %v1481, 0
    %v1531 = vsel %vm234, %v1482, 0
    %v1534 = vsel %vm234, %v1483, 0
    %v1537 = vsel %vm234, %v1484, 0
    %1539 = vmatpush.msra.mxu0 0.0
    %1540 = vmatpush.msra.mxu0 0.0
    %1541 = vmatpush.msra.mxu0 0.0
    %1542 = vmatpush.msra.mxu0 0.0
    %1543 = vmatpush.msra.mxu0 0.0
    %1544 = vmatpush.msra.mxu0 0.0
    %1545 = vmatpush.msra.mxu0 0.0
    %1546 = vmatpush.msra.mxu0 0.0
    %1547 = vmatpush.msra.mxu0 0.0
    %1548 = vmatpush.msra.mxu0 0.0
    %1549 = vmatpush.msra.mxu0 0.0
    %1550 = vmatpush.msra.mxu0 0.0
    %1551 = vmatpush.msra.mxu0 0.0
    %1552 = vmatpush.msra.mxu0 0.0
    %1553 = vmatpush.msra.mxu0 %v1486
    %1554 = vmatpush.msra.mxu0 %v1449
    %1555 = vmatmul.f32.gmra.mxu0 %v405
    %v1556 = vpop.f32.mrf.mxu0
    %v1557 = vadd.f32 0.0, %v1556
    %1558 = vmatmul.f32.gmra.mxu0 %v408
    %v1559 = vpop.f32.mrf.mxu0
    %v1560 = vadd.f32 0.0, %v1559
    %1561 = vdwg.mxu0
    %1562 = vmatpush.msra.mxu0 0.0
    %1563 = vmatpush.msra.mxu0 0.0
    %1564 = vmatpush.msra.mxu0 0.0
    %1565 = vmatpush.msra.mxu0 0.0
    %1566 = vmatpush.msra.mxu0 0.0
    %1567 = vmatpush.msra.mxu0 0.0
    %1568 = vmatpush.msra.mxu0 0.0
    %1569 = vmatpush.msra.mxu0 0.0
    %1570 = vmatpush.msra.mxu0 0.0
    %1571 = vmatpush.msra.mxu0 0.0
    %1572 = vmatpush.msra.mxu0 0.0
    %1573 = vmatpush.msra.mxu0 0.0
    %1574 = vmatpush.msra.mxu0 0.0
    %1575 = vmatpush.msra.mxu0 0.0
    %1576 = vmatpush.msra.mxu0 %v1489
    %1577 = vmatpush.msra.mxu0 %v1450
    %1578 = vmatmul.f32.gmra.mxu0 %v405
    %v1579 = vpop.f32.mrf.mxu0
    %v1580 = vadd.f32 0.0, %v1579
    %1581 = vmatmul.f32.gmra.mxu0 %v408
    %v1582 = vpop.f32.mrf.mxu0
    %v1583 = vadd.f32 0.0, %v1582
    %1584 = vdwg.mxu0
    %1585 = vmatpush.msra.mxu0 0.0
    %1586 = vmatpush.msra.mxu0 0.0
    %1587 = vmatpush.msra.mxu0 0.0
    %1588 = vmatpush.msra.mxu0 0.0
    %1589 = vmatpush.msra.mxu0 0.0
    %1590 = vmatpush.msra.mxu0 0.0
    %1591 = vmatpush.msra.mxu0 0.0
    %1592 = vmatpush.msra.mxu0 0.0
    %1593 = vmatpush.msra.mxu0 0.0
    %1594 = vmatpush.msra.mxu0 0.0
    %1595 = vmatpush.msra.mxu0 0.0
    %1596 = vmatpush.msra.mxu0 0.0
    %1597 = vmatpush.msra.mxu0 0.0
    %1598 = vmatpush.msra.mxu0 0.0
    %1599 = vmatpush.msra.mxu0 %v1492
    %1600 = vmatpush.msra.mxu0 %v1451
    %1601 = vmatmul.f32.gmra.mxu0 %v405
    %v1602 = vpop.f32.mrf.mxu0
    %v1603 = vadd.f32 0.0, %v1602
    %1604 = vmatmul.f32.gmra.mxu0 %v408
    %v1605 = vpop.f32.mrf.mxu0
    %v1606 = vadd.f32 0.0, %v1605
    %1607 = vdwg.mxu0
    %1608 = vmatpush.msra.mxu0 0.0
    %1609 = vmatpush.msra.mxu0 0.0
    %1610 = vmatpush.msra.mxu0 0.0
    %1611 = vmatpush.msra.mxu0 0.0
    %1612 = vmatpush.msra.mxu0 0.0
    %1613 = vmatpush.msra.mxu0 0.0
    %1614 = vmatpush.msra.mxu0 0.0
    %1615 = vmatpush.msra.mxu0 0.0
    %1616 = vmatpush.msra.mxu0 0.0
    %1617 = vmatpush.msra.mxu0 0.0
    %1618 = vmatpush.msra.mxu0 0.0
    %1619 = vmatpush.msra.mxu0 0.0
    %1620 = vmatpush.msra.mxu0 0.0
    %1621 = vmatpush.msra.mxu0 0.0
    %1622 = vmatpush.msra.mxu0 %v1495
    %1623 = vmatpush.msra.mxu0 %v1452
    %1624 = vmatmul.f32.gmra.mxu0 %v405
    %v1625 = vpop.f32.mrf.mxu0
    %v1626 = vadd.f32 0.0, %v1625
    %1627 = vmatmul.f32.gmra.mxu0 %v408
    %v1628 = vpop.f32.mrf.mxu0
    %v1629 = vadd.f32 0.0, %v1628
    %1630 = vdwg.mxu0
    %1631 = vmatpush.msra.mxu0 0.0
    %1632 = vmatpush.msra.mxu0 0.0
    %1633 = vmatpush.msra.mxu0 0.0
    %1634 = vmatpush.msra.mxu0 0.0
    %1635 = vmatpush.msra.mxu0 0.0
    %1636 = vmatpush.msra.mxu0 0.0
    %1637 = vmatpush.msra.mxu0 0.0
    %1638 = vmatpush.msra.mxu0 0.0
    %1639 = vmatpush.msra.mxu0 0.0
    %1640 = vmatpush.msra.mxu0 0.0
    %1641 = vmatpush.msra.mxu0 0.0
    %1642 = vmatpush.msra.mxu0 0.0
    %1643 = vmatpush.msra.mxu0 0.0
    %1644 = vmatpush.msra.mxu0 0.0
    %1645 = vmatpush.msra.mxu0 %v1498
    %1646 = vmatpush.msra.mxu0 %v1453
    %1647 = vmatmul.f32.gmra.mxu0 %v405
    %v1648 = vpop.f32.mrf.mxu0
    %v1649 = vadd.f32 0.0, %v1648
    %1650 = vmatmul.f32.gmra.mxu0 %v408
    %v1651 = vpop.f32.mrf.mxu0
    %v1652 = vadd.f32 0.0, %v1651
    %1653 = vdwg.mxu0
    %1654 = vmatpush.msra.mxu0 0.0
    %1655 = vmatpush.msra.mxu0 0.0
    %1656 = vmatpush.msra.mxu0 0.0
    %1657 = vmatpush.msra.mxu0 0.0
    %1658 = vmatpush.msra.mxu0 0.0
    %1659 = vmatpush.msra.mxu0 0.0
    %1660 = vmatpush.msra.mxu0 0.0
    %1661 = vmatpush.msra.mxu0 0.0
    %1662 = vmatpush.msra.mxu0 0.0
    %1663 = vmatpush.msra.mxu0 0.0
    %1664 = vmatpush.msra.mxu0 0.0
    %1665 = vmatpush.msra.mxu0 0.0
    %1666 = vmatpush.msra.mxu0 0.0
    %1667 = vmatpush.msra.mxu0 0.0
    %1668 = vmatpush.msra.mxu0 %v1501
    %1669 = vmatpush.msra.mxu0 %v1454
    %1670 = vmatmul.f32.gmra.mxu0 %v405
    %v1671 = vpop.f32.mrf.mxu0
    %v1672 = vadd.f32 0.0, %v1671
    %1673 = vmatmul.f32.gmra.mxu0 %v408
    %v1674 = vpop.f32.mrf.mxu0
    %v1675 = vadd.f32 0.0, %v1674
    %1676 = vdwg.mxu0
    %1677 = vmatpush.msra.mxu0 0.0
    %1678 = vmatpush.msra.mxu0 0.0
    %1679 = vmatpush.msra.mxu0 0.0
    %1680 = vmatpush.msra.mxu0 0.0
    %1681 = vmatpush.msra.mxu0 0.0
    %1682 = vmatpush.msra.mxu0 0.0
    %1683 = vmatpush.msra.mxu0 0.0
    %1684 = vmatpush.msra.mxu0 0.0
    %1685 = vmatpush.msra.mxu0 0.0
    %1686 = vmatpush.msra.mxu0 0.0
    %1687 = vmatpush.msra.mxu0 0.0
    %1688 = vmatpush.msra.mxu0 0.0
    %1689 = vmatpush.msra.mxu0 0.0
    %1690 = vmatpush.msra.mxu0 0.0
    %1691 = vmatpush.msra.mxu0 %v1504
    %1692 = vmatpush.msra.mxu0 %v1455
    %1693 = vmatmul.f32.gmra.mxu0 %v405
    %v1694 = vpop.f32.mrf.mxu0
    %v1695 = vadd.f32 0.0, %v1694
    %1696 = vmatmul.f32.gmra.mxu0 %v408
    %v1697 = vpop.f32.mrf.mxu0
    %v1698 = vadd.f32 0.0, %v1697
    %1699 = vdwg.mxu0
    %1700 = vmatpush.msra.mxu0 0.0
    %1701 = vmatpush.msra.mxu0 0.0
    %1702 = vmatpush.msra.mxu0 0.0
    %1703 = vmatpush.msra.mxu0 0.0
    %1704 = vmatpush.msra.mxu0 0.0
    %1705 = vmatpush.msra.mxu0 0.0
    %1706 = vmatpush.msra.mxu0 0.0
    %1707 = vmatpush.msra.mxu0 0.0
    %1708 = vmatpush.msra.mxu0 0.0
    %1709 = vmatpush.msra.mxu0 0.0
    %1710 = vmatpush.msra.mxu0 0.0
    %1711 = vmatpush.msra.mxu0 0.0
    %1712 = vmatpush.msra.mxu0 0.0
    %1713 = vmatpush.msra.mxu0 0.0
    %1714 = vmatpush.msra.mxu0 %v1507
    %1715 = vmatpush.msra.mxu0 %v1456
    %1716 = vmatmul.f32.gmra.mxu0 %v405
    %v1717 = vpop.f32.mrf.mxu0
    %v1718 = vadd.f32 0.0, %v1717
    %1719 = vmatmul.f32.gmra.mxu0 %v408
    %v1720 = vpop.f32.mrf.mxu0
    %v1721 = vadd.f32 0.0, %v1720
    %1722 = vdwg.mxu0
    %1723 = vmatpush.msra.mxu0 0.0
    %1724 = vmatpush.msra.mxu0 0.0
    %1725 = vmatpush.msra.mxu0 0.0
    %1726 = vmatpush.msra.mxu0 0.0
    %1727 = vmatpush.msra.mxu0 0.0
    %1728 = vmatpush.msra.mxu0 0.0
    %1729 = vmatpush.msra.mxu0 0.0
    %1730 = vmatpush.msra.mxu0 0.0
    %1731 = vmatpush.msra.mxu0 0.0
    %1732 = vmatpush.msra.mxu0 0.0
    %1733 = vmatpush.msra.mxu0 0.0
    %1734 = vmatpush.msra.mxu0 0.0
    %1735 = vmatpush.msra.mxu0 0.0
    %1736 = vmatpush.msra.mxu0 0.0
    %1737 = vmatpush.msra.mxu0 %v1510
    %1738 = vmatpush.msra.mxu0 %v1457
    %1739 = vmatmul.f32.gmra.mxu0 %v405
    %v1740 = vpop.f32.mrf.mxu0
    %v1741 = vadd.f32 0.0, %v1740
    %1742 = vmatmul.f32.gmra.mxu0 %v408
    %v1743 = vpop.f32.mrf.mxu0
    %v1744 = vadd.f32 0.0, %v1743
    %1745 = vdwg.mxu0
    %1746 = vmatpush.msra.mxu0 0.0
    %1747 = vmatpush.msra.mxu0 0.0
    %1748 = vmatpush.msra.mxu0 0.0
    %1749 = vmatpush.msra.mxu0 0.0
    %1750 = vmatpush.msra.mxu0 0.0
    %1751 = vmatpush.msra.mxu0 0.0
    %1752 = vmatpush.msra.mxu0 0.0
    %1753 = vmatpush.msra.mxu0 0.0
    %1754 = vmatpush.msra.mxu0 0.0
    %1755 = vmatpush.msra.mxu0 0.0
    %1756 = vmatpush.msra.mxu0 0.0
    %1757 = vmatpush.msra.mxu0 0.0
    %1758 = vmatpush.msra.mxu0 0.0
    %1759 = vmatpush.msra.mxu0 0.0
    %1760 = vmatpush.msra.mxu0 %v1513
    %1761 = vmatpush.msra.mxu0 %v1458
    %1762 = vmatmul.f32.gmra.mxu0 %v405
    %v1763 = vpop.f32.mrf.mxu0
    %v1764 = vadd.f32 0.0, %v1763
    %1765 = vmatmul.f32.gmra.mxu0 %v408
    %v1766 = vpop.f32.mrf.mxu0
    %v1767 = vadd.f32 0.0, %v1766
    %1768 = vdwg.mxu0
    %1769 = vmatpush.msra.mxu0 0.0
    %1770 = vmatpush.msra.mxu0 0.0
    %1771 = vmatpush.msra.mxu0 0.0
    %1772 = vmatpush.msra.mxu0 0.0
    %1773 = vmatpush.msra.mxu0 0.0
    %1774 = vmatpush.msra.mxu0 0.0
    %1775 = vmatpush.msra.mxu0 0.0
    %1776 = vmatpush.msra.mxu0 0.0
    %1777 = vmatpush.msra.mxu0 0.0
    %1778 = vmatpush.msra.mxu0 0.0
    %1779 = vmatpush.msra.mxu0 0.0
    %1780 = vmatpush.msra.mxu0 0.0
    %1781 = vmatpush.msra.mxu0 0.0
    %1782 = vmatpush.msra.mxu0 0.0
    %1783 = vmatpush.msra.mxu0 %v1516
    %1784 = vmatpush.msra.mxu0 %v1459
    %1785 = vmatmul.f32.gmra.mxu0 %v405
    %v1786 = vpop.f32.mrf.mxu0
    %v1787 = vadd.f32 0.0, %v1786
    %1788 = vmatmul.f32.gmra.mxu0 %v408
    %v1789 = vpop.f32.mrf.mxu0
    %v1790 = vadd.f32 0.0, %v1789
    %1791 = vdwg.mxu0
    %1792 = vmatpush.msra.mxu0 0.0
    %1793 = vmatpush.msra.mxu0 0.0
    %1794 = vmatpush.msra.mxu0 0.0
    %1795 = vmatpush.msra.mxu0 0.0
    %1796 = vmatpush.msra.mxu0 0.0
    %1797 = vmatpush.msra.mxu0 0.0
    %1798 = vmatpush.msra.mxu0 0.0
    %1799 = vmatpush.msra.mxu0 0.0
    %1800 = vmatpush.msra.mxu0 0.0
    %1801 = vmatpush.msra.mxu0 0.0
    %1802 = vmatpush.msra.mxu0 0.0
    %1803 = vmatpush.msra.mxu0 0.0
    %1804 = vmatpush.msra.mxu0 0.0
    %1805 = vmatpush.msra.mxu0 0.0
    %1806 = vmatpush.msra.mxu0 %v1519
    %1807 = vmatpush.msra.mxu0 %v1460
    %1808 = vmatmul.f32.gmra.mxu0 %v405
    %v1809 = vpop.f32.mrf.mxu0
    %v1810 = vadd.f32 0.0, %v1809
    %1811 = vmatmul.f32.gmra.mxu0 %v408
    %v1812 = vpop.f32.mrf.mxu0
    %v1813 = vadd.f32 0.0, %v1812
    %1814 = vdwg.mxu0
    %1815 = vmatpush.msra.mxu0 0.0
    %1816 = vmatpush.msra.mxu0 0.0
    %1817 = vmatpush.msra.mxu0 0.0
    %1818 = vmatpush.msra.mxu0 0.0
    %1819 = vmatpush.msra.mxu0 0.0
    %1820 = vmatpush.msra.mxu0 0.0
    %1821 = vmatpush.msra.mxu0 0.0
    %1822 = vmatpush.msra.mxu0 0.0
    %1823 = vmatpush.msra.mxu0 0.0
    %1824 = vmatpush.msra.mxu0 0.0
    %1825 = vmatpush.msra.mxu0 0.0
    %1826 = vmatpush.msra.mxu0 0.0
    %1827 = vmatpush.msra.mxu0 0.0
    %1828 = vmatpush.msra.mxu0 0.0
    %1829 = vmatpush.msra.mxu0 %v1522
    %1830 = vmatpush.msra.mxu0 %v1461
    %1831 = vmatmul.f32.gmra.mxu0 %v405
    %v1832 = vpop.f32.mrf.mxu0
    %v1833 = vadd.f32 0.0, %v1832
    %1834 = vmatmul.f32.gmra.mxu0 %v408
    %v1835 = vpop.f32.mrf.mxu0
    %v1836 = vadd.f32 0.0, %v1835
    %1837 = vdwg.mxu0
    %1838 = vmatpush.msra.mxu0 0.0
    %1839 = vmatpush.msra.mxu0 0.0
    %1840 = vmatpush.msra.mxu0 0.0
    %1841 = vmatpush.msra.mxu0 0.0
    %1842 = vmatpush.msra.mxu0 0.0
    %1843 = vmatpush.msra.mxu0 0.0
    %1844 = vmatpush.msra.mxu0 0.0
    %1845 = vmatpush.msra.mxu0 0.0
    %1846 = vmatpush.msra.mxu0 0.0
    %1847 = vmatpush.msra.mxu0 0.0
    %1848 = vmatpush.msra.mxu0 0.0
    %1849 = vmatpush.msra.mxu0 0.0
    %1850 = vmatpush.msra.mxu0 0.0
    %1851 = vmatpush.msra.mxu0 0.0
    %1852 = vmatpush.msra.mxu0 %v1525
    %1853 = vmatpush.msra.mxu0 %v1462
    %1854 = vmatmul.f32.gmra.mxu0 %v405
    %v1855 = vpop.f32.mrf.mxu0
    %v1856 = vadd.f32 0.0, %v1855
    %1857 = vmatmul.f32.gmra.mxu0 %v408
    %v1858 = vpop.f32.mrf.mxu0
    %v1859 = vadd.f32 0.0, %v1858
    %1860 = vdwg.mxu0
    %1861 = vmatpush.msra.mxu0 0.0
    %1862 = vmatpush.msra.mxu0 0.0
    %1863 = vmatpush.msra.mxu0 0.0
    %1864 = vmatpush.msra.mxu0 0.0
    %1865 = vmatpush.msra.mxu0 0.0
    %1866 = vmatpush.msra.mxu0 0.0
    %1867 = vmatpush.msra.mxu0 0.0
    %1868 = vmatpush.msra.mxu0 0.0
    %1869 = vmatpush.msra.mxu0 0.0
    %1870 = vmatpush.msra.mxu0 0.0
    %1871 = vmatpush.msra.mxu0 0.0
    %1872 = vmatpush.msra.mxu0 0.0
    %1873 = vmatpush.msra.mxu0 0.0
    %1874 = vmatpush.msra.mxu0 0.0
    %1875 = vmatpush.msra.mxu0 %v1528
    %1876 = vmatpush.msra.mxu0 %v1463
    %1877 = vmatmul.f32.gmra.mxu0 %v405
    %v1878 = vpop.f32.mrf.mxu0
    %v1879 = vadd.f32 0.0, %v1878
    %1880 = vmatmul.f32.gmra.mxu0 %v408
    %v1881 = vpop.f32.mrf.mxu0
    %v1882 = vadd.f32 0.0, %v1881
    %1883 = vdwg.mxu0
    %1884 = vmatpush.msra.mxu0 0.0
    %1885 = vmatpush.msra.mxu0 0.0
    %1886 = vmatpush.msra.mxu0 0.0
    %1887 = vmatpush.msra.mxu0 0.0
    %1888 = vmatpush.msra.mxu0 0.0
    %1889 = vmatpush.msra.mxu0 0.0
    %1890 = vmatpush.msra.mxu0 0.0
    %1891 = vmatpush.msra.mxu0 0.0
    %1892 = vmatpush.msra.mxu0 0.0
    %1893 = vmatpush.msra.mxu0 0.0
    %1894 = vmatpush.msra.mxu0 0.0
    %1895 = vmatpush.msra.mxu0 0.0
    %1896 = vmatpush.msra.mxu0 0.0
    %1897 = vmatpush.msra.mxu0 0.0
    %1898 = vmatpush.msra.mxu0 %v1531
    %1899 = vmatpush.msra.mxu0 %v1464
    %1900 = vmatmul.f32.gmra.mxu0 %v405
    %v1901 = vpop.f32.mrf.mxu0
    %v1902 = vadd.f32 0.0, %v1901
    %1903 = vmatmul.f32.gmra.mxu0 %v408
    %v1904 = vpop.f32.mrf.mxu0
    %v1905 = vadd.f32 0.0, %v1904
    %1906 = vdwg.mxu0
    %1907 = vmatpush.msra.mxu0 0.0
    %1908 = vmatpush.msra.mxu0 0.0
    %1909 = vmatpush.msra.mxu0 0.0
    %1910 = vmatpush.msra.mxu0 0.0
    %1911 = vmatpush.msra.mxu0 0.0
    %1912 = vmatpush.msra.mxu0 0.0
    %1913 = vmatpush.msra.mxu0 0.0
    %1914 = vmatpush.msra.mxu0 0.0
    %1915 = vmatpush.msra.mxu0 0.0
    %1916 = vmatpush.msra.mxu0 0.0
    %1917 = vmatpush.msra.mxu0 0.0
    %1918 = vmatpush.msra.mxu0 0.0
    %1919 = vmatpush.msra.mxu0 0.0
    %1920 = vmatpush.msra.mxu0 0.0
    %1921 = vmatpush.msra.mxu0 %v1534
    %1922 = vmatpush.msra.mxu0 %v1465
    %1923 = vmatmul.f32.gmra.mxu0 %v405
    %v1924 = vpop.f32.mrf.mxu0
    %v1925 = vadd.f32 0.0, %v1924
    %1926 = vmatmul.f32.gmra.mxu0 %v408
    %v1927 = vpop.f32.mrf.mxu0
    %v1928 = vadd.f32 0.0, %v1927
    %1929 = vdwg.mxu0
    %1930 = vmatpush.msra.mxu0 0.0
    %1931 = vmatpush.msra.mxu0 0.0
    %1932 = vmatpush.msra.mxu0 0.0
    %1933 = vmatpush.msra.mxu0 0.0
    %1934 = vmatpush.msra.mxu0 0.0
    %1935 = vmatpush.msra.mxu0 0.0
    %1936 = vmatpush.msra.mxu0 0.0
    %1937 = vmatpush.msra.mxu0 0.0
    %1938 = vmatpush.msra.mxu0 0.0
    %1939 = vmatpush.msra.mxu0 0.0
    %1940 = vmatpush.msra.mxu0 0.0
    %1941 = vmatpush.msra.mxu0 0.0
    %1942 = vmatpush.msra.mxu0 0.0
    %1943 = vmatpush.msra.mxu0 0.0
    %1944 = vmatpush.msra.mxu0 %v1537
    %1945 = vmatpush.msra.mxu0 %v1466
    %1946 = vmatmul.f32.gmra.mxu0 %v405
    %v1947 = vpop.f32.mrf.mxu0
    %v1948 = vadd.f32 0.0, %v1947
    %1949 = vmatmul.f32.gmra.mxu0 %v408
    %v1950 = vpop.f32.mrf.mxu0
    %v1951 = vadd.f32 0.0, %v1950
    %1952 = vdwg.mxu0
    %1953 = vst [vmem:[#allocation24] sm:$0xff] %v1557
    %1954 = vst [vmem:[#allocation24 + $0x8] sm:$0xff] %v1580
    %1955 = vst [vmem:[#allocation24 + $0x10] sm:$0xff] %v1603
    %1956 = vst [vmem:[#allocation24 + $0x18] sm:$0xff] %v1626
    %1957 = vst [vmem:[#allocation24 + $0x20] sm:$0xff] %v1649
    %1958 = vst [vmem:[#allocation24 + $0x28] sm:$0xff] %v1672
    %1959 = vst [vmem:[#allocation24 + $0x30] sm:$0xff] %v1695
    %1960 = vst [vmem:[#allocation24 + $0x38] sm:$0xff] %v1718
    %1961 = vst [vmem:[#allocation24 + $0x40] sm:$0xff] %v1741
    %1962 = vst [vmem:[#allocation24 + $0x48] sm:$0xff] %v1764
    %1963 = vst [vmem:[#allocation24 + $0x50] sm:$0xff] %v1787
    %1964 = vst [vmem:[#allocation24 + $0x58] sm:$0xff] %v1810
    %1965 = vst [vmem:[#allocation24 + $0x60] sm:$0xff] %v1833
    %1966 = vst [vmem:[#allocation24 + $0x68] sm:$0xff] %v1856
    %1967 = vst [vmem:[#allocation24 + $0x70] sm:$0xff] %v1879
    %1968 = vst [vmem:[#allocation24 + $0x78] sm:$0xff] %v1902
    %1969 = vst [vmem:[#allocation24 + $0x80] sm:$0xff] %v1925
    %1970 = vst [vmem:[#allocation24 + $0x88] sm:$0xff] %v1948
    %1971 = vst [vmem:[#allocation24 + $0x90] sm:$0xff] %v1560
    %1972 = vst [vmem:[#allocation24 + $0x98] sm:$0xff] %v1583
    %1973 = vst [vmem:[#allocation24 + $0xa0] sm:$0xff] %v1606
    %1974 = vst [vmem:[#allocation24 + $0xa8] sm:$0xff] %v1629
    %1975 = vst [vmem:[#allocation24 + $0xb0] sm:$0xff] %v1652
    %1976 = vst [vmem:[#allocation24 + $0xb8] sm:$0xff] %v1675
    %1977 = vst [vmem:[#allocation24 + $0xc0] sm:$0xff] %v1698
    %1978 = vst [vmem:[#allocation24 + $0xc8] sm:$0xff] %v1721
    %1979 = vst [vmem:[#allocation24 + $0xd0] sm:$0xff] %v1744
    %1980 = vst [vmem:[#allocation24 + $0xd8] sm:$0xff] %v1767
    %1981 = vst [vmem:[#allocation24 + $0xe0] sm:$0xff] %v1790
    %1982 = vst [vmem:[#allocation24 + $0xe8] sm:$0xff] %v1813
    %1983 = vst [vmem:[#allocation24 + $0xf0] sm:$0xff] %v1836
    %1984 = vst [vmem:[#allocation24 + $0xf8] sm:$0xff] %v1859
    %1985 = vst [vmem:[#allocation24 + $0x100] sm:$0xff] %v1882
    %1986 = vst [vmem:[#allocation24 + $0x108] sm:$0xff] %v1905
    %1987 = vst [vmem:[#allocation24 + $0x110] sm:$0xff] %v1928
    %1988 = vst [vmem:[#allocation24 + $0x118] sm:$0xff] %v1951
    %v1989 = vld [vmem:[#allocation13] sm:$0xff]
    %v1990 = vld [vmem:[#allocation13 + $0x8] sm:$0x3]
    %v1992 = vsel %vm234, %v1990, 0
    %1994 = vmatpush.msra.mxu0 0.0
    %1995 = vmatpush.msra.mxu0 0.0
    %1996 = vmatpush.msra.mxu0 0.0
    %1997 = vmatpush.msra.mxu0 0.0
    %1998 = vmatpush.msra.mxu0 0.0
    %1999 = vmatpush.msra.mxu0 0.0
    %2000 = vmatpush.msra.mxu0 0.0
    %2001 = vmatpush.msra.mxu0 0.0
    %2002 = vmatpush.msra.mxu0 0.0
    %2003 = vmatpush.msra.mxu0 0.0
    %2004 = vmatpush.msra.mxu0 0.0
    %2005 = vmatpush.msra.mxu0 0.0
    %2006 = vmatpush.msra.mxu0 0.0
    %2007 = vmatpush.msra.mxu0 0.0
    %2008 = vmatpush.msra.mxu0 %v1992
    %2009 = vmatpush.msra.mxu0 %v1989
    %2010 = vmatmul.f32.gmra.mxu0 %v405
    %v2011 = vpop.f32.mrf.mxu0
    %v2012 = vadd.f32 0.0, %v2011
    %2013 = vmatmul.f32.gmra.mxu0 %v408
    %v2014 = vpop.f32.mrf.mxu0
    %v2015 = vadd.f32 0.0, %v2014
    %2016 = vdwg.mxu0
    %vm2017 = vcmask 261120
    %2018 = vst.msk [vmem:[#allocation26] sm:$0xff] %vm2017, %v2012
    %2019 = vst.msk [vmem:[#allocation26 + $0x8] sm:$0xff] %vm2017, %v2015
    %v2020 = vld [vmem:[#allocation14] sm:$0xff]
    %v2021 = vld [vmem:[#allocation14 + $0x8] sm:$0xff]
    %v2022 = vld [vmem:[#allocation14 + $0x10] sm:$0xff]
    %v2023 = vld [vmem:[#allocation14 + $0x18] sm:$0xff]
    %v2024 = vld [vmem:[#allocation14 + $0x20] sm:$0xff]
    %v2025 = vld [vmem:[#allocation14 + $0x28] sm:$0xff]
    %v2026 = vld [vmem:[#allocation14 + $0x30] sm:$0xff]
    %v2027 = vld [vmem:[#allocation14 + $0x38] sm:$0xff]
    %v2028 = vld [vmem:[#allocation14 + $0x40] sm:$0xff]
    %v2029 = vld [vmem:[#allocation14 + $0x48] sm:$0xff]
    %v2030 = vld [vmem:[#allocation14 + $0x50] sm:$0xff]
    %v2031 = vld [vmem:[#allocation14 + $0x58] sm:$0xff]
    %v2032 = vld [vmem:[#allocation14 + $0x60] sm:$0xff]
    %v2033 = vld [vmem:[#allocation14 + $0x68] sm:$0xff]
    %v2034 = vld [vmem:[#allocation14 + $0x70] sm:$0xff]
    %v2035 = vld [vmem:[#allocation14 + $0x78] sm:$0xff]
    %v2036 = vld [vmem:[#allocation14 + $0x80] sm:$0xff]
    %v2037 = vld [vmem:[#allocation14 + $0x88] sm:$0xff]
    %v2038 = vld [vmem:[#allocation14 + $0x90] sm:$0xff]
    %v2039 = vld [vmem:[#allocation14 + $0x98] sm:$0xff]
    %v2040 = vld [vmem:[#allocation14 + $0xa0] sm:$0xff]
    %v2041 = vld [vmem:[#allocation14 + $0xa8] sm:$0xff]
    %v2042 = vld [vmem:[#allocation14 + $0xb0] sm:$0xff]
    %v2043 = vld [vmem:[#allocation14 + $0xb8] sm:$0xff]
    %v2044 = vld [vmem:[#allocation14 + $0xc0] sm:$0xff]
    %v2045 = vld [vmem:[#allocation14 + $0xc8] sm:$0xff]
    %v2046 = vld [vmem:[#allocation14 + $0xd0] sm:$0xff]
    %v2047 = vld [vmem:[#allocation14 + $0xd8] sm:$0xff]
    %v2048 = vld [vmem:[#allocation14 + $0xe0] sm:$0xff]
    %v2049 = vld [vmem:[#allocation14 + $0xe8] sm:$0xff]
    %v2050 = vld [vmem:[#allocation14 + $0xf0] sm:$0xff]
    %v2051 = vld [vmem:[#allocation14 + $0xf8] sm:$0xff]
    %v2052 = vld [vmem:[#allocation14 + $0x100] sm:$0xff]
    %v2053 = vld [vmem:[#allocation14 + $0x108] sm:$0xff]
    %v2054 = vld [vmem:[#allocation14 + $0x110] sm:$0xff]
    %v2055 = vld [vmem:[#allocation14 + $0x118] sm:$0xff]
    %v2056 = vld [vmem:[#allocation14 + $0x120] sm:$0xff]
    %v2057 = vld [vmem:[#allocation14 + $0x128] sm:$0xff]
    %v2058 = vld [vmem:[#allocation14 + $0x130] sm:$0xff]
    %v2059 = vld [vmem:[#allocation14 + $0x138] sm:$0xff]
    %v2060 = vld [vmem:[#allocation14 + $0x140] sm:$0xff]
    %v2061 = vld [vmem:[#allocation14 + $0x148] sm:$0xff]
    %v2062 = vld [vmem:[#allocation14 + $0x150] sm:$0xff]
    %v2063 = vld [vmem:[#allocation14 + $0x158] sm:$0xff]
    %v2064 = vld [vmem:[#allocation14 + $0x160] sm:$0xff]
    %v2065 = vld [vmem:[#allocation14 + $0x168] sm:$0xff]
    %v2066 = vld [vmem:[#allocation14 + $0x170] sm:$0xff]
    %v2067 = vld [vmem:[#allocation14 + $0x178] sm:$0xff]
    %v2068 = vld [vmem:[#allocation14 + $0x180] sm:$0xff]
    %v2069 = vld [vmem:[#allocation14 + $0x188] sm:$0xff]
    %v2070 = vld [vmem:[#allocation14 + $0x190] sm:$0xff]
    %v2071 = vld [vmem:[#allocation14 + $0x198] sm:$0xff]
    %v2072 = vld [vmem:[#allocation14 + $0x1a0] sm:$0xff]
    %v2073 = vld [vmem:[#allocation14 + $0x1a8] sm:$0xff]
    %v2074 = vld [vmem:[#allocation14 + $0x1b0] sm:$0xff]
    %v2075 = vld [vmem:[#allocation14 + $0x1b8] sm:$0xff]
    %v2076 = vld [vmem:[#allocation14 + $0x1c0] sm:$0xff]
    %v2077 = vld [vmem:[#allocation14 + $0x1c8] sm:$0xff]
    %v2078 = vld [vmem:[#allocation14 + $0x1d0] sm:$0xff]
    %v2079 = vld [vmem:[#allocation14 + $0x1d8] sm:$0xff]
    %v2080 = vld [vmem:[#allocation14 + $0x1e0] sm:$0xff]
    %v2081 = vld [vmem:[#allocation14 + $0x1e8] sm:$0xff]
    %v2082 = vld [vmem:[#allocation14 + $0x1f0] sm:$0xff]
    %v2083 = vld [vmem:[#allocation14 + $0x1f8] sm:$0xff]
    %v2084 = vld [vmem:[#allocation14 + $0x200] sm:$0x3]
    %v2085 = vld [vmem:[#allocation14 + $0x208] sm:$0x3]
    %v2086 = vld [vmem:[#allocation14 + $0x210] sm:$0x3]
    %v2087 = vld [vmem:[#allocation14 + $0x218] sm:$0x3]
    %v2088 = vld [vmem:[#allocation14 + $0x220] sm:$0x3]
    %v2089 = vld [vmem:[#allocation14 + $0x228] sm:$0x3]
    %v2090 = vld [vmem:[#allocation14 + $0x230] sm:$0x3]
    %v2091 = vld [vmem:[#allocation14 + $0x238] sm:$0x3]
    %v2092 = vld [vmem:[#allocation14 + $0x240] sm:$0x3]
    %v2093 = vld [vmem:[#allocation14 + $0x248] sm:$0x3]
    %v2094 = vld [vmem:[#allocation14 + $0x250] sm:$0x3]
    %v2095 = vld [vmem:[#allocation14 + $0x258] sm:$0x3]
    %v2096 = vld [vmem:[#allocation14 + $0x260] sm:$0x3]
    %v2097 = vld [vmem:[#allocation14 + $0x268] sm:$0x3]
    %v2098 = vld [vmem:[#allocation14 + $0x270] sm:$0x3]
    %v2099 = vld [vmem:[#allocation14 + $0x278] sm:$0x3]
    %v2100 = vld [vmem:[#allocation14 + $0x280] sm:$0x3]
    %v2101 = vld [vmem:[#allocation14 + $0x288] sm:$0x3]
    %v2102 = vld [vmem:[#allocation14 + $0x290] sm:$0x3]
    %v2103 = vld [vmem:[#allocation14 + $0x298] sm:$0x3]
    %v2104 = vld [vmem:[#allocation14 + $0x2a0] sm:$0x3]
    %v2105 = vld [vmem:[#allocation14 + $0x2a8] sm:$0x3]
    %v2106 = vld [vmem:[#allocation14 + $0x2b0] sm:$0x3]
    %v2107 = vld [vmem:[#allocation14 + $0x2b8] sm:$0x3]
    %v2108 = vld [vmem:[#allocation14 + $0x2c0] sm:$0x3]
    %v2109 = vld [vmem:[#allocation14 + $0x2c8] sm:$0x3]
    %v2110 = vld [vmem:[#allocation14 + $0x2d0] sm:$0x3]
    %v2111 = vld [vmem:[#allocation14 + $0x2d8] sm:$0x3]
    %v2112 = vld [vmem:[#allocation14 + $0x2e0] sm:$0x3]
    %v2113 = vld [vmem:[#allocation14 + $0x2e8] sm:$0x3]
    %v2114 = vld [vmem:[#allocation14 + $0x2f0] sm:$0x3]
    %v2115 = vld [vmem:[#allocation14 + $0x2f8] sm:$0x3]
    %v2116 = vld [vmem:[#allocation14 + $0x300] sm:$0x3]
    %v2117 = vld [vmem:[#allocation14 + $0x308] sm:$0x3]
    %v2118 = vld [vmem:[#allocation14 + $0x310] sm:$0x3]
    %v2119 = vld [vmem:[#allocation14 + $0x318] sm:$0x3]
    %v2120 = vld [vmem:[#allocation14 + $0x320] sm:$0x3]
    %v2121 = vld [vmem:[#allocation14 + $0x328] sm:$0x3]
    %v2122 = vld [vmem:[#allocation14 + $0x330] sm:$0x3]
    %v2123 = vld [vmem:[#allocation14 + $0x338] sm:$0x3]
    %v2124 = vld [vmem:[#allocation14 + $0x340] sm:$0x3]
    %v2125 = vld [vmem:[#allocation14 + $0x348] sm:$0x3]
    %v2126 = vld [vmem:[#allocation14 + $0x350] sm:$0x3]
    %v2127 = vld [vmem:[#allocation14 + $0x358] sm:$0x3]
    %v2128 = vld [vmem:[#allocation14 + $0x360] sm:$0x3]
    %v2129 = vld [vmem:[#allocation14 + $0x368] sm:$0x3]
    %v2130 = vld [vmem:[#allocation14 + $0x370] sm:$0x3]
    %v2131 = vld [vmem:[#allocation14 + $0x378] sm:$0x3]
    %v2132 = vld [vmem:[#allocation14 + $0x380] sm:$0x3]
    %v2133 = vld [vmem:[#allocation14 + $0x388] sm:$0x3]
    %v2134 = vld [vmem:[#allocation14 + $0x390] sm:$0x3]
    %v2135 = vld [vmem:[#allocation14 + $0x398] sm:$0x3]
    %v2136 = vld [vmem:[#allocation14 + $0x3a0] sm:$0x3]
    %v2137 = vld [vmem:[#allocation14 + $0x3a8] sm:$0x3]
    %v2138 = vld [vmem:[#allocation14 + $0x3b0] sm:$0x3]
    %v2139 = vld [vmem:[#allocation14 + $0x3b8] sm:$0x3]
    %v2140 = vld [vmem:[#allocation14 + $0x3c0] sm:$0x3]
    %v2141 = vld [vmem:[#allocation14 + $0x3c8] sm:$0x3]
    %v2142 = vld [vmem:[#allocation14 + $0x3d0] sm:$0x3]
    %v2143 = vld [vmem:[#allocation14 + $0x3d8] sm:$0x3]
    %v2144 = vld [vmem:[#allocation14 + $0x3e0] sm:$0x3]
    %v2145 = vld [vmem:[#allocation14 + $0x3e8] sm:$0x3]
    %v2146 = vld [vmem:[#allocation14 + $0x3f0] sm:$0x3]
    %v2147 = vld [vmem:[#allocation14 + $0x3f8] sm:$0x3]
    %v2149 = vsel %vm234, %v2084, 0
    %v2152 = vsel %vm234, %v2085, 0
    %v2155 = vsel %vm234, %v2086, 0
    %v2158 = vsel %vm234, %v2087, 0
    %v2161 = vsel %vm234, %v2088, 0
    %v2164 = vsel %vm234, %v2089, 0
    %v2167 = vsel %vm234, %v2090, 0
    %v2170 = vsel %vm234, %v2091, 0
    %v2173 = vsel %vm234, %v2092, 0
    %v2176 = vsel %vm234, %v2093, 0
    %v2179 = vsel %vm234, %v2094, 0
    %v2182 = vsel %vm234, %v2095, 0
    %v2185 = vsel %vm234, %v2096, 0
    %v2188 = vsel %vm234, %v2097, 0
    %v2191 = vsel %vm234, %v2098, 0
    %v2194 = vsel %vm234, %v2099, 0
    %v2197 = vsel %vm234, %v2100, 0
    %v2200 = vsel %vm234, %v2101, 0
    %v2203 = vsel %vm234, %v2102, 0
    %v2206 = vsel %vm234, %v2103, 0
    %v2209 = vsel %vm234, %v2104, 0
    %v2212 = vsel %vm234, %v2105, 0
    %v2215 = vsel %vm234, %v2106, 0
    %v2218 = vsel %vm234, %v2107, 0
    %v2221 = vsel %vm234, %v2108, 0
    %v2224 = vsel %vm234, %v2109, 0
    %v2227 = vsel %vm234, %v2110, 0
    %v2230 = vsel %vm234, %v2111, 0
    %v2233 = vsel %vm234, %v2112, 0
    %v2236 = vsel %vm234, %v2113, 0
    %v2239 = vsel %vm234, %v2114, 0
    %v2242 = vsel %vm234, %v2115, 0
    %v2245 = vsel %vm234, %v2116, 0
    %v2248 = vsel %vm234, %v2117, 0
    %v2251 = vsel %vm234, %v2118, 0
    %v2254 = vsel %vm234, %v2119, 0
    %v2257 = vsel %vm234, %v2120, 0
    %v2260 = vsel %vm234, %v2121, 0
    %v2263 = vsel %vm234, %v2122, 0
    %v2266 = vsel %vm234, %v2123, 0
    %v2269 = vsel %vm234, %v2124, 0
    %v2272 = vsel %vm234, %v2125, 0
    %v2275 = vsel %vm234, %v2126, 0
    %v2278 = vsel %vm234, %v2127, 0
    %v2281 = vsel %vm234, %v2128, 0
    %v2284 = vsel %vm234, %v2129, 0
    %v2287 = vsel %vm234, %v2130, 0
    %v2290 = vsel %vm234, %v2131, 0
    %v2293 = vsel %vm234, %v2132, 0
    %v2296 = vsel %vm234, %v2133, 0
    %v2299 = vsel %vm234, %v2134, 0
    %v2302 = vsel %vm234, %v2135, 0
    %v2305 = vsel %vm234, %v2136, 0
    %v2308 = vsel %vm234, %v2137, 0
    %v2311 = vsel %vm234, %v2138, 0
    %v2314 = vsel %vm234, %v2139, 0
    %v2317 = vsel %vm234, %v2140, 0
    %v2320 = vsel %vm234, %v2141, 0
    %v2323 = vsel %vm234, %v2142, 0
    %v2326 = vsel %vm234, %v2143, 0
    %v2329 = vsel %vm234, %v2144, 0
    %v2332 = vsel %vm234, %v2145, 0
    %v2335 = vsel %vm234, %v2146, 0
    %v2338 = vsel %vm234, %v2147, 0
    %2340 = vmatpush.msra.mxu0 0.0
    %2341 = vmatpush.msra.mxu0 0.0
    %2342 = vmatpush.msra.mxu0 0.0
    %2343 = vmatpush.msra.mxu0 0.0
    %2344 = vmatpush.msra.mxu0 0.0
    %2345 = vmatpush.msra.mxu0 0.0
    %2346 = vmatpush.msra.mxu0 0.0
    %2347 = vmatpush.msra.mxu0 0.0
    %2348 = vmatpush.msra.mxu0 0.0
    %2349 = vmatpush.msra.mxu0 0.0
    %2350 = vmatpush.msra.mxu0 0.0
    %2351 = vmatpush.msra.mxu0 0.0
    %2352 = vmatpush.msra.mxu0 0.0
    %2353 = vmatpush.msra.mxu0 0.0
    %2354 = vmatpush.msra.mxu0 %v2149
    %2355 = vmatpush.msra.mxu0 %v2020
    %2356 = vmatmul.f32.gmra.mxu0 %v405
    %v2357 = vpop.f32.mrf.mxu0
    %v2358 = vadd.f32 0.0, %v2357
    %2359 = vmatmul.f32.gmra.mxu0 %v408
    %v2360 = vpop.f32.mrf.mxu0
    %v2361 = vadd.f32 0.0, %v2360
    %2362 = vdwg.mxu0
    %2363 = vmatpush.msra.mxu0 0.0
    %2364 = vmatpush.msra.mxu0 0.0
    %2365 = vmatpush.msra.mxu0 0.0
    %2366 = vmatpush.msra.mxu0 0.0
    %2367 = vmatpush.msra.mxu0 0.0
    %2368 = vmatpush.msra.mxu0 0.0
    %2369 = vmatpush.msra.mxu0 0.0
    %2370 = vmatpush.msra.mxu0 0.0
    %2371 = vmatpush.msra.mxu0 0.0
    %2372 = vmatpush.msra.mxu0 0.0
    %2373 = vmatpush.msra.mxu0 0.0
    %2374 = vmatpush.msra.mxu0 0.0
    %2375 = vmatpush.msra.mxu0 0.0
    %2376 = vmatpush.msra.mxu0 0.0
    %2377 = vmatpush.msra.mxu0 %v2152
    %2378 = vmatpush.msra.mxu0 %v2021
    %2379 = vmatmul.f32.gmra.mxu0 %v405
    %v2380 = vpop.f32.mrf.mxu0
    %v2381 = vadd.f32 0.0, %v2380
    %2382 = vmatmul.f32.gmra.mxu0 %v408
    %v2383 = vpop.f32.mrf.mxu0
    %v2384 = vadd.f32 0.0, %v2383
    %2385 = vdwg.mxu0
    %2386 = vmatpush.msra.mxu0 0.0
    %2387 = vmatpush.msra.mxu0 0.0
    %2388 = vmatpush.msra.mxu0 0.0
    %2389 = vmatpush.msra.mxu0 0.0
    %2390 = vmatpush.msra.mxu0 0.0
    %2391 = vmatpush.msra.mxu0 0.0
    %2392 = vmatpush.msra.mxu0 0.0
    %2393 = vmatpush.msra.mxu0 0.0
    %2394 = vmatpush.msra.mxu0 0.0
    %2395 = vmatpush.msra.mxu0 0.0
    %2396 = vmatpush.msra.mxu0 0.0
    %2397 = vmatpush.msra.mxu0 0.0
    %2398 = vmatpush.msra.mxu0 0.0
    %2399 = vmatpush.msra.mxu0 0.0
    %2400 = vmatpush.msra.mxu0 %v2155
    %2401 = vmatpush.msra.mxu0 %v2022
    %2402 = vmatmul.f32.gmra.mxu0 %v405
    %v2403 = vpop.f32.mrf.mxu0
    %v2404 = vadd.f32 0.0, %v2403
    %2405 = vmatmul.f32.gmra.mxu0 %v408
    %v2406 = vpop.f32.mrf.mxu0
    %v2407 = vadd.f32 0.0, %v2406
    %2408 = vdwg.mxu0
    %2409 = vmatpush.msra.mxu0 0.0
    %2410 = vmatpush.msra.mxu0 0.0
    %2411 = vmatpush.msra.mxu0 0.0
    %2412 = vmatpush.msra.mxu0 0.0
    %2413 = vmatpush.msra.mxu0 0.0
    %2414 = vmatpush.msra.mxu0 0.0
    %2415 = vmatpush.msra.mxu0 0.0
    %2416 = vmatpush.msra.mxu0 0.0
    %2417 = vmatpush.msra.mxu0 0.0
    %2418 = vmatpush.msra.mxu0 0.0
    %2419 = vmatpush.msra.mxu0 0.0
    %2420 = vmatpush.msra.mxu0 0.0
    %2421 = vmatpush.msra.mxu0 0.0
    %2422 = vmatpush.msra.mxu0 0.0
    %2423 = vmatpush.msra.mxu0 %v2158
    %2424 = vmatpush.msra.mxu0 %v2023
    %2425 = vmatmul.f32.gmra.mxu0 %v405
    %v2426 = vpop.f32.mrf.mxu0
    %v2427 = vadd.f32 0.0, %v2426
    %2428 = vmatmul.f32.gmra.mxu0 %v408
    %v2429 = vpop.f32.mrf.mxu0
    %v2430 = vadd.f32 0.0, %v2429
    %2431 = vdwg.mxu0
    %2432 = vmatpush.msra.mxu0 0.0
    %2433 = vmatpush.msra.mxu0 0.0
    %2434 = vmatpush.msra.mxu0 0.0
    %2435 = vmatpush.msra.mxu0 0.0
    %2436 = vmatpush.msra.mxu0 0.0
    %2437 = vmatpush.msra.mxu0 0.0
    %2438 = vmatpush.msra.mxu0 0.0
    %2439 = vmatpush.msra.mxu0 0.0
    %2440 = vmatpush.msra.mxu0 0.0
    %2441 = vmatpush.msra.mxu0 0.0
    %2442 = vmatpush.msra.mxu0 0.0
    %2443 = vmatpush.msra.mxu0 0.0
    %2444 = vmatpush.msra.mxu0 0.0
    %2445 = vmatpush.msra.mxu0 0.0
    %2446 = vmatpush.msra.mxu0 %v2161
    %2447 = vmatpush.msra.mxu0 %v2024
    %2448 = vmatmul.f32.gmra.mxu0 %v405
    %v2449 = vpop.f32.mrf.mxu0
    %v2450 = vadd.f32 0.0, %v2449
    %2451 = vmatmul.f32.gmra.mxu0 %v408
    %v2452 = vpop.f32.mrf.mxu0
    %v2453 = vadd.f32 0.0, %v2452
    %2454 = vdwg.mxu0
    %2455 = vmatpush.msra.mxu0 0.0
    %2456 = vmatpush.msra.mxu0 0.0
    %2457 = vmatpush.msra.mxu0 0.0
    %2458 = vmatpush.msra.mxu0 0.0
    %2459 = vmatpush.msra.mxu0 0.0
    %2460 = vmatpush.msra.mxu0 0.0
    %2461 = vmatpush.msra.mxu0 0.0
    %2462 = vmatpush.msra.mxu0 0.0
    %2463 = vmatpush.msra.mxu0 0.0
    %2464 = vmatpush.msra.mxu0 0.0
    %2465 = vmatpush.msra.mxu0 0.0
    %2466 = vmatpush.msra.mxu0 0.0
    %2467 = vmatpush.msra.mxu0 0.0
    %2468 = vmatpush.msra.mxu0 0.0
    %2469 = vmatpush.msra.mxu0 %v2164
    %2470 = vmatpush.msra.mxu0 %v2025
    %2471 = vmatmul.f32.gmra.mxu0 %v405
    %v2472 = vpop.f32.mrf.mxu0
    %v2473 = vadd.f32 0.0, %v2472
    %2474 = vmatmul.f32.gmra.mxu0 %v408
    %v2475 = vpop.f32.mrf.mxu0
    %v2476 = vadd.f32 0.0, %v2475
    %2477 = vdwg.mxu0
    %2478 = vmatpush.msra.mxu0 0.0
    %2479 = vmatpush.msra.mxu0 0.0
    %2480 = vmatpush.msra.mxu0 0.0
    %2481 = vmatpush.msra.mxu0 0.0
    %2482 = vmatpush.msra.mxu0 0.0
    %2483 = vmatpush.msra.mxu0 0.0
    %2484 = vmatpush.msra.mxu0 0.0
    %2485 = vmatpush.msra.mxu0 0.0
    %2486 = vmatpush.msra.mxu0 0.0
    %2487 = vmatpush.msra.mxu0 0.0
    %2488 = vmatpush.msra.mxu0 0.0
    %2489 = vmatpush.msra.mxu0 0.0
    %2490 = vmatpush.msra.mxu0 0.0
    %2491 = vmatpush.msra.mxu0 0.0
    %2492 = vmatpush.msra.mxu0 %v2167
    %2493 = vmatpush.msra.mxu0 %v2026
    %2494 = vmatmul.f32.gmra.mxu0 %v405
    %v2495 = vpop.f32.mrf.mxu0
    %v2496 = vadd.f32 0.0, %v2495
    %2497 = vmatmul.f32.gmra.mxu0 %v408
    %v2498 = vpop.f32.mrf.mxu0
    %v2499 = vadd.f32 0.0, %v2498
    %2500 = vdwg.mxu0
    %2501 = vmatpush.msra.mxu0 0.0
    %2502 = vmatpush.msra.mxu0 0.0
    %2503 = vmatpush.msra.mxu0 0.0
    %2504 = vmatpush.msra.mxu0 0.0
    %2505 = vmatpush.msra.mxu0 0.0
    %2506 = vmatpush.msra.mxu0 0.0
    %2507 = vmatpush.msra.mxu0 0.0
    %2508 = vmatpush.msra.mxu0 0.0
    %2509 = vmatpush.msra.mxu0 0.0
    %2510 = vmatpush.msra.mxu0 0.0
    %2511 = vmatpush.msra.mxu0 0.0
    %2512 = vmatpush.msra.mxu0 0.0
    %2513 = vmatpush.msra.mxu0 0.0
    %2514 = vmatpush.msra.mxu0 0.0
    %2515 = vmatpush.msra.mxu0 %v2170
    %2516 = vmatpush.msra.mxu0 %v2027
    %2517 = vmatmul.f32.gmra.mxu0 %v405
    %v2518 = vpop.f32.mrf.mxu0
    %v2519 = vadd.f32 0.0, %v2518
    %2520 = vmatmul.f32.gmra.mxu0 %v408
    %v2521 = vpop.f32.mrf.mxu0
    %v2522 = vadd.f32 0.0, %v2521
    %2523 = vdwg.mxu0
    %2524 = vmatpush.msra.mxu0 0.0
    %2525 = vmatpush.msra.mxu0 0.0
    %2526 = vmatpush.msra.mxu0 0.0
    %2527 = vmatpush.msra.mxu0 0.0
    %2528 = vmatpush.msra.mxu0 0.0
    %2529 = vmatpush.msra.mxu0 0.0
    %2530 = vmatpush.msra.mxu0 0.0
    %2531 = vmatpush.msra.mxu0 0.0
    %2532 = vmatpush.msra.mxu0 0.0
    %2533 = vmatpush.msra.mxu0 0.0
    %2534 = vmatpush.msra.mxu0 0.0
    %2535 = vmatpush.msra.mxu0 0.0
    %2536 = vmatpush.msra.mxu0 0.0
    %2537 = vmatpush.msra.mxu0 0.0
    %2538 = vmatpush.msra.mxu0 %v2173
    %2539 = vmatpush.msra.mxu0 %v2028
    %2540 = vmatmul.f32.gmra.mxu0 %v405
    %v2541 = vpop.f32.mrf.mxu0
    %v2542 = vadd.f32 0.0, %v2541
    %2543 = vmatmul.f32.gmra.mxu0 %v408
    %v2544 = vpop.f32.mrf.mxu0
    %v2545 = vadd.f32 0.0, %v2544
    %2546 = vdwg.mxu0
    %2547 = vmatpush.msra.mxu0 0.0
    %2548 = vmatpush.msra.mxu0 0.0
    %2549 = vmatpush.msra.mxu0 0.0
    %2550 = vmatpush.msra.mxu0 0.0
    %2551 = vmatpush.msra.mxu0 0.0
    %2552 = vmatpush.msra.mxu0 0.0
    %2553 = vmatpush.msra.mxu0 0.0
    %2554 = vmatpush.msra.mxu0 0.0
    %2555 = vmatpush.msra.mxu0 0.0
    %2556 = vmatpush.msra.mxu0 0.0
    %2557 = vmatpush.msra.mxu0 0.0
    %2558 = vmatpush.msra.mxu0 0.0
    %2559 = vmatpush.msra.mxu0 0.0
    %2560 = vmatpush.msra.mxu0 0.0
    %2561 = vmatpush.msra.mxu0 %v2176
    %2562 = vmatpush.msra.mxu0 %v2029
    %2563 = vmatmul.f32.gmra.mxu0 %v405
    %v2564 = vpop.f32.mrf.mxu0
    %v2565 = vadd.f32 0.0, %v2564
    %2566 = vmatmul.f32.gmra.mxu0 %v408
    %v2567 = vpop.f32.mrf.mxu0
    %v2568 = vadd.f32 0.0, %v2567
    %2569 = vdwg.mxu0
    %2570 = vmatpush.msra.mxu0 0.0
    %2571 = vmatpush.msra.mxu0 0.0
    %2572 = vmatpush.msra.mxu0 0.0
    %2573 = vmatpush.msra.mxu0 0.0
    %2574 = vmatpush.msra.mxu0 0.0
    %2575 = vmatpush.msra.mxu0 0.0
    %2576 = vmatpush.msra.mxu0 0.0
    %2577 = vmatpush.msra.mxu0 0.0
    %2578 = vmatpush.msra.mxu0 0.0
    %2579 = vmatpush.msra.mxu0 0.0
    %2580 = vmatpush.msra.mxu0 0.0
    %2581 = vmatpush.msra.mxu0 0.0
    %2582 = vmatpush.msra.mxu0 0.0
    %2583 = vmatpush.msra.mxu0 0.0
    %2584 = vmatpush.msra.mxu0 %v2179
    %2585 = vmatpush.msra.mxu0 %v2030
    %2586 = vmatmul.f32.gmra.mxu0 %v405
    %v2587 = vpop.f32.mrf.mxu0
    %v2588 = vadd.f32 0.0, %v2587
    %2589 = vmatmul.f32.gmra.mxu0 %v408
    %v2590 = vpop.f32.mrf.mxu0
    %v2591 = vadd.f32 0.0, %v2590
    %2592 = vdwg.mxu0
    %2593 = vmatpush.msra.mxu0 0.0
    %2594 = vmatpush.msra.mxu0 0.0
    %2595 = vmatpush.msra.mxu0 0.0
    %2596 = vmatpush.msra.mxu0 0.0
    %2597 = vmatpush.msra.mxu0 0.0
    %2598 = vmatpush.msra.mxu0 0.0
    %2599 = vmatpush.msra.mxu0 0.0
    %2600 = vmatpush.msra.mxu0 0.0
    %2601 = vmatpush.msra.mxu0 0.0
    %2602 = vmatpush.msra.mxu0 0.0
    %2603 = vmatpush.msra.mxu0 0.0
    %2604 = vmatpush.msra.mxu0 0.0
    %2605 = vmatpush.msra.mxu0 0.0
    %2606 = vmatpush.msra.mxu0 0.0
    %2607 = vmatpush.msra.mxu0 %v2182
    %2608 = vmatpush.msra.mxu0 %v2031
    %2609 = vmatmul.f32.gmra.mxu0 %v405
    %v2610 = vpop.f32.mrf.mxu0
    %v2611 = vadd.f32 0.0, %v2610
    %2612 = vmatmul.f32.gmra.mxu0 %v408
    %v2613 = vpop.f32.mrf.mxu0
    %v2614 = vadd.f32 0.0, %v2613
    %2615 = vdwg.mxu0
    %2616 = vmatpush.msra.mxu0 0.0
    %2617 = vmatpush.msra.mxu0 0.0
    %2618 = vmatpush.msra.mxu0 0.0
    %2619 = vmatpush.msra.mxu0 0.0
    %2620 = vmatpush.msra.mxu0 0.0
    %2621 = vmatpush.msra.mxu0 0.0
    %2622 = vmatpush.msra.mxu0 0.0
    %2623 = vmatpush.msra.mxu0 0.0
    %2624 = vmatpush.msra.mxu0 0.0
    %2625 = vmatpush.msra.mxu0 0.0
    %2626 = vmatpush.msra.mxu0 0.0
    %2627 = vmatpush.msra.mxu0 0.0
    %2628 = vmatpush.msra.mxu0 0.0
    %2629 = vmatpush.msra.mxu0 0.0
    %2630 = vmatpush.msra.mxu0 %v2185
    %2631 = vmatpush.msra.mxu0 %v2032
    %2632 = vmatmul.f32.gmra.mxu0 %v405
    %v2633 = vpop.f32.mrf.mxu0
    %v2634 = vadd.f32 0.0, %v2633
    %2635 = vmatmul.f32.gmra.mxu0 %v408
    %v2636 = vpop.f32.mrf.mxu0
    %v2637 = vadd.f32 0.0, %v2636
    %2638 = vdwg.mxu0
    %2639 = vmatpush.msra.mxu0 0.0
    %2640 = vmatpush.msra.mxu0 0.0
    %2641 = vmatpush.msra.mxu0 0.0
    %2642 = vmatpush.msra.mxu0 0.0
    %2643 = vmatpush.msra.mxu0 0.0
    %2644 = vmatpush.msra.mxu0 0.0
    %2645 = vmatpush.msra.mxu0 0.0
    %2646 = vmatpush.msra.mxu0 0.0
    %2647 = vmatpush.msra.mxu0 0.0
    %2648 = vmatpush.msra.mxu0 0.0
    %2649 = vmatpush.msra.mxu0 0.0
    %2650 = vmatpush.msra.mxu0 0.0
    %2651 = vmatpush.msra.mxu0 0.0
    %2652 = vmatpush.msra.mxu0 0.0
    %2653 = vmatpush.msra.mxu0 %v2188
    %2654 = vmatpush.msra.mxu0 %v2033
    %2655 = vmatmul.f32.gmra.mxu0 %v405
    %v2656 = vpop.f32.mrf.mxu0
    %v2657 = vadd.f32 0.0, %v2656
    %2658 = vmatmul.f32.gmra.mxu0 %v408
    %v2659 = vpop.f32.mrf.mxu0
    %v2660 = vadd.f32 0.0, %v2659
    %2661 = vdwg.mxu0
    %2662 = vmatpush.msra.mxu0 0.0
    %2663 = vmatpush.msra.mxu0 0.0
    %2664 = vmatpush.msra.mxu0 0.0
    %2665 = vmatpush.msra.mxu0 0.0
    %2666 = vmatpush.msra.mxu0 0.0
    %2667 = vmatpush.msra.mxu0 0.0
    %2668 = vmatpush.msra.mxu0 0.0
    %2669 = vmatpush.msra.mxu0 0.0
    %2670 = vmatpush.msra.mxu0 0.0
    %2671 = vmatpush.msra.mxu0 0.0
    %2672 = vmatpush.msra.mxu0 0.0
    %2673 = vmatpush.msra.mxu0 0.0
    %2674 = vmatpush.msra.mxu0 0.0
    %2675 = vmatpush.msra.mxu0 0.0
    %2676 = vmatpush.msra.mxu0 %v2191
    %2677 = vmatpush.msra.mxu0 %v2034
    %2678 = vmatmul.f32.gmra.mxu0 %v405
    %v2679 = vpop.f32.mrf.mxu0
    %v2680 = vadd.f32 0.0, %v2679
    %2681 = vmatmul.f32.gmra.mxu0 %v408
    %v2682 = vpop.f32.mrf.mxu0
    %v2683 = vadd.f32 0.0, %v2682
    %2684 = vdwg.mxu0
    %2685 = vmatpush.msra.mxu0 0.0
    %2686 = vmatpush.msra.mxu0 0.0
    %2687 = vmatpush.msra.mxu0 0.0
    %2688 = vmatpush.msra.mxu0 0.0
    %2689 = vmatpush.msra.mxu0 0.0
    %2690 = vmatpush.msra.mxu0 0.0
    %2691 = vmatpush.msra.mxu0 0.0
    %2692 = vmatpush.msra.mxu0 0.0
    %2693 = vmatpush.msra.mxu0 0.0
    %2694 = vmatpush.msra.mxu0 0.0
    %2695 = vmatpush.msra.mxu0 0.0
    %2696 = vmatpush.msra.mxu0 0.0
    %2697 = vmatpush.msra.mxu0 0.0
    %2698 = vmatpush.msra.mxu0 0.0
    %2699 = vmatpush.msra.mxu0 %v2194
    %2700 = vmatpush.msra.mxu0 %v2035
    %2701 = vmatmul.f32.gmra.mxu0 %v405
    %v2702 = vpop.f32.mrf.mxu0
    %v2703 = vadd.f32 0.0, %v2702
    %2704 = vmatmul.f32.gmra.mxu0 %v408
    %v2705 = vpop.f32.mrf.mxu0
    %v2706 = vadd.f32 0.0, %v2705
    %2707 = vdwg.mxu0
    %2708 = vmatpush.msra.mxu0 0.0
    %2709 = vmatpush.msra.mxu0 0.0
    %2710 = vmatpush.msra.mxu0 0.0
    %2711 = vmatpush.msra.mxu0 0.0
    %2712 = vmatpush.msra.mxu0 0.0
    %2713 = vmatpush.msra.mxu0 0.0
    %2714 = vmatpush.msra.mxu0 0.0
    %2715 = vmatpush.msra.mxu0 0.0
    %2716 = vmatpush.msra.mxu0 0.0
    %2717 = vmatpush.msra.mxu0 0.0
    %2718 = vmatpush.msra.mxu0 0.0
    %2719 = vmatpush.msra.mxu0 0.0
    %2720 = vmatpush.msra.mxu0 0.0
    %2721 = vmatpush.msra.mxu0 0.0
    %2722 = vmatpush.msra.mxu0 %v2197
    %2723 = vmatpush.msra.mxu0 %v2036
    %2724 = vmatmul.f32.gmra.mxu0 %v405
    %v2725 = vpop.f32.mrf.mxu0
    %v2726 = vadd.f32 0.0, %v2725
    %2727 = vmatmul.f32.gmra.mxu0 %v408
    %v2728 = vpop.f32.mrf.mxu0
    %v2729 = vadd.f32 0.0, %v2728
    %2730 = vdwg.mxu0
    %2731 = vmatpush.msra.mxu0 0.0
    %2732 = vmatpush.msra.mxu0 0.0
    %2733 = vmatpush.msra.mxu0 0.0
    %2734 = vmatpush.msra.mxu0 0.0
    %2735 = vmatpush.msra.mxu0 0.0
    %2736 = vmatpush.msra.mxu0 0.0
    %2737 = vmatpush.msra.mxu0 0.0
    %2738 = vmatpush.msra.mxu0 0.0
    %2739 = vmatpush.msra.mxu0 0.0
    %2740 = vmatpush.msra.mxu0 0.0
    %2741 = vmatpush.msra.mxu0 0.0
    %2742 = vmatpush.msra.mxu0 0.0
    %2743 = vmatpush.msra.mxu0 0.0
    %2744 = vmatpush.msra.mxu0 0.0
    %2745 = vmatpush.msra.mxu0 %v2200
    %2746 = vmatpush.msra.mxu0 %v2037
    %2747 = vmatmul.f32.gmra.mxu0 %v405
    %v2748 = vpop.f32.mrf.mxu0
    %v2749 = vadd.f32 0.0, %v2748
    %2750 = vmatmul.f32.gmra.mxu0 %v408
    %v2751 = vpop.f32.mrf.mxu0
    %v2752 = vadd.f32 0.0, %v2751
    %2753 = vdwg.mxu0
    %2754 = vmatpush.msra.mxu0 0.0
    %2755 = vmatpush.msra.mxu0 0.0
    %2756 = vmatpush.msra.mxu0 0.0
    %2757 = vmatpush.msra.mxu0 0.0
    %2758 = vmatpush.msra.mxu0 0.0
    %2759 = vmatpush.msra.mxu0 0.0
    %2760 = vmatpush.msra.mxu0 0.0
    %2761 = vmatpush.msra.mxu0 0.0
    %2762 = vmatpush.msra.mxu0 0.0
    %2763 = vmatpush.msra.mxu0 0.0
    %2764 = vmatpush.msra.mxu0 0.0
    %2765 = vmatpush.msra.mxu0 0.0
    %2766 = vmatpush.msra.mxu0 0.0
    %2767 = vmatpush.msra.mxu0 0.0
    %2768 = vmatpush.msra.mxu0 %v2203
    %2769 = vmatpush.msra.mxu0 %v2038
    %2770 = vmatmul.f32.gmra.mxu0 %v405
    %v2771 = vpop.f32.mrf.mxu0
    %v2772 = vadd.f32 0.0, %v2771
    %2773 = vmatmul.f32.gmra.mxu0 %v408
    %v2774 = vpop.f32.mrf.mxu0
    %v2775 = vadd.f32 0.0, %v2774
    %2776 = vdwg.mxu0
    %2777 = vmatpush.msra.mxu0 0.0
    %2778 = vmatpush.msra.mxu0 0.0
    %2779 = vmatpush.msra.mxu0 0.0
    %2780 = vmatpush.msra.mxu0 0.0
    %2781 = vmatpush.msra.mxu0 0.0
    %2782 = vmatpush.msra.mxu0 0.0
    %2783 = vmatpush.msra.mxu0 0.0
    %2784 = vmatpush.msra.mxu0 0.0
    %2785 = vmatpush.msra.mxu0 0.0
    %2786 = vmatpush.msra.mxu0 0.0
    %2787 = vmatpush.msra.mxu0 0.0
    %2788 = vmatpush.msra.mxu0 0.0
    %2789 = vmatpush.msra.mxu0 0.0
    %2790 = vmatpush.msra.mxu0 0.0
    %2791 = vmatpush.msra.mxu0 %v2206
    %2792 = vmatpush.msra.mxu0 %v2039
    %2793 = vmatmul.f32.gmra.mxu0 %v405
    %v2794 = vpop.f32.mrf.mxu0
    %v2795 = vadd.f32 0.0, %v2794
    %2796 = vmatmul.f32.gmra.mxu0 %v408
    %v2797 = vpop.f32.mrf.mxu0
    %v2798 = vadd.f32 0.0, %v2797
    %2799 = vdwg.mxu0
    %2800 = vmatpush.msra.mxu0 0.0
    %2801 = vmatpush.msra.mxu0 0.0
    %2802 = vmatpush.msra.mxu0 0.0
    %2803 = vmatpush.msra.mxu0 0.0
    %2804 = vmatpush.msra.mxu0 0.0
    %2805 = vmatpush.msra.mxu0 0.0
    %2806 = vmatpush.msra.mxu0 0.0
    %2807 = vmatpush.msra.mxu0 0.0
    %2808 = vmatpush.msra.mxu0 0.0
    %2809 = vmatpush.msra.mxu0 0.0
    %2810 = vmatpush.msra.mxu0 0.0
    %2811 = vmatpush.msra.mxu0 0.0
    %2812 = vmatpush.msra.mxu0 0.0
    %2813 = vmatpush.msra.mxu0 0.0
    %2814 = vmatpush.msra.mxu0 %v2209
    %2815 = vmatpush.msra.mxu0 %v2040
    %2816 = vmatmul.f32.gmra.mxu0 %v405
    %v2817 = vpop.f32.mrf.mxu0
    %v2818 = vadd.f32 0.0, %v2817
    %2819 = vmatmul.f32.gmra.mxu0 %v408
    %v2820 = vpop.f32.mrf.mxu0
    %v2821 = vadd.f32 0.0, %v2820
    %2822 = vdwg.mxu0
    %2823 = vmatpush.msra.mxu0 0.0
    %2824 = vmatpush.msra.mxu0 0.0
    %2825 = vmatpush.msra.mxu0 0.0
    %2826 = vmatpush.msra.mxu0 0.0
    %2827 = vmatpush.msra.mxu0 0.0
    %2828 = vmatpush.msra.mxu0 0.0
    %2829 = vmatpush.msra.mxu0 0.0
    %2830 = vmatpush.msra.mxu0 0.0
    %2831 = vmatpush.msra.mxu0 0.0
    %2832 = vmatpush.msra.mxu0 0.0
    %2833 = vmatpush.msra.mxu0 0.0
    %2834 = vmatpush.msra.mxu0 0.0
    %2835 = vmatpush.msra.mxu0 0.0
    %2836 = vmatpush.msra.mxu0 0.0
    %2837 = vmatpush.msra.mxu0 %v2212
    %2838 = vmatpush.msra.mxu0 %v2041
    %2839 = vmatmul.f32.gmra.mxu0 %v405
    %v2840 = vpop.f32.mrf.mxu0
    %v2841 = vadd.f32 0.0, %v2840
    %2842 = vmatmul.f32.gmra.mxu0 %v408
    %v2843 = vpop.f32.mrf.mxu0
    %v2844 = vadd.f32 0.0, %v2843
    %2845 = vdwg.mxu0
    %2846 = vmatpush.msra.mxu0 0.0
    %2847 = vmatpush.msra.mxu0 0.0
    %2848 = vmatpush.msra.mxu0 0.0
    %2849 = vmatpush.msra.mxu0 0.0
    %2850 = vmatpush.msra.mxu0 0.0
    %2851 = vmatpush.msra.mxu0 0.0
    %2852 = vmatpush.msra.mxu0 0.0
    %2853 = vmatpush.msra.mxu0 0.0
    %2854 = vmatpush.msra.mxu0 0.0
    %2855 = vmatpush.msra.mxu0 0.0
    %2856 = vmatpush.msra.mxu0 0.0
    %2857 = vmatpush.msra.mxu0 0.0
    %2858 = vmatpush.msra.mxu0 0.0
    %2859 = vmatpush.msra.mxu0 0.0
    %2860 = vmatpush.msra.mxu0 %v2215
    %2861 = vmatpush.msra.mxu0 %v2042
    %2862 = vmatmul.f32.gmra.mxu0 %v405
    %v2863 = vpop.f32.mrf.mxu0
    %v2864 = vadd.f32 0.0, %v2863
    %2865 = vmatmul.f32.gmra.mxu0 %v408
    %v2866 = vpop.f32.mrf.mxu0
    %v2867 = vadd.f32 0.0, %v2866
    %2868 = vdwg.mxu0
    %2869 = vmatpush.msra.mxu0 0.0
    %2870 = vmatpush.msra.mxu0 0.0
    %2871 = vmatpush.msra.mxu0 0.0
    %2872 = vmatpush.msra.mxu0 0.0
    %2873 = vmatpush.msra.mxu0 0.0
    %2874 = vmatpush.msra.mxu0 0.0
    %2875 = vmatpush.msra.mxu0 0.0
    %2876 = vmatpush.msra.mxu0 0.0
    %2877 = vmatpush.msra.mxu0 0.0
    %2878 = vmatpush.msra.mxu0 0.0
    %2879 = vmatpush.msra.mxu0 0.0
    %2880 = vmatpush.msra.mxu0 0.0
    %2881 = vmatpush.msra.mxu0 0.0
    %2882 = vmatpush.msra.mxu0 0.0
    %2883 = vmatpush.msra.mxu0 %v2218
    %2884 = vmatpush.msra.mxu0 %v2043
    %2885 = vmatmul.f32.gmra.mxu0 %v405
    %v2886 = vpop.f32.mrf.mxu0
    %v2887 = vadd.f32 0.0, %v2886
    %2888 = vmatmul.f32.gmra.mxu0 %v408
    %v2889 = vpop.f32.mrf.mxu0
    %v2890 = vadd.f32 0.0, %v2889
    %2891 = vdwg.mxu0
    %2892 = vmatpush.msra.mxu0 0.0
    %2893 = vmatpush.msra.mxu0 0.0
    %2894 = vmatpush.msra.mxu0 0.0
    %2895 = vmatpush.msra.mxu0 0.0
    %2896 = vmatpush.msra.mxu0 0.0
    %2897 = vmatpush.msra.mxu0 0.0
    %2898 = vmatpush.msra.mxu0 0.0
    %2899 = vmatpush.msra.mxu0 0.0
    %2900 = vmatpush.msra.mxu0 0.0
    %2901 = vmatpush.msra.mxu0 0.0
    %2902 = vmatpush.msra.mxu0 0.0
    %2903 = vmatpush.msra.mxu0 0.0
    %2904 = vmatpush.msra.mxu0 0.0
    %2905 = vmatpush.msra.mxu0 0.0
    %2906 = vmatpush.msra.mxu0 %v2221
    %2907 = vmatpush.msra.mxu0 %v2044
    %2908 = vmatmul.f32.gmra.mxu0 %v405
    %v2909 = vpop.f32.mrf.mxu0
    %v2910 = vadd.f32 0.0, %v2909
    %2911 = vmatmul.f32.gmra.mxu0 %v408
    %v2912 = vpop.f32.mrf.mxu0
    %v2913 = vadd.f32 0.0, %v2912
    %2914 = vdwg.mxu0
    %2915 = vmatpush.msra.mxu0 0.0
    %2916 = vmatpush.msra.mxu0 0.0
    %2917 = vmatpush.msra.mxu0 0.0
    %2918 = vmatpush.msra.mxu0 0.0
    %2919 = vmatpush.msra.mxu0 0.0
    %2920 = vmatpush.msra.mxu0 0.0
    %2921 = vmatpush.msra.mxu0 0.0
    %2922 = vmatpush.msra.mxu0 0.0
    %2923 = vmatpush.msra.mxu0 0.0
    %2924 = vmatpush.msra.mxu0 0.0
    %2925 = vmatpush.msra.mxu0 0.0
    %2926 = vmatpush.msra.mxu0 0.0
    %2927 = vmatpush.msra.mxu0 0.0
    %2928 = vmatpush.msra.mxu0 0.0
    %2929 = vmatpush.msra.mxu0 %v2224
    %2930 = vmatpush.msra.mxu0 %v2045
    %2931 = vmatmul.f32.gmra.mxu0 %v405
    %v2932 = vpop.f32.mrf.mxu0
    %v2933 = vadd.f32 0.0, %v2932
    %2934 = vmatmul.f32.gmra.mxu0 %v408
    %v2935 = vpop.f32.mrf.mxu0
    %v2936 = vadd.f32 0.0, %v2935
    %2937 = vdwg.mxu0
    %2938 = vmatpush.msra.mxu0 0.0
    %2939 = vmatpush.msra.mxu0 0.0
    %2940 = vmatpush.msra.mxu0 0.0
    %2941 = vmatpush.msra.mxu0 0.0
    %2942 = vmatpush.msra.mxu0 0.0
    %2943 = vmatpush.msra.mxu0 0.0
    %2944 = vmatpush.msra.mxu0 0.0
    %2945 = vmatpush.msra.mxu0 0.0
    %2946 = vmatpush.msra.mxu0 0.0
    %2947 = vmatpush.msra.mxu0 0.0
    %2948 = vmatpush.msra.mxu0 0.0
    %2949 = vmatpush.msra.mxu0 0.0
    %2950 = vmatpush.msra.mxu0 0.0
    %2951 = vmatpush.msra.mxu0 0.0
    %2952 = vmatpush.msra.mxu0 %v2227
    %2953 = vmatpush.msra.mxu0 %v2046
    %2954 = vmatmul.f32.gmra.mxu0 %v405
    %v2955 = vpop.f32.mrf.mxu0
    %v2956 = vadd.f32 0.0, %v2955
    %2957 = vmatmul.f32.gmra.mxu0 %v408
    %v2958 = vpop.f32.mrf.mxu0
    %v2959 = vadd.f32 0.0, %v2958
    %2960 = vdwg.mxu0
    %2961 = vmatpush.msra.mxu0 0.0
    %2962 = vmatpush.msra.mxu0 0.0
    %2963 = vmatpush.msra.mxu0 0.0
    %2964 = vmatpush.msra.mxu0 0.0
    %2965 = vmatpush.msra.mxu0 0.0
    %2966 = vmatpush.msra.mxu0 0.0
    %2967 = vmatpush.msra.mxu0 0.0
    %2968 = vmatpush.msra.mxu0 0.0
    %2969 = vmatpush.msra.mxu0 0.0
    %2970 = vmatpush.msra.mxu0 0.0
    %2971 = vmatpush.msra.mxu0 0.0
    %2972 = vmatpush.msra.mxu0 0.0
    %2973 = vmatpush.msra.mxu0 0.0
    %2974 = vmatpush.msra.mxu0 0.0
    %2975 = vmatpush.msra.mxu0 %v2230
    %2976 = vmatpush.msra.mxu0 %v2047
    %2977 = vmatmul.f32.gmra.mxu0 %v405
    %v2978 = vpop.f32.mrf.mxu0
    %v2979 = vadd.f32 0.0, %v2978
    %2980 = vmatmul.f32.gmra.mxu0 %v408
    %v2981 = vpop.f32.mrf.mxu0
    %v2982 = vadd.f32 0.0, %v2981
    %2983 = vdwg.mxu0
    %2984 = vmatpush.msra.mxu0 0.0
    %2985 = vmatpush.msra.mxu0 0.0
    %2986 = vmatpush.msra.mxu0 0.0
    %2987 = vmatpush.msra.mxu0 0.0
    %2988 = vmatpush.msra.mxu0 0.0
    %2989 = vmatpush.msra.mxu0 0.0
    %2990 = vmatpush.msra.mxu0 0.0
    %2991 = vmatpush.msra.mxu0 0.0
    %2992 = vmatpush.msra.mxu0 0.0
    %2993 = vmatpush.msra.mxu0 0.0
    %2994 = vmatpush.msra.mxu0 0.0
    %2995 = vmatpush.msra.mxu0 0.0
    %2996 = vmatpush.msra.mxu0 0.0
    %2997 = vmatpush.msra.mxu0 0.0
    %2998 = vmatpush.msra.mxu0 %v2233
    %2999 = vmatpush.msra.mxu0 %v2048
    %3000 = vmatmul.f32.gmra.mxu0 %v405
    %v3001 = vpop.f32.mrf.mxu0
    %v3002 = vadd.f32 0.0, %v3001
    %3003 = vmatmul.f32.gmra.mxu0 %v408
    %v3004 = vpop.f32.mrf.mxu0
    %v3005 = vadd.f32 0.0, %v3004
    %3006 = vdwg.mxu0
    %3007 = vmatpush.msra.mxu0 0.0
    %3008 = vmatpush.msra.mxu0 0.0
    %3009 = vmatpush.msra.mxu0 0.0
    %3010 = vmatpush.msra.mxu0 0.0
    %3011 = vmatpush.msra.mxu0 0.0
    %3012 = vmatpush.msra.mxu0 0.0
    %3013 = vmatpush.msra.mxu0 0.0
    %3014 = vmatpush.msra.mxu0 0.0
    %3015 = vmatpush.msra.mxu0 0.0
    %3016 = vmatpush.msra.mxu0 0.0
    %3017 = vmatpush.msra.mxu0 0.0
    %3018 = vmatpush.msra.mxu0 0.0
    %3019 = vmatpush.msra.mxu0 0.0
    %3020 = vmatpush.msra.mxu0 0.0
    %3021 = vmatpush.msra.mxu0 %v2236
    %3022 = vmatpush.msra.mxu0 %v2049
    %3023 = vmatmul.f32.gmra.mxu0 %v405
    %v3024 = vpop.f32.mrf.mxu0
    %v3025 = vadd.f32 0.0, %v3024
    %3026 = vmatmul.f32.gmra.mxu0 %v408
    %v3027 = vpop.f32.mrf.mxu0
    %v3028 = vadd.f32 0.0, %v3027
    %3029 = vdwg.mxu0
    %3030 = vmatpush.msra.mxu0 0.0
    %3031 = vmatpush.msra.mxu0 0.0
    %3032 = vmatpush.msra.mxu0 0.0
    %3033 = vmatpush.msra.mxu0 0.0
    %3034 = vmatpush.msra.mxu0 0.0
    %3035 = vmatpush.msra.mxu0 0.0
    %3036 = vmatpush.msra.mxu0 0.0
    %3037 = vmatpush.msra.mxu0 0.0
    %3038 = vmatpush.msra.mxu0 0.0
    %3039 = vmatpush.msra.mxu0 0.0
    %3040 = vmatpush.msra.mxu0 0.0
    %3041 = vmatpush.msra.mxu0 0.0
    %3042 = vmatpush.msra.mxu0 0.0
    %3043 = vmatpush.msra.mxu0 0.0
    %3044 = vmatpush.msra.mxu0 %v2239
    %3045 = vmatpush.msra.mxu0 %v2050
    %3046 = vmatmul.f32.gmra.mxu0 %v405
    %v3047 = vpop.f32.mrf.mxu0
    %v3048 = vadd.f32 0.0, %v3047
    %3049 = vmatmul.f32.gmra.mxu0 %v408
    %v3050 = vpop.f32.mrf.mxu0
    %v3051 = vadd.f32 0.0, %v3050
    %3052 = vdwg.mxu0
    %3053 = vmatpush.msra.mxu0 0.0
    %3054 = vmatpush.msra.mxu0 0.0
    %3055 = vmatpush.msra.mxu0 0.0
    %3056 = vmatpush.msra.mxu0 0.0
    %3057 = vmatpush.msra.mxu0 0.0
    %3058 = vmatpush.msra.mxu0 0.0
    %3059 = vmatpush.msra.mxu0 0.0
    %3060 = vmatpush.msra.mxu0 0.0
    %3061 = vmatpush.msra.mxu0 0.0
    %3062 = vmatpush.msra.mxu0 0.0
    %3063 = vmatpush.msra.mxu0 0.0
    %3064 = vmatpush.msra.mxu0 0.0
    %3065 = vmatpush.msra.mxu0 0.0
    %3066 = vmatpush.msra.mxu0 0.0
    %3067 = vmatpush.msra.mxu0 %v2242
    %3068 = vmatpush.msra.mxu0 %v2051
    %3069 = vmatmul.f32.gmra.mxu0 %v405
    %v3070 = vpop.f32.mrf.mxu0
    %v3071 = vadd.f32 0.0, %v3070
    %3072 = vmatmul.f32.gmra.mxu0 %v408
    %v3073 = vpop.f32.mrf.mxu0
    %v3074 = vadd.f32 0.0, %v3073
    %3075 = vdwg.mxu0
    %3076 = vmatpush.msra.mxu0 0.0
    %3077 = vmatpush.msra.mxu0 0.0
    %3078 = vmatpush.msra.mxu0 0.0
    %3079 = vmatpush.msra.mxu0 0.0
    %3080 = vmatpush.msra.mxu0 0.0
    %3081 = vmatpush.msra.mxu0 0.0
    %3082 = vmatpush.msra.mxu0 0.0
    %3083 = vmatpush.msra.mxu0 0.0
    %3084 = vmatpush.msra.mxu0 0.0
    %3085 = vmatpush.msra.mxu0 0.0
    %3086 = vmatpush.msra.mxu0 0.0
    %3087 = vmatpush.msra.mxu0 0.0
    %3088 = vmatpush.msra.mxu0 0.0
    %3089 = vmatpush.msra.mxu0 0.0
    %3090 = vmatpush.msra.mxu0 %v2245
    %3091 = vmatpush.msra.mxu0 %v2052
    %3092 = vmatmul.f32.gmra.mxu0 %v405
    %v3093 = vpop.f32.mrf.mxu0
    %v3094 = vadd.f32 0.0, %v3093
    %3095 = vmatmul.f32.gmra.mxu0 %v408
    %v3096 = vpop.f32.mrf.mxu0
    %v3097 = vadd.f32 0.0, %v3096
    %3098 = vdwg.mxu0
    %3099 = vmatpush.msra.mxu0 0.0
    %3100 = vmatpush.msra.mxu0 0.0
    %3101 = vmatpush.msra.mxu0 0.0
    %3102 = vmatpush.msra.mxu0 0.0
    %3103 = vmatpush.msra.mxu0 0.0
    %3104 = vmatpush.msra.mxu0 0.0
    %3105 = vmatpush.msra.mxu0 0.0
    %3106 = vmatpush.msra.mxu0 0.0
    %3107 = vmatpush.msra.mxu0 0.0
    %3108 = vmatpush.msra.mxu0 0.0
    %3109 = vmatpush.msra.mxu0 0.0
    %3110 = vmatpush.msra.mxu0 0.0
    %3111 = vmatpush.msra.mxu0 0.0
    %3112 = vmatpush.msra.mxu0 0.0
    %3113 = vmatpush.msra.mxu0 %v2248
    %3114 = vmatpush.msra.mxu0 %v2053
    %3115 = vmatmul.f32.gmra.mxu0 %v405
    %v3116 = vpop.f32.mrf.mxu0
    %v3117 = vadd.f32 0.0, %v3116
    %3118 = vmatmul.f32.gmra.mxu0 %v408
    %v3119 = vpop.f32.mrf.mxu0
    %v3120 = vadd.f32 0.0, %v3119
    %3121 = vdwg.mxu0
    %3122 = vmatpush.msra.mxu0 0.0
    %3123 = vmatpush.msra.mxu0 0.0
    %3124 = vmatpush.msra.mxu0 0.0
    %3125 = vmatpush.msra.mxu0 0.0
    %3126 = vmatpush.msra.mxu0 0.0
    %3127 = vmatpush.msra.mxu0 0.0
    %3128 = vmatpush.msra.mxu0 0.0
    %3129 = vmatpush.msra.mxu0 0.0
    %3130 = vmatpush.msra.mxu0 0.0
    %3131 = vmatpush.msra.mxu0 0.0
    %3132 = vmatpush.msra.mxu0 0.0
    %3133 = vmatpush.msra.mxu0 0.0
    %3134 = vmatpush.msra.mxu0 0.0
    %3135 = vmatpush.msra.mxu0 0.0
    %3136 = vmatpush.msra.mxu0 %v2251
    %3137 = vmatpush.msra.mxu0 %v2054
    %3138 = vmatmul.f32.gmra.mxu0 %v405
    %v3139 = vpop.f32.mrf.mxu0
    %v3140 = vadd.f32 0.0, %v3139
    %3141 = vmatmul.f32.gmra.mxu0 %v408
    %v3142 = vpop.f32.mrf.mxu0
    %v3143 = vadd.f32 0.0, %v3142
    %3144 = vdwg.mxu0
    %3145 = vmatpush.msra.mxu0 0.0
    %3146 = vmatpush.msra.mxu0 0.0
    %3147 = vmatpush.msra.mxu0 0.0
    %3148 = vmatpush.msra.mxu0 0.0
    %3149 = vmatpush.msra.mxu0 0.0
    %3150 = vmatpush.msra.mxu0 0.0
    %3151 = vmatpush.msra.mxu0 0.0
    %3152 = vmatpush.msra.mxu0 0.0
    %3153 = vmatpush.msra.mxu0 0.0
    %3154 = vmatpush.msra.mxu0 0.0
    %3155 = vmatpush.msra.mxu0 0.0
    %3156 = vmatpush.msra.mxu0 0.0
    %3157 = vmatpush.msra.mxu0 0.0
    %3158 = vmatpush.msra.mxu0 0.0
    %3159 = vmatpush.msra.mxu0 %v2254
    %3160 = vmatpush.msra.mxu0 %v2055
    %3161 = vmatmul.f32.gmra.mxu0 %v405
    %v3162 = vpop.f32.mrf.mxu0
    %v3163 = vadd.f32 0.0, %v3162
    %3164 = vmatmul.f32.gmra.mxu0 %v408
    %v3165 = vpop.f32.mrf.mxu0
    %v3166 = vadd.f32 0.0, %v3165
    %3167 = vdwg.mxu0
    %3168 = vmatpush.msra.mxu0 0.0
    %3169 = vmatpush.msra.mxu0 0.0
    %3170 = vmatpush.msra.mxu0 0.0
    %3171 = vmatpush.msra.mxu0 0.0
    %3172 = vmatpush.msra.mxu0 0.0
    %3173 = vmatpush.msra.mxu0 0.0
    %3174 = vmatpush.msra.mxu0 0.0
    %3175 = vmatpush.msra.mxu0 0.0
    %3176 = vmatpush.msra.mxu0 0.0
    %3177 = vmatpush.msra.mxu0 0.0
    %3178 = vmatpush.msra.mxu0 0.0
    %3179 = vmatpush.msra.mxu0 0.0
    %3180 = vmatpush.msra.mxu0 0.0
    %3181 = vmatpush.msra.mxu0 0.0
    %3182 = vmatpush.msra.mxu0 %v2257
    %3183 = vmatpush.msra.mxu0 %v2056
    %3184 = vmatmul.f32.gmra.mxu0 %v405
    %v3185 = vpop.f32.mrf.mxu0
    %v3186 = vadd.f32 0.0, %v3185
    %3187 = vmatmul.f32.gmra.mxu0 %v408
    %v3188 = vpop.f32.mrf.mxu0
    %v3189 = vadd.f32 0.0, %v3188
    %3190 = vdwg.mxu0
    %3191 = vmatpush.msra.mxu0 0.0
    %3192 = vmatpush.msra.mxu0 0.0
    %3193 = vmatpush.msra.mxu0 0.0
    %3194 = vmatpush.msra.mxu0 0.0
    %3195 = vmatpush.msra.mxu0 0.0
    %3196 = vmatpush.msra.mxu0 0.0
    %3197 = vmatpush.msra.mxu0 0.0
    %3198 = vmatpush.msra.mxu0 0.0
    %3199 = vmatpush.msra.mxu0 0.0
    %3200 = vmatpush.msra.mxu0 0.0
    %3201 = vmatpush.msra.mxu0 0.0
    %3202 = vmatpush.msra.mxu0 0.0
    %3203 = vmatpush.msra.mxu0 0.0
    %3204 = vmatpush.msra.mxu0 0.0
    %3205 = vmatpush.msra.mxu0 %v2260
    %3206 = vmatpush.msra.mxu0 %v2057
    %3207 = vmatmul.f32.gmra.mxu0 %v405
    %v3208 = vpop.f32.mrf.mxu0
    %v3209 = vadd.f32 0.0, %v3208
    %3210 = vmatmul.f32.gmra.mxu0 %v408
    %v3211 = vpop.f32.mrf.mxu0
    %v3212 = vadd.f32 0.0, %v3211
    %3213 = vdwg.mxu0
    %3214 = vmatpush.msra.mxu0 0.0
    %3215 = vmatpush.msra.mxu0 0.0
    %3216 = vmatpush.msra.mxu0 0.0
    %3217 = vmatpush.msra.mxu0 0.0
    %3218 = vmatpush.msra.mxu0 0.0
    %3219 = vmatpush.msra.mxu0 0.0
    %3220 = vmatpush.msra.mxu0 0.0
    %3221 = vmatpush.msra.mxu0 0.0
    %3222 = vmatpush.msra.mxu0 0.0
    %3223 = vmatpush.msra.mxu0 0.0
    %3224 = vmatpush.msra.mxu0 0.0
    %3225 = vmatpush.msra.mxu0 0.0
    %3226 = vmatpush.msra.mxu0 0.0
    %3227 = vmatpush.msra.mxu0 0.0
    %3228 = vmatpush.msra.mxu0 %v2263
    %3229 = vmatpush.msra.mxu0 %v2058
    %3230 = vmatmul.f32.gmra.mxu0 %v405
    %v3231 = vpop.f32.mrf.mxu0
    %v3232 = vadd.f32 0.0, %v3231
    %3233 = vmatmul.f32.gmra.mxu0 %v408
    %v3234 = vpop.f32.mrf.mxu0
    %v3235 = vadd.f32 0.0, %v3234
    %3236 = vdwg.mxu0
    %3237 = vmatpush.msra.mxu0 0.0
    %3238 = vmatpush.msra.mxu0 0.0
    %3239 = vmatpush.msra.mxu0 0.0
    %3240 = vmatpush.msra.mxu0 0.0
    %3241 = vmatpush.msra.mxu0 0.0
    %3242 = vmatpush.msra.mxu0 0.0
    %3243 = vmatpush.msra.mxu0 0.0
    %3244 = vmatpush.msra.mxu0 0.0
    %3245 = vmatpush.msra.mxu0 0.0
    %3246 = vmatpush.msra.mxu0 0.0
    %3247 = vmatpush.msra.mxu0 0.0
    %3248 = vmatpush.msra.mxu0 0.0
    %3249 = vmatpush.msra.mxu0 0.0
    %3250 = vmatpush.msra.mxu0 0.0
    %3251 = vmatpush.msra.mxu0 %v2266
    %3252 = vmatpush.msra.mxu0 %v2059
    %3253 = vmatmul.f32.gmra.mxu0 %v405
    %v3254 = vpop.f32.mrf.mxu0
    %v3255 = vadd.f32 0.0, %v3254
    %3256 = vmatmul.f32.gmra.mxu0 %v408
    %v3257 = vpop.f32.mrf.mxu0
    %v3258 = vadd.f32 0.0, %v3257
    %3259 = vdwg.mxu0
    %3260 = vmatpush.msra.mxu0 0.0
    %3261 = vmatpush.msra.mxu0 0.0
    %3262 = vmatpush.msra.mxu0 0.0
    %3263 = vmatpush.msra.mxu0 0.0
    %3264 = vmatpush.msra.mxu0 0.0
    %3265 = vmatpush.msra.mxu0 0.0
    %3266 = vmatpush.msra.mxu0 0.0
    %3267 = vmatpush.msra.mxu0 0.0
    %3268 = vmatpush.msra.mxu0 0.0
    %3269 = vmatpush.msra.mxu0 0.0
    %3270 = vmatpush.msra.mxu0 0.0
    %3271 = vmatpush.msra.mxu0 0.0
    %3272 = vmatpush.msra.mxu0 0.0
    %3273 = vmatpush.msra.mxu0 0.0
    %3274 = vmatpush.msra.mxu0 %v2269
    %3275 = vmatpush.msra.mxu0 %v2060
    %3276 = vmatmul.f32.gmra.mxu0 %v405
    %v3277 = vpop.f32.mrf.mxu0
    %v3278 = vadd.f32 0.0, %v3277
    %3279 = vmatmul.f32.gmra.mxu0 %v408
    %v3280 = vpop.f32.mrf.mxu0
    %v3281 = vadd.f32 0.0, %v3280
    %3282 = vdwg.mxu0
    %3283 = vmatpush.msra.mxu0 0.0
    %3284 = vmatpush.msra.mxu0 0.0
    %3285 = vmatpush.msra.mxu0 0.0
    %3286 = vmatpush.msra.mxu0 0.0
    %3287 = vmatpush.msra.mxu0 0.0
    %3288 = vmatpush.msra.mxu0 0.0
    %3289 = vmatpush.msra.mxu0 0.0
    %3290 = vmatpush.msra.mxu0 0.0
    %3291 = vmatpush.msra.mxu0 0.0
    %3292 = vmatpush.msra.mxu0 0.0
    %3293 = vmatpush.msra.mxu0 0.0
    %3294 = vmatpush.msra.mxu0 0.0
    %3295 = vmatpush.msra.mxu0 0.0
    %3296 = vmatpush.msra.mxu0 0.0
    %3297 = vmatpush.msra.mxu0 %v2272
    %3298 = vmatpush.msra.mxu0 %v2061
    %3299 = vmatmul.f32.gmra.mxu0 %v405
    %v3300 = vpop.f32.mrf.mxu0
    %v3301 = vadd.f32 0.0, %v3300
    %3302 = vmatmul.f32.gmra.mxu0 %v408
    %v3303 = vpop.f32.mrf.mxu0
    %v3304 = vadd.f32 0.0, %v3303
    %3305 = vdwg.mxu0
    %3306 = vmatpush.msra.mxu0 0.0
    %3307 = vmatpush.msra.mxu0 0.0
    %3308 = vmatpush.msra.mxu0 0.0
    %3309 = vmatpush.msra.mxu0 0.0
    %3310 = vmatpush.msra.mxu0 0.0
    %3311 = vmatpush.msra.mxu0 0.0
    %3312 = vmatpush.msra.mxu0 0.0
    %3313 = vmatpush.msra.mxu0 0.0
    %3314 = vmatpush.msra.mxu0 0.0
    %3315 = vmatpush.msra.mxu0 0.0
    %3316 = vmatpush.msra.mxu0 0.0
    %3317 = vmatpush.msra.mxu0 0.0
    %3318 = vmatpush.msra.mxu0 0.0
    %3319 = vmatpush.msra.mxu0 0.0
    %3320 = vmatpush.msra.mxu0 %v2275
    %3321 = vmatpush.msra.mxu0 %v2062
    %3322 = vmatmul.f32.gmra.mxu0 %v405
    %v3323 = vpop.f32.mrf.mxu0
    %v3324 = vadd.f32 0.0, %v3323
    %3325 = vmatmul.f32.gmra.mxu0 %v408
    %v3326 = vpop.f32.mrf.mxu0
    %v3327 = vadd.f32 0.0, %v3326
    %3328 = vdwg.mxu0
    %3329 = vmatpush.msra.mxu0 0.0
    %3330 = vmatpush.msra.mxu0 0.0
    %3331 = vmatpush.msra.mxu0 0.0
    %3332 = vmatpush.msra.mxu0 0.0
    %3333 = vmatpush.msra.mxu0 0.0
    %3334 = vmatpush.msra.mxu0 0.0
    %3335 = vmatpush.msra.mxu0 0.0
    %3336 = vmatpush.msra.mxu0 0.0
    %3337 = vmatpush.msra.mxu0 0.0
    %3338 = vmatpush.msra.mxu0 0.0
    %3339 = vmatpush.msra.mxu0 0.0
    %3340 = vmatpush.msra.mxu0 0.0
    %3341 = vmatpush.msra.mxu0 0.0
    %3342 = vmatpush.msra.mxu0 0.0
    %3343 = vmatpush.msra.mxu0 %v2278
    %3344 = vmatpush.msra.mxu0 %v2063
    %3345 = vmatmul.f32.gmra.mxu0 %v405
    %v3346 = vpop.f32.mrf.mxu0
    %v3347 = vadd.f32 0.0, %v3346
    %3348 = vmatmul.f32.gmra.mxu0 %v408
    %v3349 = vpop.f32.mrf.mxu0
    %v3350 = vadd.f32 0.0, %v3349
    %3351 = vdwg.mxu0
    %3352 = vmatpush.msra.mxu0 0.0
    %3353 = vmatpush.msra.mxu0 0.0
    %3354 = vmatpush.msra.mxu0 0.0
    %3355 = vmatpush.msra.mxu0 0.0
    %3356 = vmatpush.msra.mxu0 0.0
    %3357 = vmatpush.msra.mxu0 0.0
    %3358 = vmatpush.msra.mxu0 0.0
    %3359 = vmatpush.msra.mxu0 0.0
    %3360 = vmatpush.msra.mxu0 0.0
    %3361 = vmatpush.msra.mxu0 0.0
    %3362 = vmatpush.msra.mxu0 0.0
    %3363 = vmatpush.msra.mxu0 0.0
    %3364 = vmatpush.msra.mxu0 0.0
    %3365 = vmatpush.msra.mxu0 0.0
    %3366 = vmatpush.msra.mxu0 %v2281
    %3367 = vmatpush.msra.mxu0 %v2064
    %3368 = vmatmul.f32.gmra.mxu0 %v405
    %v3369 = vpop.f32.mrf.mxu0
    %v3370 = vadd.f32 0.0, %v3369
    %3371 = vmatmul.f32.gmra.mxu0 %v408
    %v3372 = vpop.f32.mrf.mxu0
    %v3373 = vadd.f32 0.0, %v3372
    %3374 = vdwg.mxu0
    %3375 = vmatpush.msra.mxu0 0.0
    %3376 = vmatpush.msra.mxu0 0.0
    %3377 = vmatpush.msra.mxu0 0.0
    %3378 = vmatpush.msra.mxu0 0.0
    %3379 = vmatpush.msra.mxu0 0.0
    %3380 = vmatpush.msra.mxu0 0.0
    %3381 = vmatpush.msra.mxu0 0.0
    %3382 = vmatpush.msra.mxu0 0.0
    %3383 = vmatpush.msra.mxu0 0.0
    %3384 = vmatpush.msra.mxu0 0.0
    %3385 = vmatpush.msra.mxu0 0.0
    %3386 = vmatpush.msra.mxu0 0.0
    %3387 = vmatpush.msra.mxu0 0.0
    %3388 = vmatpush.msra.mxu0 0.0
    %3389 = vmatpush.msra.mxu0 %v2284
    %3390 = vmatpush.msra.mxu0 %v2065
    %3391 = vmatmul.f32.gmra.mxu0 %v405
    %v3392 = vpop.f32.mrf.mxu0
    %v3393 = vadd.f32 0.0, %v3392
    %3394 = vmatmul.f32.gmra.mxu0 %v408
    %v3395 = vpop.f32.mrf.mxu0
    %v3396 = vadd.f32 0.0, %v3395
    %3397 = vdwg.mxu0
    %3398 = vmatpush.msra.mxu0 0.0
    %3399 = vmatpush.msra.mxu0 0.0
    %3400 = vmatpush.msra.mxu0 0.0
    %3401 = vmatpush.msra.mxu0 0.0
    %3402 = vmatpush.msra.mxu0 0.0
    %3403 = vmatpush.msra.mxu0 0.0
    %3404 = vmatpush.msra.mxu0 0.0
    %3405 = vmatpush.msra.mxu0 0.0
    %3406 = vmatpush.msra.mxu0 0.0
    %3407 = vmatpush.msra.mxu0 0.0
    %3408 = vmatpush.msra.mxu0 0.0
    %3409 = vmatpush.msra.mxu0 0.0
    %3410 = vmatpush.msra.mxu0 0.0
    %3411 = vmatpush.msra.mxu0 0.0
    %3412 = vmatpush.msra.mxu0 %v2287
    %3413 = vmatpush.msra.mxu0 %v2066
    %3414 = vmatmul.f32.gmra.mxu0 %v405
    %v3415 = vpop.f32.mrf.mxu0
    %v3416 = vadd.f32 0.0, %v3415
    %3417 = vmatmul.f32.gmra.mxu0 %v408
    %v3418 = vpop.f32.mrf.mxu0
    %v3419 = vadd.f32 0.0, %v3418
    %3420 = vdwg.mxu0
    %3421 = vmatpush.msra.mxu0 0.0
    %3422 = vmatpush.msra.mxu0 0.0
    %3423 = vmatpush.msra.mxu0 0.0
    %3424 = vmatpush.msra.mxu0 0.0
    %3425 = vmatpush.msra.mxu0 0.0
    %3426 = vmatpush.msra.mxu0 0.0
    %3427 = vmatpush.msra.mxu0 0.0
    %3428 = vmatpush.msra.mxu0 0.0
    %3429 = vmatpush.msra.mxu0 0.0
    %3430 = vmatpush.msra.mxu0 0.0
    %3431 = vmatpush.msra.mxu0 0.0
    %3432 = vmatpush.msra.mxu0 0.0
    %3433 = vmatpush.msra.mxu0 0.0
    %3434 = vmatpush.msra.mxu0 0.0
    %3435 = vmatpush.msra.mxu0 %v2290
    %3436 = vmatpush.msra.mxu0 %v2067
    %3437 = vmatmul.f32.gmra.mxu0 %v405
    %v3438 = vpop.f32.mrf.mxu0
    %v3439 = vadd.f32 0.0, %v3438
    %3440 = vmatmul.f32.gmra.mxu0 %v408
    %v3441 = vpop.f32.mrf.mxu0
    %v3442 = vadd.f32 0.0, %v3441
    %3443 = vdwg.mxu0
    %3444 = vmatpush.msra.mxu0 0.0
    %3445 = vmatpush.msra.mxu0 0.0
    %3446 = vmatpush.msra.mxu0 0.0
    %3447 = vmatpush.msra.mxu0 0.0
    %3448 = vmatpush.msra.mxu0 0.0
    %3449 = vmatpush.msra.mxu0 0.0
    %3450 = vmatpush.msra.mxu0 0.0
    %3451 = vmatpush.msra.mxu0 0.0
    %3452 = vmatpush.msra.mxu0 0.0
    %3453 = vmatpush.msra.mxu0 0.0
    %3454 = vmatpush.msra.mxu0 0.0
    %3455 = vmatpush.msra.mxu0 0.0
    %3456 = vmatpush.msra.mxu0 0.0
    %3457 = vmatpush.msra.mxu0 0.0
    %3458 = vmatpush.msra.mxu0 %v2293
    %3459 = vmatpush.msra.mxu0 %v2068
    %3460 = vmatmul.f32.gmra.mxu0 %v405
    %v3461 = vpop.f32.mrf.mxu0
    %v3462 = vadd.f32 0.0, %v3461
    %3463 = vmatmul.f32.gmra.mxu0 %v408
    %v3464 = vpop.f32.mrf.mxu0
    %v3465 = vadd.f32 0.0, %v3464
    %3466 = vdwg.mxu0
    %3467 = vmatpush.msra.mxu0 0.0
    %3468 = vmatpush.msra.mxu0 0.0
    %3469 = vmatpush.msra.mxu0 0.0
    %3470 = vmatpush.msra.mxu0 0.0
    %3471 = vmatpush.msra.mxu0 0.0
    %3472 = vmatpush.msra.mxu0 0.0
    %3473 = vmatpush.msra.mxu0 0.0
    %3474 = vmatpush.msra.mxu0 0.0
    %3475 = vmatpush.msra.mxu0 0.0
    %3476 = vmatpush.msra.mxu0 0.0
    %3477 = vmatpush.msra.mxu0 0.0
    %3478 = vmatpush.msra.mxu0 0.0
    %3479 = vmatpush.msra.mxu0 0.0
    %3480 = vmatpush.msra.mxu0 0.0
    %3481 = vmatpush.msra.mxu0 %v2296
    %3482 = vmatpush.msra.mxu0 %v2069
    %3483 = vmatmul.f32.gmra.mxu0 %v405
    %v3484 = vpop.f32.mrf.mxu0
    %v3485 = vadd.f32 0.0, %v3484
    %3486 = vmatmul.f32.gmra.mxu0 %v408
    %v3487 = vpop.f32.mrf.mxu0
    %v3488 = vadd.f32 0.0, %v3487
    %3489 = vdwg.mxu0
    %3490 = vmatpush.msra.mxu0 0.0
    %3491 = vmatpush.msra.mxu0 0.0
    %3492 = vmatpush.msra.mxu0 0.0
    %3493 = vmatpush.msra.mxu0 0.0
    %3494 = vmatpush.msra.mxu0 0.0
    %3495 = vmatpush.msra.mxu0 0.0
    %3496 = vmatpush.msra.mxu0 0.0
    %3497 = vmatpush.msra.mxu0 0.0
    %3498 = vmatpush.msra.mxu0 0.0
    %3499 = vmatpush.msra.mxu0 0.0
    %3500 = vmatpush.msra.mxu0 0.0
    %3501 = vmatpush.msra.mxu0 0.0
    %3502 = vmatpush.msra.mxu0 0.0
    %3503 = vmatpush.msra.mxu0 0.0
    %3504 = vmatpush.msra.mxu0 %v2299
    %3505 = vmatpush.msra.mxu0 %v2070
    %3506 = vmatmul.f32.gmra.mxu0 %v405
    %v3507 = vpop.f32.mrf.mxu0
    %v3508 = vadd.f32 0.0, %v3507
    %3509 = vmatmul.f32.gmra.mxu0 %v408
    %v3510 = vpop.f32.mrf.mxu0
    %v3511 = vadd.f32 0.0, %v3510
    %3512 = vdwg.mxu0
    %3513 = vmatpush.msra.mxu0 0.0
    %3514 = vmatpush.msra.mxu0 0.0
    %3515 = vmatpush.msra.mxu0 0.0
    %3516 = vmatpush.msra.mxu0 0.0
    %3517 = vmatpush.msra.mxu0 0.0
    %3518 = vmatpush.msra.mxu0 0.0
    %3519 = vmatpush.msra.mxu0 0.0
    %3520 = vmatpush.msra.mxu0 0.0
    %3521 = vmatpush.msra.mxu0 0.0
    %3522 = vmatpush.msra.mxu0 0.0
    %3523 = vmatpush.msra.mxu0 0.0
    %3524 = vmatpush.msra.mxu0 0.0
    %3525 = vmatpush.msra.mxu0 0.0
    %3526 = vmatpush.msra.mxu0 0.0
    %3527 = vmatpush.msra.mxu0 %v2302
    %3528 = vmatpush.msra.mxu0 %v2071
    %3529 = vmatmul.f32.gmra.mxu0 %v405
    %v3530 = vpop.f32.mrf.mxu0
    %v3531 = vadd.f32 0.0, %v3530
    %3532 = vmatmul.f32.gmra.mxu0 %v408
    %v3533 = vpop.f32.mrf.mxu0
    %v3534 = vadd.f32 0.0, %v3533
    %3535 = vdwg.mxu0
    %3536 = vmatpush.msra.mxu0 0.0
    %3537 = vmatpush.msra.mxu0 0.0
    %3538 = vmatpush.msra.mxu0 0.0
    %3539 = vmatpush.msra.mxu0 0.0
    %3540 = vmatpush.msra.mxu0 0.0
    %3541 = vmatpush.msra.mxu0 0.0
    %3542 = vmatpush.msra.mxu0 0.0
    %3543 = vmatpush.msra.mxu0 0.0
    %3544 = vmatpush.msra.mxu0 0.0
    %3545 = vmatpush.msra.mxu0 0.0
    %3546 = vmatpush.msra.mxu0 0.0
    %3547 = vmatpush.msra.mxu0 0.0
    %3548 = vmatpush.msra.mxu0 0.0
    %3549 = vmatpush.msra.mxu0 0.0
    %3550 = vmatpush.msra.mxu0 %v2305
    %3551 = vmatpush.msra.mxu0 %v2072
    %3552 = vmatmul.f32.gmra.mxu0 %v405
    %v3553 = vpop.f32.mrf.mxu0
    %v3554 = vadd.f32 0.0, %v3553
    %3555 = vmatmul.f32.gmra.mxu0 %v408
    %v3556 = vpop.f32.mrf.mxu0
    %v3557 = vadd.f32 0.0, %v3556
    %3558 = vdwg.mxu0
    %3559 = vmatpush.msra.mxu0 0.0
    %3560 = vmatpush.msra.mxu0 0.0
    %3561 = vmatpush.msra.mxu0 0.0
    %3562 = vmatpush.msra.mxu0 0.0
    %3563 = vmatpush.msra.mxu0 0.0
    %3564 = vmatpush.msra.mxu0 0.0
    %3565 = vmatpush.msra.mxu0 0.0
    %3566 = vmatpush.msra.mxu0 0.0
    %3567 = vmatpush.msra.mxu0 0.0
    %3568 = vmatpush.msra.mxu0 0.0
    %3569 = vmatpush.msra.mxu0 0.0
    %3570 = vmatpush.msra.mxu0 0.0
    %3571 = vmatpush.msra.mxu0 0.0
    %3572 = vmatpush.msra.mxu0 0.0
    %3573 = vmatpush.msra.mxu0 %v2308
    %3574 = vmatpush.msra.mxu0 %v2073
    %3575 = vmatmul.f32.gmra.mxu0 %v405
    %v3576 = vpop.f32.mrf.mxu0
    %v3577 = vadd.f32 0.0, %v3576
    %3578 = vmatmul.f32.gmra.mxu0 %v408
    %v3579 = vpop.f32.mrf.mxu0
    %v3580 = vadd.f32 0.0, %v3579
    %3581 = vdwg.mxu0
    %3582 = vmatpush.msra.mxu0 0.0
    %3583 = vmatpush.msra.mxu0 0.0
    %3584 = vmatpush.msra.mxu0 0.0
    %3585 = vmatpush.msra.mxu0 0.0
    %3586 = vmatpush.msra.mxu0 0.0
    %3587 = vmatpush.msra.mxu0 0.0
    %3588 = vmatpush.msra.mxu0 0.0
    %3589 = vmatpush.msra.mxu0 0.0
    %3590 = vmatpush.msra.mxu0 0.0
    %3591 = vmatpush.msra.mxu0 0.0
    %3592 = vmatpush.msra.mxu0 0.0
    %3593 = vmatpush.msra.mxu0 0.0
    %3594 = vmatpush.msra.mxu0 0.0
    %3595 = vmatpush.msra.mxu0 0.0
    %3596 = vmatpush.msra.mxu0 %v2311
    %3597 = vmatpush.msra.mxu0 %v2074
    %3598 = vmatmul.f32.gmra.mxu0 %v405
    %v3599 = vpop.f32.mrf.mxu0
    %v3600 = vadd.f32 0.0, %v3599
    %3601 = vmatmul.f32.gmra.mxu0 %v408
    %v3602 = vpop.f32.mrf.mxu0
    %v3603 = vadd.f32 0.0, %v3602
    %3604 = vdwg.mxu0
    %3605 = vmatpush.msra.mxu0 0.0
    %3606 = vmatpush.msra.mxu0 0.0
    %3607 = vmatpush.msra.mxu0 0.0
    %3608 = vmatpush.msra.mxu0 0.0
    %3609 = vmatpush.msra.mxu0 0.0
    %3610 = vmatpush.msra.mxu0 0.0
    %3611 = vmatpush.msra.mxu0 0.0
    %3612 = vmatpush.msra.mxu0 0.0
    %3613 = vmatpush.msra.mxu0 0.0
    %3614 = vmatpush.msra.mxu0 0.0
    %3615 = vmatpush.msra.mxu0 0.0
    %3616 = vmatpush.msra.mxu0 0.0
    %3617 = vmatpush.msra.mxu0 0.0
    %3618 = vmatpush.msra.mxu0 0.0
    %3619 = vmatpush.msra.mxu0 %v2314
    %3620 = vmatpush.msra.mxu0 %v2075
    %3621 = vmatmul.f32.gmra.mxu0 %v405
    %v3622 = vpop.f32.mrf.mxu0
    %v3623 = vadd.f32 0.0, %v3622
    %3624 = vmatmul.f32.gmra.mxu0 %v408
    %v3625 = vpop.f32.mrf.mxu0
    %v3626 = vadd.f32 0.0, %v3625
    %3627 = vdwg.mxu0
    %3628 = vmatpush.msra.mxu0 0.0
    %3629 = vmatpush.msra.mxu0 0.0
    %3630 = vmatpush.msra.mxu0 0.0
    %3631 = vmatpush.msra.mxu0 0.0
    %3632 = vmatpush.msra.mxu0 0.0
    %3633 = vmatpush.msra.mxu0 0.0
    %3634 = vmatpush.msra.mxu0 0.0
    %3635 = vmatpush.msra.mxu0 0.0
    %3636 = vmatpush.msra.mxu0 0.0
    %3637 = vmatpush.msra.mxu0 0.0
    %3638 = vmatpush.msra.mxu0 0.0
    %3639 = vmatpush.msra.mxu0 0.0
    %3640 = vmatpush.msra.mxu0 0.0
    %3641 = vmatpush.msra.mxu0 0.0
    %3642 = vmatpush.msra.mxu0 %v2317
    %3643 = vmatpush.msra.mxu0 %v2076
    %3644 = vmatmul.f32.gmra.mxu0 %v405
    %v3645 = vpop.f32.mrf.mxu0
    %v3646 = vadd.f32 0.0, %v3645
    %3647 = vmatmul.f32.gmra.mxu0 %v408
    %v3648 = vpop.f32.mrf.mxu0
    %v3649 = vadd.f32 0.0, %v3648
    %3650 = vdwg.mxu0
    %3651 = vmatpush.msra.mxu0 0.0
    %3652 = vmatpush.msra.mxu0 0.0
    %3653 = vmatpush.msra.mxu0 0.0
    %3654 = vmatpush.msra.mxu0 0.0
    %3655 = vmatpush.msra.mxu0 0.0
    %3656 = vmatpush.msra.mxu0 0.0
    %3657 = vmatpush.msra.mxu0 0.0
    %3658 = vmatpush.msra.mxu0 0.0
    %3659 = vmatpush.msra.mxu0 0.0
    %3660 = vmatpush.msra.mxu0 0.0
    %3661 = vmatpush.msra.mxu0 0.0
    %3662 = vmatpush.msra.mxu0 0.0
    %3663 = vmatpush.msra.mxu0 0.0
    %3664 = vmatpush.msra.mxu0 0.0
    %3665 = vmatpush.msra.mxu0 %v2320
    %3666 = vmatpush.msra.mxu0 %v2077
    %3667 = vmatmul.f32.gmra.mxu0 %v405
    %v3668 = vpop.f32.mrf.mxu0
    %v3669 = vadd.f32 0.0, %v3668
    %3670 = vmatmul.f32.gmra.mxu0 %v408
    %v3671 = vpop.f32.mrf.mxu0
    %v3672 = vadd.f32 0.0, %v3671
    %3673 = vdwg.mxu0
    %3674 = vmatpush.msra.mxu0 0.0
    %3675 = vmatpush.msra.mxu0 0.0
    %3676 = vmatpush.msra.mxu0 0.0
    %3677 = vmatpush.msra.mxu0 0.0
    %3678 = vmatpush.msra.mxu0 0.0
    %3679 = vmatpush.msra.mxu0 0.0
    %3680 = vmatpush.msra.mxu0 0.0
    %3681 = vmatpush.msra.mxu0 0.0
    %3682 = vmatpush.msra.mxu0 0.0
    %3683 = vmatpush.msra.mxu0 0.0
    %3684 = vmatpush.msra.mxu0 0.0
    %3685 = vmatpush.msra.mxu0 0.0
    %3686 = vmatpush.msra.mxu0 0.0
    %3687 = vmatpush.msra.mxu0 0.0
    %3688 = vmatpush.msra.mxu0 %v2323
    %3689 = vmatpush.msra.mxu0 %v2078
    %3690 = vmatmul.f32.gmra.mxu0 %v405
    %v3691 = vpop.f32.mrf.mxu0
    %v3692 = vadd.f32 0.0, %v3691
    %3693 = vmatmul.f32.gmra.mxu0 %v408
    %v3694 = vpop.f32.mrf.mxu0
    %v3695 = vadd.f32 0.0, %v3694
    %3696 = vdwg.mxu0
    %3697 = vmatpush.msra.mxu0 0.0
    %3698 = vmatpush.msra.mxu0 0.0
    %3699 = vmatpush.msra.mxu0 0.0
    %3700 = vmatpush.msra.mxu0 0.0
    %3701 = vmatpush.msra.mxu0 0.0
    %3702 = vmatpush.msra.mxu0 0.0
    %3703 = vmatpush.msra.mxu0 0.0
    %3704 = vmatpush.msra.mxu0 0.0
    %3705 = vmatpush.msra.mxu0 0.0
    %3706 = vmatpush.msra.mxu0 0.0
    %3707 = vmatpush.msra.mxu0 0.0
    %3708 = vmatpush.msra.mxu0 0.0
    %3709 = vmatpush.msra.mxu0 0.0
    %3710 = vmatpush.msra.mxu0 0.0
    %3711 = vmatpush.msra.mxu0 %v2326
    %3712 = vmatpush.msra.mxu0 %v2079
    %3713 = vmatmul.f32.gmra.mxu0 %v405
    %v3714 = vpop.f32.mrf.mxu0
    %v3715 = vadd.f32 0.0, %v3714
    %3716 = vmatmul.f32.gmra.mxu0 %v408
    %v3717 = vpop.f32.mrf.mxu0
    %v3718 = vadd.f32 0.0, %v3717
    %3719 = vdwg.mxu0
    %3720 = vmatpush.msra.mxu0 0.0
    %3721 = vmatpush.msra.mxu0 0.0
    %3722 = vmatpush.msra.mxu0 0.0
    %3723 = vmatpush.msra.mxu0 0.0
    %3724 = vmatpush.msra.mxu0 0.0
    %3725 = vmatpush.msra.mxu0 0.0
    %3726 = vmatpush.msra.mxu0 0.0
    %3727 = vmatpush.msra.mxu0 0.0
    %3728 = vmatpush.msra.mxu0 0.0
    %3729 = vmatpush.msra.mxu0 0.0
    %3730 = vmatpush.msra.mxu0 0.0
    %3731 = vmatpush.msra.mxu0 0.0
    %3732 = vmatpush.msra.mxu0 0.0
    %3733 = vmatpush.msra.mxu0 0.0
    %3734 = vmatpush.msra.mxu0 %v2329
    %3735 = vmatpush.msra.mxu0 %v2080
    %3736 = vmatmul.f32.gmra.mxu0 %v405
    %v3737 = vpop.f32.mrf.mxu0
    %v3738 = vadd.f32 0.0, %v3737
    %3739 = vmatmul.f32.gmra.mxu0 %v408
    %v3740 = vpop.f32.mrf.mxu0
    %v3741 = vadd.f32 0.0, %v3740
    %3742 = vdwg.mxu0
    %3743 = vmatpush.msra.mxu0 0.0
    %3744 = vmatpush.msra.mxu0 0.0
    %3745 = vmatpush.msra.mxu0 0.0
    %3746 = vmatpush.msra.mxu0 0.0
    %3747 = vmatpush.msra.mxu0 0.0
    %3748 = vmatpush.msra.mxu0 0.0
    %3749 = vmatpush.msra.mxu0 0.0
    %3750 = vmatpush.msra.mxu0 0.0
    %3751 = vmatpush.msra.mxu0 0.0
    %3752 = vmatpush.msra.mxu0 0.0
    %3753 = vmatpush.msra.mxu0 0.0
    %3754 = vmatpush.msra.mxu0 0.0
    %3755 = vmatpush.msra.mxu0 0.0
    %3756 = vmatpush.msra.mxu0 0.0
    %3757 = vmatpush.msra.mxu0 %v2332
    %3758 = vmatpush.msra.mxu0 %v2081
    %3759 = vmatmul.f32.gmra.mxu0 %v405
    %v3760 = vpop.f32.mrf.mxu0
    %v3761 = vadd.f32 0.0, %v3760
    %3762 = vmatmul.f32.gmra.mxu0 %v408
    %v3763 = vpop.f32.mrf.mxu0
    %v3764 = vadd.f32 0.0, %v3763
    %3765 = vdwg.mxu0
    %3766 = vmatpush.msra.mxu0 0.0
    %3767 = vmatpush.msra.mxu0 0.0
    %3768 = vmatpush.msra.mxu0 0.0
    %3769 = vmatpush.msra.mxu0 0.0
    %3770 = vmatpush.msra.mxu0 0.0
    %3771 = vmatpush.msra.mxu0 0.0
    %3772 = vmatpush.msra.mxu0 0.0
    %3773 = vmatpush.msra.mxu0 0.0
    %3774 = vmatpush.msra.mxu0 0.0
    %3775 = vmatpush.msra.mxu0 0.0
    %3776 = vmatpush.msra.mxu0 0.0
    %3777 = vmatpush.msra.mxu0 0.0
    %3778 = vmatpush.msra.mxu0 0.0
    %3779 = vmatpush.msra.mxu0 0.0
    %3780 = vmatpush.msra.mxu0 %v2335
    %3781 = vmatpush.msra.mxu0 %v2082
    %3782 = vmatmul.f32.gmra.mxu0 %v405
    %v3783 = vpop.f32.mrf.mxu0
    %v3784 = vadd.f32 0.0, %v3783
    %3785 = vmatmul.f32.gmra.mxu0 %v408
    %v3786 = vpop.f32.mrf.mxu0
    %v3787 = vadd.f32 0.0, %v3786
    %3788 = vdwg.mxu0
    %3789 = vmatpush.msra.mxu0 0.0
    %3790 = vmatpush.msra.mxu0 0.0
    %3791 = vmatpush.msra.mxu0 0.0
    %3792 = vmatpush.msra.mxu0 0.0
    %3793 = vmatpush.msra.mxu0 0.0
    %3794 = vmatpush.msra.mxu0 0.0
    %3795 = vmatpush.msra.mxu0 0.0
    %3796 = vmatpush.msra.mxu0 0.0
    %3797 = vmatpush.msra.mxu0 0.0
    %3798 = vmatpush.msra.mxu0 0.0
    %3799 = vmatpush.msra.mxu0 0.0
    %3800 = vmatpush.msra.mxu0 0.0
    %3801 = vmatpush.msra.mxu0 0.0
    %3802 = vmatpush.msra.mxu0 0.0
    %3803 = vmatpush.msra.mxu0 %v2338
    %3804 = vmatpush.msra.mxu0 %v2083
    %3805 = vmatmul.f32.gmra.mxu0 %v405
    %v3806 = vpop.f32.mrf.mxu0
    %v3807 = vadd.f32 0.0, %v3806
    %3808 = vmatmul.f32.gmra.mxu0 %v408
    %v3809 = vpop.f32.mrf.mxu0
    %v3810 = vadd.f32 0.0, %v3809
    %3811 = vdwg.mxu0
    %3812 = vst [vmem:[#allocation27] sm:$0xff] %v2358
    %3813 = vst [vmem:[#allocation27 + $0x8] sm:$0xff] %v2381
    %3814 = vst [vmem:[#allocation27 + $0x10] sm:$0xff] %v2404
    %3815 = vst [vmem:[#allocation27 + $0x18] sm:$0xff] %v2427
    %3816 = vst [vmem:[#allocation27 + $0x20] sm:$0xff] %v2450
    %3817 = vst [vmem:[#allocation27 + $0x28] sm:$0xff] %v2473
    %3818 = vst [vmem:[#allocation27 + $0x30] sm:$0xff] %v2496
    %3819 = vst [vmem:[#allocation27 + $0x38] sm:$0xff] %v2519
    %3820 = vst [vmem:[#allocation27 + $0x40] sm:$0xff] %v2542
    %3821 = vst [vmem:[#allocation27 + $0x48] sm:$0xff] %v2565
    %3822 = vst [vmem:[#allocation27 + $0x50] sm:$0xff] %v2588
    %3823 = vst [vmem:[#allocation27 + $0x58] sm:$0xff] %v2611
    %3824 = vst [vmem:[#allocation27 + $0x60] sm:$0xff] %v2634
    %3825 = vst [vmem:[#allocation27 + $0x68] sm:$0xff] %v2657
    %3826 = vst [vmem:[#allocation27 + $0x70] sm:$0xff] %v2680
    %3827 = vst [vmem:[#allocation27 + $0x78] sm:$0xff] %v2703
    %3828 = vst [vmem:[#allocation27 + $0x80] sm:$0xff] %v2726
    %3829 = vst [vmem:[#allocation27 + $0x88] sm:$0xff] %v2749
    %3830 = vst [vmem:[#allocation27 + $0x90] sm:$0xff] %v2772
    %3831 = vst [vmem:[#allocation27 + $0x98] sm:$0xff] %v2795
    %3832 = vst [vmem:[#allocation27 + $0xa0] sm:$0xff] %v2818
    %3833 = vst [vmem:[#allocation27 + $0xa8] sm:$0xff] %v2841
    %3834 = vst [vmem:[#allocation27 + $0xb0] sm:$0xff] %v2864
    %3835 = vst [vmem:[#allocation27 + $0xb8] sm:$0xff] %v2887
    %3836 = vst [vmem:[#allocation27 + $0xc0] sm:$0xff] %v2910
    %3837 = vst [vmem:[#allocation27 + $0xc8] sm:$0xff] %v2933
    %3838 = vst [vmem:[#allocation27 + $0xd0] sm:$0xff] %v2956
    %3839 = vst [vmem:[#allocation27 + $0xd8] sm:$0xff] %v2979
    %3840 = vst [vmem:[#allocation27 + $0xe0] sm:$0xff] %v3002
    %3841 = vst [vmem:[#allocation27 + $0xe8] sm:$0xff] %v3025
    %3842 = vst [vmem:[#allocation27 + $0xf0] sm:$0xff] %v3048
    %3843 = vst [vmem:[#allocation27 + $0xf8] sm:$0xff] %v3071
    %3844 = vst [vmem:[#allocation27 + $0x100] sm:$0xff] %v3094
    %3845 = vst [vmem:[#allocation27 + $0x108] sm:$0xff] %v3117
    %3846 = vst [vmem:[#allocation27 + $0x110] sm:$0xff] %v3140
    %3847 = vst [vmem:[#allocation27 + $0x118] sm:$0xff] %v3163
    %3848 = vst [vmem:[#allocation27 + $0x120] sm:$0xff] %v3186
    %3849 = vst [vmem:[#allocation27 + $0x128] sm:$0xff] %v3209
    %3850 = vst [vmem:[#allocation27 + $0x130] sm:$0xff] %v3232
    %3851 = vst [vmem:[#allocation27 + $0x138] sm:$0xff] %v3255
    %3852 = vst [vmem:[#allocation27 + $0x140] sm:$0xff] %v3278
    %3853 = vst [vmem:[#allocation27 + $0x148] sm:$0xff] %v3301
    %3854 = vst [vmem:[#allocation27 + $0x150] sm:$0xff] %v3324
    %3855 = vst [vmem:[#allocation27 + $0x158] sm:$0xff] %v3347
    %3856 = vst [vmem:[#allocation27 + $0x160] sm:$0xff] %v3370
    %3857 = vst [vmem:[#allocation27 + $0x168] sm:$0xff] %v3393
    %3858 = vst [vmem:[#allocation27 + $0x170] sm:$0xff] %v3416
    %3859 = vst [vmem:[#allocation27 + $0x178] sm:$0xff] %v3439
    %3860 = vst [vmem:[#allocation27 + $0x180] sm:$0xff] %v3462
    %3861 = vst [vmem:[#allocation27 + $0x188] sm:$0xff] %v3485
    %3862 = vst [vmem:[#allocation27 + $0x190] sm:$0xff] %v3508
    %3863 = vst [vmem:[#allocation27 + $0x198] sm:$0xff] %v3531
    %3864 = vst [vmem:[#allocation27 + $0x1a0] sm:$0xff] %v3554
    %3865 = vst [vmem:[#allocation27 + $0x1a8] sm:$0xff] %v3577
    %3866 = vst [vmem:[#allocation27 + $0x1b0] sm:$0xff] %v3600
    %3867 = vst [vmem:[#allocation27 + $0x1b8] sm:$0xff] %v3623
    %3868 = vst [vmem:[#allocation27 + $0x1c0] sm:$0xff] %v3646
    %3869 = vst [vmem:[#allocation27 + $0x1c8] sm:$0xff] %v3669
    %3870 = vst [vmem:[#allocation27 + $0x1d0] sm:$0xff] %v3692
    %3871 = vst [vmem:[#allocation27 + $0x1d8] sm:$0xff] %v3715
    %3872 = vst [vmem:[#allocation27 + $0x1e0] sm:$0xff] %v3738
    %3873 = vst [vmem:[#allocation27 + $0x1e8] sm:$0xff] %v3761
    %3874 = vst [vmem:[#allocation27 + $0x1f0] sm:$0xff] %v3784
    %3875 = vst [vmem:[#allocation27 + $0x1f8] sm:$0xff] %v3807
    %3876 = vst [vmem:[#allocation27 + $0x200] sm:$0xff] %v2361
    %3877 = vst [vmem:[#allocation27 + $0x208] sm:$0xff] %v2384
    %3878 = vst [vmem:[#allocation27 + $0x210] sm:$0xff] %v2407
    %3879 = vst [vmem:[#allocation27 + $0x218] sm:$0xff] %v2430
    %3880 = vst [vmem:[#allocation27 + $0x220] sm:$0xff] %v2453
    %3881 = vst [vmem:[#allocation27 + $0x228] sm:$0xff] %v2476
    %3882 = vst [vmem:[#allocation27 + $0x230] sm:$0xff] %v2499
    %3883 = vst [vmem:[#allocation27 + $0x238] sm:$0xff] %v2522
    %3884 = vst [vmem:[#allocation27 + $0x240] sm:$0xff] %v2545
    %3885 = vst [vmem:[#allocation27 + $0x248] sm:$0xff] %v2568
    %3886 = vst [vmem:[#allocation27 + $0x250] sm:$0xff] %v2591
    %3887 = vst [vmem:[#allocation27 + $0x258] sm:$0xff] %v2614
    %3888 = vst [vmem:[#allocation27 + $0x260] sm:$0xff] %v2637
    %3889 = vst [vmem:[#allocation27 + $0x268] sm:$0xff] %v2660
    %3890 = vst [vmem:[#allocation27 + $0x270] sm:$0xff] %v2683
    %3891 = vst [vmem:[#allocation27 + $0x278] sm:$0xff] %v2706
    %3892 = vst [vmem:[#allocation27 + $0x280] sm:$0xff] %v2729
    %3893 = vst [vmem:[#allocation27 + $0x288] sm:$0xff] %v2752
    %3894 = vst [vmem:[#allocation27 + $0x290] sm:$0xff] %v2775
    %3895 = vst [vmem:[#allocation27 + $0x298] sm:$0xff] %v2798
    %3896 = vst [vmem:[#allocation27 + $0x2a0] sm:$0xff] %v2821
    %3897 = vst [vmem:[#allocation27 + $0x2a8] sm:$0xff] %v2844
    %3898 = vst [vmem:[#allocation27 + $0x2b0] sm:$0xff] %v2867
    %3899 = vst [vmem:[#allocation27 + $0x2b8] sm:$0xff] %v2890
    %3900 = vst [vmem:[#allocation27 + $0x2c0] sm:$0xff] %v2913
    %3901 = vst [vmem:[#allocation27 + $0x2c8] sm:$0xff] %v2936
    %3902 = vst [vmem:[#allocation27 + $0x2d0] sm:$0xff] %v2959
    %3903 = vst [vmem:[#allocation27 + $0x2d8] sm:$0xff] %v2982
    %3904 = vst [vmem:[#allocation27 + $0x2e0] sm:$0xff] %v3005
    %3905 = vst [vmem:[#allocation27 + $0x2e8] sm:$0xff] %v3028
    %3906 = vst [vmem:[#allocation27 + $0x2f0] sm:$0xff] %v3051
    %3907 = vst [vmem:[#allocation27 + $0x2f8] sm:$0xff] %v3074
    %3908 = vst [vmem:[#allocation27 + $0x300] sm:$0xff] %v3097
    %3909 = vst [vmem:[#allocation27 + $0x308] sm:$0xff] %v3120
    %3910 = vst [vmem:[#allocation27 + $0x310] sm:$0xff] %v3143
    %3911 = vst [vmem:[#allocation27 + $0x318] sm:$0xff] %v3166
    %3912 = vst [vmem:[#allocation27 + $0x320] sm:$0xff] %v3189
    %3913 = vst [vmem:[#allocation27 + $0x328] sm:$0xff] %v3212
    %3914 = vst [vmem:[#allocation27 + $0x330] sm:$0xff] %v3235
    %3915 = vst [vmem:[#allocation27 + $0x338] sm:$0xff] %v3258
    %3916 = vst [vmem:[#allocation27 + $0x340] sm:$0xff] %v3281
    %3917 = vst [vmem:[#allocation27 + $0x348] sm:$0xff] %v3304
    %3918 = vst [vmem:[#allocation27 + $0x350] sm:$0xff] %v3327
    %3919 = vst [vmem:[#allocation27 + $0x358] sm:$0xff] %v3350
    %3920 = vst [vmem:[#allocation27 + $0x360] sm:$0xff] %v3373
    %3921 = vst [vmem:[#allocation27 + $0x368] sm:$0xff] %v3396
    %3922 = vst [vmem:[#allocation27 + $0x370] sm:$0xff] %v3419
    %3923 = vst [vmem:[#allocation27 + $0x378] sm:$0xff] %v3442
    %3924 = vst [vmem:[#allocation27 + $0x380] sm:$0xff] %v3465
    %3925 = vst [vmem:[#allocation27 + $0x388] sm:$0xff] %v3488
    %3926 = vst [vmem:[#allocation27 + $0x390] sm:$0xff] %v3511
    %3927 = vst [vmem:[#allocation27 + $0x398] sm:$0xff] %v3534
    %3928 = vst [vmem:[#allocation27 + $0x3a0] sm:$0xff] %v3557
    %3929 = vst [vmem:[#allocation27 + $0x3a8] sm:$0xff] %v3580
    %3930 = vst [vmem:[#allocation27 + $0x3b0] sm:$0xff] %v3603
    %3931 = vst [vmem:[#allocation27 + $0x3b8] sm:$0xff] %v3626
    %3932 = vst [vmem:[#allocation27 + $0x3c0] sm:$0xff] %v3649
    %3933 = vst [vmem:[#allocation27 + $0x3c8] sm:$0xff] %v3672
    %3934 = vst [vmem:[#allocation27 + $0x3d0] sm:$0xff] %v3695
    %3935 = vst [vmem:[#allocation27 + $0x3d8] sm:$0xff] %v3718
    %3936 = vst [vmem:[#allocation27 + $0x3e0] sm:$0xff] %v3741
    %3937 = vst [vmem:[#allocation27 + $0x3e8] sm:$0xff] %v3764
    %3938 = vst [vmem:[#allocation27 + $0x3f0] sm:$0xff] %v3787
    %3939 = vst [vmem:[#allocation27 + $0x3f8] sm:$0xff] %v3810
    %v3940 = vld [vmem:[#allocation16] sm:$0xff]
    %v3941 = vld [vmem:[#allocation16 + $0x8] sm:$0x3]
    %v3943 = vsel %vm234, %v3941, 0
    %3945 = vmatpush.msra.mxu0 0.0
    %3946 = vmatpush.msra.mxu0 0.0
    %3947 = vmatpush.msra.mxu0 0.0
    %3948 = vmatpush.msra.mxu0 0.0
    %3949 = vmatpush.msra.mxu0 0.0
    %3950 = vmatpush.msra.mxu0 0.0
    %3951 = vmatpush.msra.mxu0 0.0
    %3952 = vmatpush.msra.mxu0 0.0
    %3953 = vmatpush.msra.mxu0 0.0
    %3954 = vmatpush.msra.mxu0 0.0
    %3955 = vmatpush.msra.mxu0 0.0
    %3956 = vmatpush.msra.mxu0 0.0
    %3957 = vmatpush.msra.mxu0 0.0
    %3958 = vmatpush.msra.mxu0 0.0
    %3959 = vmatpush.msra.mxu0 %v3943
    %3960 = vmatpush.msra.mxu0 %v3940
    %3961 = vmatmul.f32.gmra.mxu0 %v405
    %v3962 = vpop.f32.mrf.mxu0
    %v3963 = vadd.f32 0.0, %v3962
    %3964 = vmatmul.f32.gmra.mxu0 %v408
    %v3965 = vpop.f32.mrf.mxu0
    %v3966 = vadd.f32 0.0, %v3965
    %3967 = vdwg.mxu0
    %3968 = vst.msk [vmem:[#allocation29] sm:$0xff] %vm1446, %v3963
    %3969 = vst.msk [vmem:[#allocation29 + $0x8] sm:$0xff] %vm1446, %v3966
    %v3970 = vld [vmem:[#allocation17] sm:$0xff]
    %v3971 = vld [vmem:[#allocation17 + $0x8] sm:$0xff]
    %v3972 = vld [vmem:[#allocation17 + $0x10] sm:$0xff]
    %v3973 = vld [vmem:[#allocation17 + $0x18] sm:$0xff]
    %v3974 = vld [vmem:[#allocation17 + $0x20] sm:$0xff]
    %v3975 = vld [vmem:[#allocation17 + $0x28] sm:$0xff]
    %v3976 = vld [vmem:[#allocation17 + $0x30] sm:$0xff]
    %v3977 = vld [vmem:[#allocation17 + $0x38] sm:$0xff]
    %v3978 = vld [vmem:[#allocation17 + $0x40] sm:$0xff]
    %v3979 = vld [vmem:[#allocation17 + $0x48] sm:$0xff]
    %v3980 = vld [vmem:[#allocation17 + $0x50] sm:$0xff]
    %v3981 = vld [vmem:[#allocation17 + $0x58] sm:$0xff]
    %v3982 = vld [vmem:[#allocation17 + $0x60] sm:$0xff]
    %v3983 = vld [vmem:[#allocation17 + $0x68] sm:$0xff]
    %v3984 = vld [vmem:[#allocation17 + $0x70] sm:$0xff]
    %v3985 = vld [vmem:[#allocation17 + $0x78] sm:$0xff]
    %v3986 = vld [vmem:[#allocation17 + $0x80] sm:$0xff]
    %v3987 = vld [vmem:[#allocation17 + $0x88] sm:$0xff]
    %v3988 = vld [vmem:[#allocation17 + $0x90] sm:$0xff]
    %v3989 = vld [vmem:[#allocation17 + $0x98] sm:$0xff]
    %v3990 = vld [vmem:[#allocation17 + $0xa0] sm:$0xff]
    %v3991 = vld [vmem:[#allocation17 + $0xa8] sm:$0xff]
    %v3992 = vld [vmem:[#allocation17 + $0xb0] sm:$0xff]
    %v3993 = vld [vmem:[#allocation17 + $0xb8] sm:$0xff]
    %v3994 = vld [vmem:[#allocation17 + $0xc0] sm:$0xff]
    %v3995 = vld [vmem:[#allocation17 + $0xc8] sm:$0xff]
    %v3996 = vld [vmem:[#allocation17 + $0xd0] sm:$0xff]
    %v3997 = vld [vmem:[#allocation17 + $0xd8] sm:$0xff]
    %v3998 = vld [vmem:[#allocation17 + $0xe0] sm:$0xff]
    %v3999 = vld [vmem:[#allocation17 + $0xe8] sm:$0xff]
    %v4000 = vld [vmem:[#allocation17 + $0xf0] sm:$0xff]
    %v4001 = vld [vmem:[#allocation17 + $0xf8] sm:$0xff]
    %v4002 = vld [vmem:[#allocation17 + $0x100] sm:$0x3]
    %v4003 = vld [vmem:[#allocation17 + $0x108] sm:$0x3]
    %v4004 = vld [vmem:[#allocation17 + $0x110] sm:$0x3]
    %v4005 = vld [vmem:[#allocation17 + $0x118] sm:$0x3]
    %v4006 = vld [vmem:[#allocation17 + $0x120] sm:$0x3]
    %v4007 = vld [vmem:[#allocation17 + $0x128] sm:$0x3]
    %v4008 = vld [vmem:[#allocation17 + $0x130] sm:$0x3]
    %v4009 = vld [vmem:[#allocation17 + $0x138] sm:$0x3]
    %v4010 = vld [vmem:[#allocation17 + $0x140] sm:$0x3]
    %v4011 = vld [vmem:[#allocation17 + $0x148] sm:$0x3]
    %v4012 = vld [vmem:[#allocation17 + $0x150] sm:$0x3]
    %v4013 = vld [vmem:[#allocation17 + $0x158] sm:$0x3]
    %v4014 = vld [vmem:[#allocation17 + $0x160] sm:$0x3]
    %v4015 = vld [vmem:[#allocation17 + $0x168] sm:$0x3]
    %v4016 = vld [vmem:[#allocation17 + $0x170] sm:$0x3]
    %v4017 = vld [vmem:[#allocation17 + $0x178] sm:$0x3]
    %v4018 = vld [vmem:[#allocation17 + $0x180] sm:$0x3]
    %v4019 = vld [vmem:[#allocation17 + $0x188] sm:$0x3]
    %v4020 = vld [vmem:[#allocation17 + $0x190] sm:$0x3]
    %v4021 = vld [vmem:[#allocation17 + $0x198] sm:$0x3]
    %v4022 = vld [vmem:[#allocation17 + $0x1a0] sm:$0x3]
    %v4023 = vld [vmem:[#allocation17 + $0x1a8] sm:$0x3]
    %v4024 = vld [vmem:[#allocation17 + $0x1b0] sm:$0x3]
    %v4025 = vld [vmem:[#allocation17 + $0x1b8] sm:$0x3]
    %v4026 = vld [vmem:[#allocation17 + $0x1c0] sm:$0x3]
    %v4027 = vld [vmem:[#allocation17 + $0x1c8] sm:$0x3]
    %v4028 = vld [vmem:[#allocation17 + $0x1d0] sm:$0x3]
    %v4029 = vld [vmem:[#allocation17 + $0x1d8] sm:$0x3]
    %v4030 = vld [vmem:[#allocation17 + $0x1e0] sm:$0x3]
    %v4031 = vld [vmem:[#allocation17 + $0x1e8] sm:$0x3]
    %v4032 = vld [vmem:[#allocation17 + $0x1f0] sm:$0x3]
    %v4033 = vld [vmem:[#allocation17 + $0x1f8] sm:$0x3]
    %v4035 = vsel %vm234, %v4002, 0
    %v4038 = vsel %vm234, %v4003, 0
    %v4041 = vsel %vm234, %v4004, 0
    %v4044 = vsel %vm234, %v4005, 0
    %v4047 = vsel %vm234, %v4006, 0
    %v4050 = vsel %vm234, %v4007, 0
    %v4053 = vsel %vm234, %v4008, 0
    %v4056 = vsel %vm234, %v4009, 0
    %v4059 = vsel %vm234, %v4010, 0
    %v4062 = vsel %vm234, %v4011, 0
    %v4065 = vsel %vm234, %v4012, 0
    %v4068 = vsel %vm234, %v4013, 0
    %v4071 = vsel %vm234, %v4014, 0
    %v4074 = vsel %vm234, %v4015, 0
    %v4077 = vsel %vm234, %v4016, 0
    %v4080 = vsel %vm234, %v4017, 0
    %v4083 = vsel %vm234, %v4018, 0
    %v4086 = vsel %vm234, %v4019, 0
    %v4089 = vsel %vm234, %v4020, 0
    %v4092 = vsel %vm234, %v4021, 0
    %v4095 = vsel %vm234, %v4022, 0
    %v4098 = vsel %vm234, %v4023, 0
    %v4101 = vsel %vm234, %v4024, 0
    %v4104 = vsel %vm234, %v4025, 0
    %v4107 = vsel %vm234, %v4026, 0
    %v4110 = vsel %vm234, %v4027, 0
    %v4113 = vsel %vm234, %v4028, 0
    %v4116 = vsel %vm234, %v4029, 0
    %v4119 = vsel %vm234, %v4030, 0
    %v4122 = vsel %vm234, %v4031, 0
    %v4125 = vsel %vm234, %v4032, 0
    %v4128 = vsel %vm234, %v4033, 0
    %4130 = vmatpush.msra.mxu0 0.0
    %4131 = vmatpush.msra.mxu0 0.0
    %4132 = vmatpush.msra.mxu0 0.0
    %4133 = vmatpush.msra.mxu0 0.0
    %4134 = vmatpush.msra.mxu0 0.0
    %4135 = vmatpush.msra.mxu0 0.0
    %4136 = vmatpush.msra.mxu0 0.0
    %4137 = vmatpush.msra.mxu0 0.0
    %4138 = vmatpush.msra.mxu0 0.0
    %4139 = vmatpush.msra.mxu0 0.0
    %4140 = vmatpush.msra.mxu0 0.0
    %4141 = vmatpush.msra.mxu0 0.0
    %4142 = vmatpush.msra.mxu0 0.0
    %4143 = vmatpush.msra.mxu0 0.0
    %4144 = vmatpush.msra.mxu0 %v4035
    %4145 = vmatpush.msra.mxu0 %v3970
    %4146 = vmatmul.f32.gmra.mxu0 %v405
    %v4147 = vpop.f32.mrf.mxu0
    %v4148 = vadd.f32 0.0, %v4147
    %4149 = vmatmul.f32.gmra.mxu0 %v408
    %v4150 = vpop.f32.mrf.mxu0
    %v4151 = vadd.f32 0.0, %v4150
    %4152 = vdwg.mxu0
    %4153 = vmatpush.msra.mxu0 0.0
    %4154 = vmatpush.msra.mxu0 0.0
    %4155 = vmatpush.msra.mxu0 0.0
    %4156 = vmatpush.msra.mxu0 0.0
    %4157 = vmatpush.msra.mxu0 0.0
    %4158 = vmatpush.msra.mxu0 0.0
    %4159 = vmatpush.msra.mxu0 0.0
    %4160 = vmatpush.msra.mxu0 0.0
    %4161 = vmatpush.msra.mxu0 0.0
    %4162 = vmatpush.msra.mxu0 0.0
    %4163 = vmatpush.msra.mxu0 0.0
    %4164 = vmatpush.msra.mxu0 0.0
    %4165 = vmatpush.msra.mxu0 0.0
    %4166 = vmatpush.msra.mxu0 0.0
    %4167 = vmatpush.msra.mxu0 %v4038
    %4168 = vmatpush.msra.mxu0 %v3971
    %4169 = vmatmul.f32.gmra.mxu0 %v405
    %v4170 = vpop.f32.mrf.mxu0
    %v4171 = vadd.f32 0.0, %v4170
    %4172 = vmatmul.f32.gmra.mxu0 %v408
    %v4173 = vpop.f32.mrf.mxu0
    %v4174 = vadd.f32 0.0, %v4173
    %4175 = vdwg.mxu0
    %4176 = vmatpush.msra.mxu0 0.0
    %4177 = vmatpush.msra.mxu0 0.0
    %4178 = vmatpush.msra.mxu0 0.0
    %4179 = vmatpush.msra.mxu0 0.0
    %4180 = vmatpush.msra.mxu0 0.0
    %4181 = vmatpush.msra.mxu0 0.0
    %4182 = vmatpush.msra.mxu0 0.0
    %4183 = vmatpush.msra.mxu0 0.0
    %4184 = vmatpush.msra.mxu0 0.0
    %4185 = vmatpush.msra.mxu0 0.0
    %4186 = vmatpush.msra.mxu0 0.0
    %4187 = vmatpush.msra.mxu0 0.0
    %4188 = vmatpush.msra.mxu0 0.0
    %4189 = vmatpush.msra.mxu0 0.0
    %4190 = vmatpush.msra.mxu0 %v4041
    %4191 = vmatpush.msra.mxu0 %v3972
    %4192 = vmatmul.f32.gmra.mxu0 %v405
    %v4193 = vpop.f32.mrf.mxu0
    %v4194 = vadd.f32 0.0, %v4193
    %4195 = vmatmul.f32.gmra.mxu0 %v408
    %v4196 = vpop.f32.mrf.mxu0
    %v4197 = vadd.f32 0.0, %v4196
    %4198 = vdwg.mxu0
    %4199 = vmatpush.msra.mxu0 0.0
    %4200 = vmatpush.msra.mxu0 0.0
    %4201 = vmatpush.msra.mxu0 0.0
    %4202 = vmatpush.msra.mxu0 0.0
    %4203 = vmatpush.msra.mxu0 0.0
    %4204 = vmatpush.msra.mxu0 0.0
    %4205 = vmatpush.msra.mxu0 0.0
    %4206 = vmatpush.msra.mxu0 0.0
    %4207 = vmatpush.msra.mxu0 0.0
    %4208 = vmatpush.msra.mxu0 0.0
    %4209 = vmatpush.msra.mxu0 0.0
    %4210 = vmatpush.msra.mxu0 0.0
    %4211 = vmatpush.msra.mxu0 0.0
    %4212 = vmatpush.msra.mxu0 0.0
    %4213 = vmatpush.msra.mxu0 %v4044
    %4214 = vmatpush.msra.mxu0 %v3973
    %4215 = vmatmul.f32.gmra.mxu0 %v405
    %v4216 = vpop.f32.mrf.mxu0
    %v4217 = vadd.f32 0.0, %v4216
    %4218 = vmatmul.f32.gmra.mxu0 %v408
    %v4219 = vpop.f32.mrf.mxu0
    %v4220 = vadd.f32 0.0, %v4219
    %4221 = vdwg.mxu0
    %4222 = vmatpush.msra.mxu0 0.0
    %4223 = vmatpush.msra.mxu0 0.0
    %4224 = vmatpush.msra.mxu0 0.0
    %4225 = vmatpush.msra.mxu0 0.0
    %4226 = vmatpush.msra.mxu0 0.0
    %4227 = vmatpush.msra.mxu0 0.0
    %4228 = vmatpush.msra.mxu0 0.0
    %4229 = vmatpush.msra.mxu0 0.0
    %4230 = vmatpush.msra.mxu0 0.0
    %4231 = vmatpush.msra.mxu0 0.0
    %4232 = vmatpush.msra.mxu0 0.0
    %4233 = vmatpush.msra.mxu0 0.0
    %4234 = vmatpush.msra.mxu0 0.0
    %4235 = vmatpush.msra.mxu0 0.0
    %4236 = vmatpush.msra.mxu0 %v4047
    %4237 = vmatpush.msra.mxu0 %v3974
    %4238 = vmatmul.f32.gmra.mxu0 %v405
    %v4239 = vpop.f32.mrf.mxu0
    %v4240 = vadd.f32 0.0, %v4239
    %4241 = vmatmul.f32.gmra.mxu0 %v408
    %v4242 = vpop.f32.mrf.mxu0
    %v4243 = vadd.f32 0.0, %v4242
    %4244 = vdwg.mxu0
    %4245 = vmatpush.msra.mxu0 0.0
    %4246 = vmatpush.msra.mxu0 0.0
    %4247 = vmatpush.msra.mxu0 0.0
    %4248 = vmatpush.msra.mxu0 0.0
    %4249 = vmatpush.msra.mxu0 0.0
    %4250 = vmatpush.msra.mxu0 0.0
    %4251 = vmatpush.msra.mxu0 0.0
    %4252 = vmatpush.msra.mxu0 0.0
    %4253 = vmatpush.msra.mxu0 0.0
    %4254 = vmatpush.msra.mxu0 0.0
    %4255 = vmatpush.msra.mxu0 0.0
    %4256 = vmatpush.msra.mxu0 0.0
    %4257 = vmatpush.msra.mxu0 0.0
    %4258 = vmatpush.msra.mxu0 0.0
    %4259 = vmatpush.msra.mxu0 %v4050
    %4260 = vmatpush.msra.mxu0 %v3975
    %4261 = vmatmul.f32.gmra.mxu0 %v405
    %v4262 = vpop.f32.mrf.mxu0
    %v4263 = vadd.f32 0.0, %v4262
    %4264 = vmatmul.f32.gmra.mxu0 %v408
    %v4265 = vpop.f32.mrf.mxu0
    %v4266 = vadd.f32 0.0, %v4265
    %4267 = vdwg.mxu0
    %4268 = vmatpush.msra.mxu0 0.0
    %4269 = vmatpush.msra.mxu0 0.0
    %4270 = vmatpush.msra.mxu0 0.0
    %4271 = vmatpush.msra.mxu0 0.0
    %4272 = vmatpush.msra.mxu0 0.0
    %4273 = vmatpush.msra.mxu0 0.0
    %4274 = vmatpush.msra.mxu0 0.0
    %4275 = vmatpush.msra.mxu0 0.0
    %4276 = vmatpush.msra.mxu0 0.0
    %4277 = vmatpush.msra.mxu0 0.0
    %4278 = vmatpush.msra.mxu0 0.0
    %4279 = vmatpush.msra.mxu0 0.0
    %4280 = vmatpush.msra.mxu0 0.0
    %4281 = vmatpush.msra.mxu0 0.0
    %4282 = vmatpush.msra.mxu0 %v4053
    %4283 = vmatpush.msra.mxu0 %v3976
    %4284 = vmatmul.f32.gmra.mxu0 %v405
    %v4285 = vpop.f32.mrf.mxu0
    %v4286 = vadd.f32 0.0, %v4285
    %4287 = vmatmul.f32.gmra.mxu0 %v408
    %v4288 = vpop.f32.mrf.mxu0
    %v4289 = vadd.f32 0.0, %v4288
    %4290 = vdwg.mxu0
    %4291 = vmatpush.msra.mxu0 0.0
    %4292 = vmatpush.msra.mxu0 0.0
    %4293 = vmatpush.msra.mxu0 0.0
    %4294 = vmatpush.msra.mxu0 0.0
    %4295 = vmatpush.msra.mxu0 0.0
    %4296 = vmatpush.msra.mxu0 0.0
    %4297 = vmatpush.msra.mxu0 0.0
    %4298 = vmatpush.msra.mxu0 0.0
    %4299 = vmatpush.msra.mxu0 0.0
    %4300 = vmatpush.msra.mxu0 0.0
    %4301 = vmatpush.msra.mxu0 0.0
    %4302 = vmatpush.msra.mxu0 0.0
    %4303 = vmatpush.msra.mxu0 0.0
    %4304 = vmatpush.msra.mxu0 0.0
    %4305 = vmatpush.msra.mxu0 %v4056
    %4306 = vmatpush.msra.mxu0 %v3977
    %4307 = vmatmul.f32.gmra.mxu0 %v405
    %v4308 = vpop.f32.mrf.mxu0
    %v4309 = vadd.f32 0.0, %v4308
    %4310 = vmatmul.f32.gmra.mxu0 %v408
    %v4311 = vpop.f32.mrf.mxu0
    %v4312 = vadd.f32 0.0, %v4311
    %4313 = vdwg.mxu0
    %4314 = vmatpush.msra.mxu0 0.0
    %4315 = vmatpush.msra.mxu0 0.0
    %4316 = vmatpush.msra.mxu0 0.0
    %4317 = vmatpush.msra.mxu0 0.0
    %4318 = vmatpush.msra.mxu0 0.0
    %4319 = vmatpush.msra.mxu0 0.0
    %4320 = vmatpush.msra.mxu0 0.0
    %4321 = vmatpush.msra.mxu0 0.0
    %4322 = vmatpush.msra.mxu0 0.0
    %4323 = vmatpush.msra.mxu0 0.0
    %4324 = vmatpush.msra.mxu0 0.0
    %4325 = vmatpush.msra.mxu0 0.0
    %4326 = vmatpush.msra.mxu0 0.0
    %4327 = vmatpush.msra.mxu0 0.0
    %4328 = vmatpush.msra.mxu0 %v4059
    %4329 = vmatpush.msra.mxu0 %v3978
    %4330 = vmatmul.f32.gmra.mxu0 %v405
    %v4331 = vpop.f32.mrf.mxu0
    %v4332 = vadd.f32 0.0, %v4331
    %4333 = vmatmul.f32.gmra.mxu0 %v408
    %v4334 = vpop.f32.mrf.mxu0
    %v4335 = vadd.f32 0.0, %v4334
    %4336 = vdwg.mxu0
    %4337 = vmatpush.msra.mxu0 0.0
    %4338 = vmatpush.msra.mxu0 0.0
    %4339 = vmatpush.msra.mxu0 0.0
    %4340 = vmatpush.msra.mxu0 0.0
    %4341 = vmatpush.msra.mxu0 0.0
    %4342 = vmatpush.msra.mxu0 0.0
    %4343 = vmatpush.msra.mxu0 0.0
    %4344 = vmatpush.msra.mxu0 0.0
    %4345 = vmatpush.msra.mxu0 0.0
    %4346 = vmatpush.msra.mxu0 0.0
    %4347 = vmatpush.msra.mxu0 0.0
    %4348 = vmatpush.msra.mxu0 0.0
    %4349 = vmatpush.msra.mxu0 0.0
    %4350 = vmatpush.msra.mxu0 0.0
    %4351 = vmatpush.msra.mxu0 %v4062
    %4352 = vmatpush.msra.mxu0 %v3979
    %4353 = vmatmul.f32.gmra.mxu0 %v405
    %v4354 = vpop.f32.mrf.mxu0
    %v4355 = vadd.f32 0.0, %v4354
    %4356 = vmatmul.f32.gmra.mxu0 %v408
    %v4357 = vpop.f32.mrf.mxu0
    %v4358 = vadd.f32 0.0, %v4357
    %4359 = vdwg.mxu0
    %4360 = vmatpush.msra.mxu0 0.0
    %4361 = vmatpush.msra.mxu0 0.0
    %4362 = vmatpush.msra.mxu0 0.0
    %4363 = vmatpush.msra.mxu0 0.0
    %4364 = vmatpush.msra.mxu0 0.0
    %4365 = vmatpush.msra.mxu0 0.0
    %4366 = vmatpush.msra.mxu0 0.0
    %4367 = vmatpush.msra.mxu0 0.0
    %4368 = vmatpush.msra.mxu0 0.0
    %4369 = vmatpush.msra.mxu0 0.0
    %4370 = vmatpush.msra.mxu0 0.0
    %4371 = vmatpush.msra.mxu0 0.0
    %4372 = vmatpush.msra.mxu0 0.0
    %4373 = vmatpush.msra.mxu0 0.0
    %4374 = vmatpush.msra.mxu0 %v4065
    %4375 = vmatpush.msra.mxu0 %v3980
    %4376 = vmatmul.f32.gmra.mxu0 %v405
    %v4377 = vpop.f32.mrf.mxu0
    %v4378 = vadd.f32 0.0, %v4377
    %4379 = vmatmul.f32.gmra.mxu0 %v408
    %v4380 = vpop.f32.mrf.mxu0
    %v4381 = vadd.f32 0.0, %v4380
    %4382 = vdwg.mxu0
    %4383 = vmatpush.msra.mxu0 0.0
    %4384 = vmatpush.msra.mxu0 0.0
    %4385 = vmatpush.msra.mxu0 0.0
    %4386 = vmatpush.msra.mxu0 0.0
    %4387 = vmatpush.msra.mxu0 0.0
    %4388 = vmatpush.msra.mxu0 0.0
    %4389 = vmatpush.msra.mxu0 0.0
    %4390 = vmatpush.msra.mxu0 0.0
    %4391 = vmatpush.msra.mxu0 0.0
    %4392 = vmatpush.msra.mxu0 0.0
    %4393 = vmatpush.msra.mxu0 0.0
    %4394 = vmatpush.msra.mxu0 0.0
    %4395 = vmatpush.msra.mxu0 0.0
    %4396 = vmatpush.msra.mxu0 0.0
    %4397 = vmatpush.msra.mxu0 %v4068
    %4398 = vmatpush.msra.mxu0 %v3981
    %4399 = vmatmul.f32.gmra.mxu0 %v405
    %v4400 = vpop.f32.mrf.mxu0
    %v4401 = vadd.f32 0.0, %v4400
    %4402 = vmatmul.f32.gmra.mxu0 %v408
    %v4403 = vpop.f32.mrf.mxu0
    %v4404 = vadd.f32 0.0, %v4403
    %4405 = vdwg.mxu0
    %4406 = vmatpush.msra.mxu0 0.0
    %4407 = vmatpush.msra.mxu0 0.0
    %4408 = vmatpush.msra.mxu0 0.0
    %4409 = vmatpush.msra.mxu0 0.0
    %4410 = vmatpush.msra.mxu0 0.0
    %4411 = vmatpush.msra.mxu0 0.0
    %4412 = vmatpush.msra.mxu0 0.0
    %4413 = vmatpush.msra.mxu0 0.0
    %4414 = vmatpush.msra.mxu0 0.0
    %4415 = vmatpush.msra.mxu0 0.0
    %4416 = vmatpush.msra.mxu0 0.0
    %4417 = vmatpush.msra.mxu0 0.0
    %4418 = vmatpush.msra.mxu0 0.0
    %4419 = vmatpush.msra.mxu0 0.0
    %4420 = vmatpush.msra.mxu0 %v4071
    %4421 = vmatpush.msra.mxu0 %v3982
    %4422 = vmatmul.f32.gmra.mxu0 %v405
    %v4423 = vpop.f32.mrf.mxu0
    %v4424 = vadd.f32 0.0, %v4423
    %4425 = vmatmul.f32.gmra.mxu0 %v408
    %v4426 = vpop.f32.mrf.mxu0
    %v4427 = vadd.f32 0.0, %v4426
    %4428 = vdwg.mxu0
    %4429 = vmatpush.msra.mxu0 0.0
    %4430 = vmatpush.msra.mxu0 0.0
    %4431 = vmatpush.msra.mxu0 0.0
    %4432 = vmatpush.msra.mxu0 0.0
    %4433 = vmatpush.msra.mxu0 0.0
    %4434 = vmatpush.msra.mxu0 0.0
    %4435 = vmatpush.msra.mxu0 0.0
    %4436 = vmatpush.msra.mxu0 0.0
    %4437 = vmatpush.msra.mxu0 0.0
    %4438 = vmatpush.msra.mxu0 0.0
    %4439 = vmatpush.msra.mxu0 0.0
    %4440 = vmatpush.msra.mxu0 0.0
    %4441 = vmatpush.msra.mxu0 0.0
    %4442 = vmatpush.msra.mxu0 0.0
    %4443 = vmatpush.msra.mxu0 %v4074
    %4444 = vmatpush.msra.mxu0 %v3983
    %4445 = vmatmul.f32.gmra.mxu0 %v405
    %v4446 = vpop.f32.mrf.mxu0
    %v4447 = vadd.f32 0.0, %v4446
    %4448 = vmatmul.f32.gmra.mxu0 %v408
    %v4449 = vpop.f32.mrf.mxu0
    %v4450 = vadd.f32 0.0, %v4449
    %4451 = vdwg.mxu0
    %4452 = vmatpush.msra.mxu0 0.0
    %4453 = vmatpush.msra.mxu0 0.0
    %4454 = vmatpush.msra.mxu0 0.0
    %4455 = vmatpush.msra.mxu0 0.0
    %4456 = vmatpush.msra.mxu0 0.0
    %4457 = vmatpush.msra.mxu0 0.0
    %4458 = vmatpush.msra.mxu0 0.0
    %4459 = vmatpush.msra.mxu0 0.0
    %4460 = vmatpush.msra.mxu0 0.0
    %4461 = vmatpush.msra.mxu0 0.0
    %4462 = vmatpush.msra.mxu0 0.0
    %4463 = vmatpush.msra.mxu0 0.0
    %4464 = vmatpush.msra.mxu0 0.0
    %4465 = vmatpush.msra.mxu0 0.0
    %4466 = vmatpush.msra.mxu0 %v4077
    %4467 = vmatpush.msra.mxu0 %v3984
    %4468 = vmatmul.f32.gmra.mxu0 %v405
    %v4469 = vpop.f32.mrf.mxu0
    %v4470 = vadd.f32 0.0, %v4469
    %4471 = vmatmul.f32.gmra.mxu0 %v408
    %v4472 = vpop.f32.mrf.mxu0
    %v4473 = vadd.f32 0.0, %v4472
    %4474 = vdwg.mxu0
    %4475 = vmatpush.msra.mxu0 0.0
    %4476 = vmatpush.msra.mxu0 0.0
    %4477 = vmatpush.msra.mxu0 0.0
    %4478 = vmatpush.msra.mxu0 0.0
    %4479 = vmatpush.msra.mxu0 0.0
    %4480 = vmatpush.msra.mxu0 0.0
    %4481 = vmatpush.msra.mxu0 0.0
    %4482 = vmatpush.msra.mxu0 0.0
    %4483 = vmatpush.msra.mxu0 0.0
    %4484 = vmatpush.msra.mxu0 0.0
    %4485 = vmatpush.msra.mxu0 0.0
    %4486 = vmatpush.msra.mxu0 0.0
    %4487 = vmatpush.msra.mxu0 0.0
    %4488 = vmatpush.msra.mxu0 0.0
    %4489 = vmatpush.msra.mxu0 %v4080
    %4490 = vmatpush.msra.mxu0 %v3985
    %4491 = vmatmul.f32.gmra.mxu0 %v405
    %v4492 = vpop.f32.mrf.mxu0
    %v4493 = vadd.f32 0.0, %v4492
    %4494 = vmatmul.f32.gmra.mxu0 %v408
    %v4495 = vpop.f32.mrf.mxu0
    %v4496 = vadd.f32 0.0, %v4495
    %4497 = vdwg.mxu0
    %4498 = vmatpush.msra.mxu0 0.0
    %4499 = vmatpush.msra.mxu0 0.0
    %4500 = vmatpush.msra.mxu0 0.0
    %4501 = vmatpush.msra.mxu0 0.0
    %4502 = vmatpush.msra.mxu0 0.0
    %4503 = vmatpush.msra.mxu0 0.0
    %4504 = vmatpush.msra.mxu0 0.0
    %4505 = vmatpush.msra.mxu0 0.0
    %4506 = vmatpush.msra.mxu0 0.0
    %4507 = vmatpush.msra.mxu0 0.0
    %4508 = vmatpush.msra.mxu0 0.0
    %4509 = vmatpush.msra.mxu0 0.0
    %4510 = vmatpush.msra.mxu0 0.0
    %4511 = vmatpush.msra.mxu0 0.0
    %4512 = vmatpush.msra.mxu0 %v4083
    %4513 = vmatpush.msra.mxu0 %v3986
    %4514 = vmatmul.f32.gmra.mxu0 %v405
    %v4515 = vpop.f32.mrf.mxu0
    %v4516 = vadd.f32 0.0, %v4515
    %4517 = vmatmul.f32.gmra.mxu0 %v408
    %v4518 = vpop.f32.mrf.mxu0
    %v4519 = vadd.f32 0.0, %v4518
    %4520 = vdwg.mxu0
    %4521 = vmatpush.msra.mxu0 0.0
    %4522 = vmatpush.msra.mxu0 0.0
    %4523 = vmatpush.msra.mxu0 0.0
    %4524 = vmatpush.msra.mxu0 0.0
    %4525 = vmatpush.msra.mxu0 0.0
    %4526 = vmatpush.msra.mxu0 0.0
    %4527 = vmatpush.msra.mxu0 0.0
    %4528 = vmatpush.msra.mxu0 0.0
    %4529 = vmatpush.msra.mxu0 0.0
    %4530 = vmatpush.msra.mxu0 0.0
    %4531 = vmatpush.msra.mxu0 0.0
    %4532 = vmatpush.msra.mxu0 0.0
    %4533 = vmatpush.msra.mxu0 0.0
    %4534 = vmatpush.msra.mxu0 0.0
    %4535 = vmatpush.msra.mxu0 %v4086
    %4536 = vmatpush.msra.mxu0 %v3987
    %4537 = vmatmul.f32.gmra.mxu0 %v405
    %v4538 = vpop.f32.mrf.mxu0
    %v4539 = vadd.f32 0.0, %v4538
    %4540 = vmatmul.f32.gmra.mxu0 %v408
    %v4541 = vpop.f32.mrf.mxu0
    %v4542 = vadd.f32 0.0, %v4541
    %4543 = vdwg.mxu0
    %4544 = vmatpush.msra.mxu0 0.0
    %4545 = vmatpush.msra.mxu0 0.0
    %4546 = vmatpush.msra.mxu0 0.0
    %4547 = vmatpush.msra.mxu0 0.0
    %4548 = vmatpush.msra.mxu0 0.0
    %4549 = vmatpush.msra.mxu0 0.0
    %4550 = vmatpush.msra.mxu0 0.0
    %4551 = vmatpush.msra.mxu0 0.0
    %4552 = vmatpush.msra.mxu0 0.0
    %4553 = vmatpush.msra.mxu0 0.0
    %4554 = vmatpush.msra.mxu0 0.0
    %4555 = vmatpush.msra.mxu0 0.0
    %4556 = vmatpush.msra.mxu0 0.0
    %4557 = vmatpush.msra.mxu0 0.0
    %4558 = vmatpush.msra.mxu0 %v4089
    %4559 = vmatpush.msra.mxu0 %v3988
    %4560 = vmatmul.f32.gmra.mxu0 %v405
    %v4561 = vpop.f32.mrf.mxu0
    %v4562 = vadd.f32 0.0, %v4561
    %4563 = vmatmul.f32.gmra.mxu0 %v408
    %v4564 = vpop.f32.mrf.mxu0
    %v4565 = vadd.f32 0.0, %v4564
    %4566 = vdwg.mxu0
    %4567 = vmatpush.msra.mxu0 0.0
    %4568 = vmatpush.msra.mxu0 0.0
    %4569 = vmatpush.msra.mxu0 0.0
    %4570 = vmatpush.msra.mxu0 0.0
    %4571 = vmatpush.msra.mxu0 0.0
    %4572 = vmatpush.msra.mxu0 0.0
    %4573 = vmatpush.msra.mxu0 0.0
    %4574 = vmatpush.msra.mxu0 0.0
    %4575 = vmatpush.msra.mxu0 0.0
    %4576 = vmatpush.msra.mxu0 0.0
    %4577 = vmatpush.msra.mxu0 0.0
    %4578 = vmatpush.msra.mxu0 0.0
    %4579 = vmatpush.msra.mxu0 0.0
    %4580 = vmatpush.msra.mxu0 0.0
    %4581 = vmatpush.msra.mxu0 %v4092
    %4582 = vmatpush.msra.mxu0 %v3989
    %4583 = vmatmul.f32.gmra.mxu0 %v405
    %v4584 = vpop.f32.mrf.mxu0
    %v4585 = vadd.f32 0.0, %v4584
    %4586 = vmatmul.f32.gmra.mxu0 %v408
    %v4587 = vpop.f32.mrf.mxu0
    %v4588 = vadd.f32 0.0, %v4587
    %4589 = vdwg.mxu0
    %4590 = vmatpush.msra.mxu0 0.0
    %4591 = vmatpush.msra.mxu0 0.0
    %4592 = vmatpush.msra.mxu0 0.0
    %4593 = vmatpush.msra.mxu0 0.0
    %4594 = vmatpush.msra.mxu0 0.0
    %4595 = vmatpush.msra.mxu0 0.0
    %4596 = vmatpush.msra.mxu0 0.0
    %4597 = vmatpush.msra.mxu0 0.0
    %4598 = vmatpush.msra.mxu0 0.0
    %4599 = vmatpush.msra.mxu0 0.0
    %4600 = vmatpush.msra.mxu0 0.0
    %4601 = vmatpush.msra.mxu0 0.0
    %4602 = vmatpush.msra.mxu0 0.0
    %4603 = vmatpush.msra.mxu0 0.0
    %4604 = vmatpush.msra.mxu0 %v4095
    %4605 = vmatpush.msra.mxu0 %v3990
    %4606 = vmatmul.f32.gmra.mxu0 %v405
    %v4607 = vpop.f32.mrf.mxu0
    %v4608 = vadd.f32 0.0, %v4607
    %4609 = vmatmul.f32.gmra.mxu0 %v408
    %v4610 = vpop.f32.mrf.mxu0
    %v4611 = vadd.f32 0.0, %v4610
    %4612 = vdwg.mxu0
    %4613 = vmatpush.msra.mxu0 0.0
    %4614 = vmatpush.msra.mxu0 0.0
    %4615 = vmatpush.msra.mxu0 0.0
    %4616 = vmatpush.msra.mxu0 0.0
    %4617 = vmatpush.msra.mxu0 0.0
    %4618 = vmatpush.msra.mxu0 0.0
    %4619 = vmatpush.msra.mxu0 0.0
    %4620 = vmatpush.msra.mxu0 0.0
    %4621 = vmatpush.msra.mxu0 0.0
    %4622 = vmatpush.msra.mxu0 0.0
    %4623 = vmatpush.msra.mxu0 0.0
    %4624 = vmatpush.msra.mxu0 0.0
    %4625 = vmatpush.msra.mxu0 0.0
    %4626 = vmatpush.msra.mxu0 0.0
    %4627 = vmatpush.msra.mxu0 %v4098
    %4628 = vmatpush.msra.mxu0 %v3991
    %4629 = vmatmul.f32.gmra.mxu0 %v405
    %v4630 = vpop.f32.mrf.mxu0
    %v4631 = vadd.f32 0.0, %v4630
    %4632 = vmatmul.f32.gmra.mxu0 %v408
    %v4633 = vpop.f32.mrf.mxu0
    %v4634 = vadd.f32 0.0, %v4633
    %4635 = vdwg.mxu0
    %4636 = vmatpush.msra.mxu0 0.0
    %4637 = vmatpush.msra.mxu0 0.0
    %4638 = vmatpush.msra.mxu0 0.0
    %4639 = vmatpush.msra.mxu0 0.0
    %4640 = vmatpush.msra.mxu0 0.0
    %4641 = vmatpush.msra.mxu0 0.0
    %4642 = vmatpush.msra.mxu0 0.0
    %4643 = vmatpush.msra.mxu0 0.0
    %4644 = vmatpush.msra.mxu0 0.0
    %4645 = vmatpush.msra.mxu0 0.0
    %4646 = vmatpush.msra.mxu0 0.0
    %4647 = vmatpush.msra.mxu0 0.0
    %4648 = vmatpush.msra.mxu0 0.0
    %4649 = vmatpush.msra.mxu0 0.0
    %4650 = vmatpush.msra.mxu0 %v4101
    %4651 = vmatpush.msra.mxu0 %v3992
    %4652 = vmatmul.f32.gmra.mxu0 %v405
    %v4653 = vpop.f32.mrf.mxu0
    %v4654 = vadd.f32 0.0, %v4653
    %4655 = vmatmul.f32.gmra.mxu0 %v408
    %v4656 = vpop.f32.mrf.mxu0
    %v4657 = vadd.f32 0.0, %v4656
    %4658 = vdwg.mxu0
    %4659 = vmatpush.msra.mxu0 0.0
    %4660 = vmatpush.msra.mxu0 0.0
    %4661 = vmatpush.msra.mxu0 0.0
    %4662 = vmatpush.msra.mxu0 0.0
    %4663 = vmatpush.msra.mxu0 0.0
    %4664 = vmatpush.msra.mxu0 0.0
    %4665 = vmatpush.msra.mxu0 0.0
    %4666 = vmatpush.msra.mxu0 0.0
    %4667 = vmatpush.msra.mxu0 0.0
    %4668 = vmatpush.msra.mxu0 0.0
    %4669 = vmatpush.msra.mxu0 0.0
    %4670 = vmatpush.msra.mxu0 0.0
    %4671 = vmatpush.msra.mxu0 0.0
    %4672 = vmatpush.msra.mxu0 0.0
    %4673 = vmatpush.msra.mxu0 %v4104
    %4674 = vmatpush.msra.mxu0 %v3993
    %4675 = vmatmul.f32.gmra.mxu0 %v405
    %v4676 = vpop.f32.mrf.mxu0
    %v4677 = vadd.f32 0.0, %v4676
    %4678 = vmatmul.f32.gmra.mxu0 %v408
    %v4679 = vpop.f32.mrf.mxu0
    %v4680 = vadd.f32 0.0, %v4679
    %4681 = vdwg.mxu0
    %4682 = vmatpush.msra.mxu0 0.0
    %4683 = vmatpush.msra.mxu0 0.0
    %4684 = vmatpush.msra.mxu0 0.0
    %4685 = vmatpush.msra.mxu0 0.0
    %4686 = vmatpush.msra.mxu0 0.0
    %4687 = vmatpush.msra.mxu0 0.0
    %4688 = vmatpush.msra.mxu0 0.0
    %4689 = vmatpush.msra.mxu0 0.0
    %4690 = vmatpush.msra.mxu0 0.0
    %4691 = vmatpush.msra.mxu0 0.0
    %4692 = vmatpush.msra.mxu0 0.0
    %4693 = vmatpush.msra.mxu0 0.0
    %4694 = vmatpush.msra.mxu0 0.0
    %4695 = vmatpush.msra.mxu0 0.0
    %4696 = vmatpush.msra.mxu0 %v4107
    %4697 = vmatpush.msra.mxu0 %v3994
    %4698 = vmatmul.f32.gmra.mxu0 %v405
    %v4699 = vpop.f32.mrf.mxu0
    %v4700 = vadd.f32 0.0, %v4699
    %4701 = vmatmul.f32.gmra.mxu0 %v408
    %v4702 = vpop.f32.mrf.mxu0
    %v4703 = vadd.f32 0.0, %v4702
    %4704 = vdwg.mxu0
    %4705 = vmatpush.msra.mxu0 0.0
    %4706 = vmatpush.msra.mxu0 0.0
    %4707 = vmatpush.msra.mxu0 0.0
    %4708 = vmatpush.msra.mxu0 0.0
    %4709 = vmatpush.msra.mxu0 0.0
    %4710 = vmatpush.msra.mxu0 0.0
    %4711 = vmatpush.msra.mxu0 0.0
    %4712 = vmatpush.msra.mxu0 0.0
    %4713 = vmatpush.msra.mxu0 0.0
    %4714 = vmatpush.msra.mxu0 0.0
    %4715 = vmatpush.msra.mxu0 0.0
    %4716 = vmatpush.msra.mxu0 0.0
    %4717 = vmatpush.msra.mxu0 0.0
    %4718 = vmatpush.msra.mxu0 0.0
    %4719 = vmatpush.msra.mxu0 %v4110
    %4720 = vmatpush.msra.mxu0 %v3995
    %4721 = vmatmul.f32.gmra.mxu0 %v405
    %v4722 = vpop.f32.mrf.mxu0
    %v4723 = vadd.f32 0.0, %v4722
    %4724 = vmatmul.f32.gmra.mxu0 %v408
    %v4725 = vpop.f32.mrf.mxu0
    %v4726 = vadd.f32 0.0, %v4725
    %4727 = vdwg.mxu0
    %4728 = vmatpush.msra.mxu0 0.0
    %4729 = vmatpush.msra.mxu0 0.0
    %4730 = vmatpush.msra.mxu0 0.0
    %4731 = vmatpush.msra.mxu0 0.0
    %4732 = vmatpush.msra.mxu0 0.0
    %4733 = vmatpush.msra.mxu0 0.0
    %4734 = vmatpush.msra.mxu0 0.0
    %4735 = vmatpush.msra.mxu0 0.0
    %4736 = vmatpush.msra.mxu0 0.0
    %4737 = vmatpush.msra.mxu0 0.0
    %4738 = vmatpush.msra.mxu0 0.0
    %4739 = vmatpush.msra.mxu0 0.0
    %4740 = vmatpush.msra.mxu0 0.0
    %4741 = vmatpush.msra.mxu0 0.0
    %4742 = vmatpush.msra.mxu0 %v4113
    %4743 = vmatpush.msra.mxu0 %v3996
    %4744 = vmatmul.f32.gmra.mxu0 %v405
    %v4745 = vpop.f32.mrf.mxu0
    %v4746 = vadd.f32 0.0, %v4745
    %4747 = vmatmul.f32.gmra.mxu0 %v408
    %v4748 = vpop.f32.mrf.mxu0
    %v4749 = vadd.f32 0.0, %v4748
    %4750 = vdwg.mxu0
    %4751 = vmatpush.msra.mxu0 0.0
    %4752 = vmatpush.msra.mxu0 0.0
    %4753 = vmatpush.msra.mxu0 0.0
    %4754 = vmatpush.msra.mxu0 0.0
    %4755 = vmatpush.msra.mxu0 0.0
    %4756 = vmatpush.msra.mxu0 0.0
    %4757 = vmatpush.msra.mxu0 0.0
    %4758 = vmatpush.msra.mxu0 0.0
    %4759 = vmatpush.msra.mxu0 0.0
    %4760 = vmatpush.msra.mxu0 0.0
    %4761 = vmatpush.msra.mxu0 0.0
    %4762 = vmatpush.msra.mxu0 0.0
    %4763 = vmatpush.msra.mxu0 0.0
    %4764 = vmatpush.msra.mxu0 0.0
    %4765 = vmatpush.msra.mxu0 %v4116
    %4766 = vmatpush.msra.mxu0 %v3997
    %4767 = vmatmul.f32.gmra.mxu0 %v405
    %v4768 = vpop.f32.mrf.mxu0
    %v4769 = vadd.f32 0.0, %v4768
    %4770 = vmatmul.f32.gmra.mxu0 %v408
    %v4771 = vpop.f32.mrf.mxu0
    %v4772 = vadd.f32 0.0, %v4771
    %4773 = vdwg.mxu0
    %4774 = vmatpush.msra.mxu0 0.0
    %4775 = vmatpush.msra.mxu0 0.0
    %4776 = vmatpush.msra.mxu0 0.0
    %4777 = vmatpush.msra.mxu0 0.0
    %4778 = vmatpush.msra.mxu0 0.0
    %4779 = vmatpush.msra.mxu0 0.0
    %4780 = vmatpush.msra.mxu0 0.0
    %4781 = vmatpush.msra.mxu0 0.0
    %4782 = vmatpush.msra.mxu0 0.0
    %4783 = vmatpush.msra.mxu0 0.0
    %4784 = vmatpush.msra.mxu0 0.0
    %4785 = vmatpush.msra.mxu0 0.0
    %4786 = vmatpush.msra.mxu0 0.0
    %4787 = vmatpush.msra.mxu0 0.0
    %4788 = vmatpush.msra.mxu0 %v4119
    %4789 = vmatpush.msra.mxu0 %v3998
    %4790 = vmatmul.f32.gmra.mxu0 %v405
    %v4791 = vpop.f32.mrf.mxu0
    %v4792 = vadd.f32 0.0, %v4791
    %4793 = vmatmul.f32.gmra.mxu0 %v408
    %v4794 = vpop.f32.mrf.mxu0
    %v4795 = vadd.f32 0.0, %v4794
    %4796 = vdwg.mxu0
    %4797 = vmatpush.msra.mxu0 0.0
    %4798 = vmatpush.msra.mxu0 0.0
    %4799 = vmatpush.msra.mxu0 0.0
    %4800 = vmatpush.msra.mxu0 0.0
    %4801 = vmatpush.msra.mxu0 0.0
    %4802 = vmatpush.msra.mxu0 0.0
    %4803 = vmatpush.msra.mxu0 0.0
    %4804 = vmatpush.msra.mxu0 0.0
    %4805 = vmatpush.msra.mxu0 0.0
    %4806 = vmatpush.msra.mxu0 0.0
    %4807 = vmatpush.msra.mxu0 0.0
    %4808 = vmatpush.msra.mxu0 0.0
    %4809 = vmatpush.msra.mxu0 0.0
    %4810 = vmatpush.msra.mxu0 0.0
    %4811 = vmatpush.msra.mxu0 %v4122
    %4812 = vmatpush.msra.mxu0 %v3999
    %4813 = vmatmul.f32.gmra.mxu0 %v405
    %v4814 = vpop.f32.mrf.mxu0
    %v4815 = vadd.f32 0.0, %v4814
    %4816 = vmatmul.f32.gmra.mxu0 %v408
    %v4817 = vpop.f32.mrf.mxu0
    %v4818 = vadd.f32 0.0, %v4817
    %4819 = vdwg.mxu0
    %4820 = vmatpush.msra.mxu0 0.0
    %4821 = vmatpush.msra.mxu0 0.0
    %4822 = vmatpush.msra.mxu0 0.0
    %4823 = vmatpush.msra.mxu0 0.0
    %4824 = vmatpush.msra.mxu0 0.0
    %4825 = vmatpush.msra.mxu0 0.0
    %4826 = vmatpush.msra.mxu0 0.0
    %4827 = vmatpush.msra.mxu0 0.0
    %4828 = vmatpush.msra.mxu0 0.0
    %4829 = vmatpush.msra.mxu0 0.0
    %4830 = vmatpush.msra.mxu0 0.0
    %4831 = vmatpush.msra.mxu0 0.0
    %4832 = vmatpush.msra.mxu0 0.0
    %4833 = vmatpush.msra.mxu0 0.0
    %4834 = vmatpush.msra.mxu0 %v4125
    %4835 = vmatpush.msra.mxu0 %v4000
    %4836 = vmatmul.f32.gmra.mxu0 %v405
    %v4837 = vpop.f32.mrf.mxu0
    %v4838 = vadd.f32 0.0, %v4837
    %4839 = vmatmul.f32.gmra.mxu0 %v408
    %v4840 = vpop.f32.mrf.mxu0
    %v4841 = vadd.f32 0.0, %v4840
    %4842 = vdwg.mxu0
    %4843 = vmatpush.msra.mxu0 0.0
    %4844 = vmatpush.msra.mxu0 0.0
    %4845 = vmatpush.msra.mxu0 0.0
    %4846 = vmatpush.msra.mxu0 0.0
    %4847 = vmatpush.msra.mxu0 0.0
    %4848 = vmatpush.msra.mxu0 0.0
    %4849 = vmatpush.msra.mxu0 0.0
    %4850 = vmatpush.msra.mxu0 0.0
    %4851 = vmatpush.msra.mxu0 0.0
    %4852 = vmatpush.msra.mxu0 0.0
    %4853 = vmatpush.msra.mxu0 0.0
    %4854 = vmatpush.msra.mxu0 0.0
    %4855 = vmatpush.msra.mxu0 0.0
    %4856 = vmatpush.msra.mxu0 0.0
    %4857 = vmatpush.msra.mxu0 %v4128
    %4858 = vmatpush.msra.mxu0 %v4001
    %4859 = vmatmul.f32.gmra.mxu0 %v405
    %v4860 = vpop.f32.mrf.mxu0
    %v4861 = vadd.f32 0.0, %v4860
    %4862 = vmatmul.f32.gmra.mxu0 %v408
    %v4863 = vpop.f32.mrf.mxu0
    %v4864 = vadd.f32 0.0, %v4863
    %4865 = vdwg.mxu0
    %4866 = vst [vmem:[#allocation30] sm:$0xff] %v4148
    %4867 = vst [vmem:[#allocation30 + $0x8] sm:$0xff] %v4171
    %4868 = vst [vmem:[#allocation30 + $0x10] sm:$0xff] %v4194
    %4869 = vst [vmem:[#allocation30 + $0x18] sm:$0xff] %v4217
    %4870 = vst [vmem:[#allocation30 + $0x20] sm:$0xff] %v4240
    %4871 = vst [vmem:[#allocation30 + $0x28] sm:$0xff] %v4263
    %4872 = vst [vmem:[#allocation30 + $0x30] sm:$0xff] %v4286
    %4873 = vst [vmem:[#allocation30 + $0x38] sm:$0xff] %v4309
    %4874 = vst [vmem:[#allocation30 + $0x40] sm:$0xff] %v4332
    %4875 = vst [vmem:[#allocation30 + $0x48] sm:$0xff] %v4355
    %4876 = vst [vmem:[#allocation30 + $0x50] sm:$0xff] %v4378
    %4877 = vst [vmem:[#allocation30 + $0x58] sm:$0xff] %v4401
    %4878 = vst [vmem:[#allocation30 + $0x60] sm:$0xff] %v4424
    %4879 = vst [vmem:[#allocation30 + $0x68] sm:$0xff] %v4447
    %4880 = vst [vmem:[#allocation30 + $0x70] sm:$0xff] %v4470
    %4881 = vst [vmem:[#allocation30 + $0x78] sm:$0xff] %v4493
    %4882 = vst [vmem:[#allocation30 + $0x80] sm:$0xff] %v4516
    %4883 = vst [vmem:[#allocation30 + $0x88] sm:$0xff] %v4539
    %4884 = vst [vmem:[#allocation30 + $0x90] sm:$0xff] %v4562
    %4885 = vst [vmem:[#allocation30 + $0x98] sm:$0xff] %v4585
    %4886 = vst [vmem:[#allocation30 + $0xa0] sm:$0xff] %v4608
    %4887 = vst [vmem:[#allocation30 + $0xa8] sm:$0xff] %v4631
    %4888 = vst [vmem:[#allocation30 + $0xb0] sm:$0xff] %v4654
    %4889 = vst [vmem:[#allocation30 + $0xb8] sm:$0xff] %v4677
    %4890 = vst [vmem:[#allocation30 + $0xc0] sm:$0xff] %v4700
    %4891 = vst [vmem:[#allocation30 + $0xc8] sm:$0xff] %v4723
    %4892 = vst [vmem:[#allocation30 + $0xd0] sm:$0xff] %v4746
    %4893 = vst [vmem:[#allocation30 + $0xd8] sm:$0xff] %v4769
    %4894 = vst [vmem:[#allocation30 + $0xe0] sm:$0xff] %v4792
    %4895 = vst [vmem:[#allocation30 + $0xe8] sm:$0xff] %v4815
    %4896 = vst [vmem:[#allocation30 + $0xf0] sm:$0xff] %v4838
    %4897 = vst [vmem:[#allocation30 + $0xf8] sm:$0xff] %v4861
    %4898 = vst [vmem:[#allocation30 + $0x100] sm:$0xff] %v4151
    %4899 = vst [vmem:[#allocation30 + $0x108] sm:$0xff] %v4174
    %4900 = vst [vmem:[#allocation30 + $0x110] sm:$0xff] %v4197
    %4901 = vst [vmem:[#allocation30 + $0x118] sm:$0xff] %v4220
    %4902 = vst [vmem:[#allocation30 + $0x120] sm:$0xff] %v4243
    %4903 = vst [vmem:[#allocation30 + $0x128] sm:$0xff] %v4266
    %4904 = vst [vmem:[#allocation30 + $0x130] sm:$0xff] %v4289
    %4905 = vst [vmem:[#allocation30 + $0x138] sm:$0xff] %v4312
    %4906 = vst [vmem:[#allocation30 + $0x140] sm:$0xff] %v4335
    %4907 = vst [vmem:[#allocation30 + $0x148] sm:$0xff] %v4358
    %4908 = vst [vmem:[#allocation30 + $0x150] sm:$0xff] %v4381
    %4909 = vst [vmem:[#allocation30 + $0x158] sm:$0xff] %v4404
    %4910 = vst [vmem:[#allocation30 + $0x160] sm:$0xff] %v4427
    %4911 = vst [vmem:[#allocation30 + $0x168] sm:$0xff] %v4450
    %4912 = vst [vmem:[#allocation30 + $0x170] sm:$0xff] %v4473
    %4913 = vst [vmem:[#allocation30 + $0x178] sm:$0xff] %v4496
    %4914 = vst [vmem:[#allocation30 + $0x180] sm:$0xff] %v4519
    %4915 = vst [vmem:[#allocation30 + $0x188] sm:$0xff] %v4542
    %4916 = vst [vmem:[#allocation30 + $0x190] sm:$0xff] %v4565
    %4917 = vst [vmem:[#allocation30 + $0x198] sm:$0xff] %v4588
    %4918 = vst [vmem:[#allocation30 + $0x1a0] sm:$0xff] %v4611
    %4919 = vst [vmem:[#allocation30 + $0x1a8] sm:$0xff] %v4634
    %4920 = vst [vmem:[#allocation30 + $0x1b0] sm:$0xff] %v4657
    %4921 = vst [vmem:[#allocation30 + $0x1b8] sm:$0xff] %v4680
    %4922 = vst [vmem:[#allocation30 + $0x1c0] sm:$0xff] %v4703
    %4923 = vst [vmem:[#allocation30 + $0x1c8] sm:$0xff] %v4726
    %4924 = vst [vmem:[#allocation30 + $0x1d0] sm:$0xff] %v4749
    %4925 = vst [vmem:[#allocation30 + $0x1d8] sm:$0xff] %v4772
    %4926 = vst [vmem:[#allocation30 + $0x1e0] sm:$0xff] %v4795
    %4927 = vst [vmem:[#allocation30 + $0x1e8] sm:$0xff] %v4818
    %4928 = vst [vmem:[#allocation30 + $0x1f0] sm:$0xff] %v4841
    %4929 = vst [vmem:[#allocation30 + $0x1f8] sm:$0xff] %v4864
    %v4930 = vld [vmem:[#allocation19] sm:$0xff]
    %v4931 = vld [vmem:[#allocation19 + $0x8] sm:$0x3]
    %v4933 = vsel %vm234, %v4931, 0
    %4935 = vmatpush.msra.mxu0 0.0
    %4936 = vmatpush.msra.mxu0 0.0
    %4937 = vmatpush.msra.mxu0 0.0
    %4938 = vmatpush.msra.mxu0 0.0
    %4939 = vmatpush.msra.mxu0 0.0
    %4940 = vmatpush.msra.mxu0 0.0
    %4941 = vmatpush.msra.mxu0 0.0
    %4942 = vmatpush.msra.mxu0 0.0
    %4943 = vmatpush.msra.mxu0 0.0
    %4944 = vmatpush.msra.mxu0 0.0
    %4945 = vmatpush.msra.mxu0 0.0
    %4946 = vmatpush.msra.mxu0 0.0
    %4947 = vmatpush.msra.mxu0 0.0
    %4948 = vmatpush.msra.mxu0 0.0
    %4949 = vmatpush.msra.mxu0 %v4933
    %4950 = vmatpush.msra.mxu0 %v4930
    %4951 = vmatmul.f32.gmra.mxu0 %v405
    %v4952 = vpop.f32.mrf.mxu0
    %v4953 = vadd.f32 0.0, %v4952
    %4954 = vmatmul.f32.gmra.mxu0 %v408
    %v4955 = vpop.f32.mrf.mxu0
    %v4956 = vadd.f32 0.0, %v4955
    %4957 = vdwg.mxu0
    %4958 = vst.msk [vmem:[#allocation32] sm:$0xff] %vm2017, %v4953
    %4959 = vst.msk [vmem:[#allocation32 + $0x8] sm:$0xff] %vm2017, %v4956
    // Predicated region
    $region90: #{tpu_custom_call.1} parent=1 // pred_check
      _
    $region91: #{tpu_custom_call.1} parent=1 // pred_check_branch
      %4961 = sbr.rel (0) target = $region93
    $region92: #{tpu_custom_call.1} parent=1 // pred_region
      %4963 = vsyncadd [#allocation4], 0
      %s4964 = sshll.u32 [#allocation20], 4
      %s4965 = int_to_ptr.vmem [resolvable:$true] %s4964
      %s4966 = sshll.u32 %s11, 4
      %s4967 = int_to_ptr.hbm [resolvable:$true] %s4966
      %4972 = dma.vmem_to_hbm [thread:$0]  %s4965, 512, %s4967, [#allocation4], 128, 128, 8
    $region93: #{tpu_custom_call.1} parent=1 // pred_fallthru
      _
    // Predicated region
    $region94: #{tpu_custom_call.1} parent=1 // pred_check
      _
    $region95: #{tpu_custom_call.1} parent=1 // pred_check_branch
      %4974 = sbr.rel (0) target = $region97
    $region96: #{tpu_custom_call.1} parent=1 // pred_region
      %4976 = vsyncadd [#allocation22], 0
      %s4977 = sshll.u32 [#allocation21], 4
      %s4978 = int_to_ptr.vmem [resolvable:$true] %s4977
      %s4979 = sshll.u32 %s12, 4
      %s4980 = int_to_ptr.hbm [resolvable:$true] %s4979
      %4985 = dma.vmem_to_hbm [thread:$0]  %s4978, 9216, %s4980, [#allocation22], 4608, 4608, 288
    $region97: #{tpu_custom_call.1} parent=1 // pred_fallthru
      _
    // Predicated region
    $region98: #{tpu_custom_call.1} parent=1 // pred_check
      _
    $region99: #{tpu_custom_call.1} parent=1 // pred_check_branch
      %4987 = sbr.rel (0) target = $region101
    $region100: #{tpu_custom_call.1} parent=1 // pred_region
      %4989 = vsyncadd [#allocation22], 0
      %s4990 = sshll.u32 [#allocation23], 4
      %s4991 = int_to_ptr.vmem [resolvable:$true] %s4990
      %s4992 = sshll.u32 %s13, 4
      %s4993 = int_to_ptr.hbm [resolvable:$true] %s4992
      %4998 = dma.vmem_to_hbm [thread:$0]  %s4991, 256, %s4993, [#allocation22], 128, 128, 8
    $region101: #{tpu_custom_call.1} parent=1 // pred_fallthru
      _
    // Predicated region
    $region102: #{tpu_custom_call.1} parent=1 // pred_check
      _
    $region103: #{tpu_custom_call.1} parent=1 // pred_check_branch
      %5000 = sbr.rel (0) target = $region105
    $region104: #{tpu_custom_call.1} parent=1 // pred_region
      %5002 = vsyncadd [#allocation25], 0
      %s5003 = sshll.u32 [#allocation24], 4
      %s5004 = int_to_ptr.vmem [resolvable:$true] %s5003
      %s5005 = sshll.u32 %s14, 4
      %s5006 = int_to_ptr.hbm [resolvable:$true] %s5005
      %5011 = dma.vmem_to_hbm [thread:$0]  %s5004, 4608, %s5006, [#allocation25], 2304, 2304, 144
    $region105: #{tpu_custom_call.1} parent=1 // pred_fallthru
      _
    // Predicated region
    $region106: #{tpu_custom_call.1} parent=1 // pred_check
      _
    $region107: #{tpu_custom_call.1} parent=1 // pred_check_branch
      %5013 = sbr.rel (0) target = $region109
    $region108: #{tpu_custom_call.1} parent=1 // pred_region
      %5015 = vsyncadd [#allocation25], 0
      %s5016 = sshll.u32 [#allocation26], 4
      %s5017 = int_to_ptr.vmem [resolvable:$true] %s5016
      %s5018 = sshll.u32 %s15, 4
      %s5019 = int_to_ptr.hbm [resolvable:$true] %s5018
      %5024 = dma.vmem_to_hbm [thread:$0]  %s5017, 256, %s5019, [#allocation25], 128, 128, 8
    $region109: #{tpu_custom_call.1} parent=1 // pred_fallthru
      _
    // Predicated region
    $region110: #{tpu_custom_call.1} parent=1 // pred_check
      _
    $region111: #{tpu_custom_call.1} parent=1 // pred_check_branch
      %5026 = sbr.rel (0) target = $region113
    $region112: #{tpu_custom_call.1} parent=1 // pred_region
      %5028 = vsyncadd [#allocation28], 0
      %s5029 = sshll.u32 [#allocation27], 4
      %s5030 = int_to_ptr.vmem [resolvable:$true] %s5029
      %s5031 = sshll.u32 %s16, 4
      %s5032 = int_to_ptr.hbm [resolvable:$true] %s5031
      %5037 = dma.vmem_to_hbm [thread:$0]  %s5030, 16384, %s5032, [#allocation28], 8192, 8192, 512
    $region113: #{tpu_custom_call.1} parent=1 // pred_fallthru
      _
    // Predicated region
    $region114: #{tpu_custom_call.1} parent=1 // pred_check
      _
    $region115: #{tpu_custom_call.1} parent=1 // pred_check_branch
      %5039 = sbr.rel (0) target = $region117
    $region116: #{tpu_custom_call.1} parent=1 // pred_region
      %5041 = vsyncadd [#allocation28], 0
      %s5042 = sshll.u32 [#allocation29], 4
      %s5043 = int_to_ptr.vmem [resolvable:$true] %s5042
      %s5044 = sshll.u32 %s17, 4
      %s5045 = int_to_ptr.hbm [resolvable:$true] %s5044
      %5050 = dma.vmem_to_hbm [thread:$0]  %s5043, 256, %s5045, [#allocation28], 128, 128, 8
    $region117: #{tpu_custom_call.1} parent=1 // pred_fallthru
      _
    // Predicated region
    $region118: #{tpu_custom_call.1} parent=1 // pred_check
      _
    $region119: #{tpu_custom_call.1} parent=1 // pred_check_branch
      %5052 = sbr.rel (0) target = $region121
    $region120: #{tpu_custom_call.1} parent=1 // pred_region
      %5054 = vsyncadd [#allocation31], 0
      %s5055 = sshll.u32 [#allocation30], 4
      %s5056 = int_to_ptr.vmem [resolvable:$true] %s5055
      %s5057 = sshll.u32 %s18, 4
      %s5058 = int_to_ptr.hbm [resolvable:$true] %s5057
      %5063 = dma.vmem_to_hbm [thread:$0]  %s5056, 8192, %s5058, [#allocation31], 4096, 4096, 256
    $region121: #{tpu_custom_call.1} parent=1 // pred_fallthru
      _
    // Predicated region
    $region122: #{tpu_custom_call.1} parent=1 // pred_check
      _
    $region123: #{tpu_custom_call.1} parent=1 // pred_check_branch
      %5065 = sbr.rel (0) target = $region125
    $region124: #{tpu_custom_call.1} parent=1 // pred_region
      %5067 = vsyncadd [#allocation31], 0
      %s5068 = sshll.u32 [#allocation32], 4
      %s5069 = int_to_ptr.vmem [resolvable:$true] %s5068
      %s5070 = sshll.u32 %s19, 4
      %s5071 = int_to_ptr.hbm [resolvable:$true] %s5070
      %5076 = dma.vmem_to_hbm [thread:$0]  %s5069, 256, %s5071, [#allocation31], 128, 128, 8
    $region125: #{tpu_custom_call.1} parent=1 // pred_fallthru
      _
    // Predicated region
    $region126: #{tpu_custom_call.1} parent=1 // pred_check
      _
    $region127: #{tpu_custom_call.1} parent=1 // pred_check_branch
      %5078 = sbr.rel (0) target = $region129
    $region128: #{tpu_custom_call.1} parent=1 // pred_region
      %5080 = dma.done [#allocation4], 512
    $region129: #{tpu_custom_call.1} parent=1 // pred_fallthru
      _
    // Predicated region
    $region130: #{tpu_custom_call.1} parent=1 // pred_check
      _
    $region131: #{tpu_custom_call.1} parent=1 // pred_check_branch
      %5082 = sbr.rel (0) target = $region133
    $region132: #{tpu_custom_call.1} parent=1 // pred_region
      %5084 = dma.done [#allocation22], 9216
    $region133: #{tpu_custom_call.1} parent=1 // pred_fallthru
      _
    // Predicated region
    $region134: #{tpu_custom_call.1} parent=1 // pred_check
      _
    $region135: #{tpu_custom_call.1} parent=1 // pred_check_branch
      %5086 = sbr.rel (0) target = $region137
    $region136: #{tpu_custom_call.1} parent=1 // pred_region
      %5088 = dma.done [#allocation22], 256
    $region137: #{tpu_custom_call.1} parent=1 // pred_fallthru
      _
    // Predicated region
    $region138: #{tpu_custom_call.1} parent=1 // pred_check
      _
    $region139: #{tpu_custom_call.1} parent=1 // pred_check_branch
      %5090 = sbr.rel (0) target = $region141
    $region140: #{tpu_custom_call.1} parent=1 // pred_region
      %5092 = dma.done [#allocation25], 4608
    $region141: #{tpu_custom_call.1} parent=1 // pred_fallthru
      _
    // Predicated region
    $region142: #{tpu_custom_call.1} parent=1 // pred_check
      _
    $region143: #{tpu_custom_call.1} parent=1 // pred_check_branch
      %5094 = sbr.rel (0) target = $region145
    $region144: #{tpu_custom_call.1} parent=1 // pred_region
      %5096 = dma.done [#allocation25], 256
    $region145: #{tpu_custom_call.1} parent=1 // pred_fallthru
      _
    // Predicated region
    $region146: #{tpu_custom_call.1} parent=1 // pred_check
      _
    $region147: #{tpu_custom_call.1} parent=1 // pred_check_branch
      %5098 = sbr.rel (0) target = $region149
    $region148: #{tpu_custom_call.1} parent=1 // pred_region
      %5100 = dma.done [#allocation28], 16384
    $region149: #{tpu_custom_call.1} parent=1 // pred_fallthru
      _
    // Predicated region
    $region150: #{tpu_custom_call.1} parent=1 // pred_check
      _
    $region151: #{tpu_custom_call.1} parent=1 // pred_check_branch
      %5102 = sbr.rel (0) target = $region153
    $region152: #{tpu_custom_call.1} parent=1 // pred_region
      %5104 = dma.done [#allocation28], 256
    $region153: #{tpu_custom_call.1} parent=1 // pred_fallthru
      _
    // Predicated region
    $region154: #{tpu_custom_call.1} parent=1 // pred_check
      _
    $region155: #{tpu_custom_call.1} parent=1 // pred_check_branch
      %5106 = sbr.rel (0) target = $region157
    $region156: #{tpu_custom_call.1} parent=1 // pred_region
      %5108 = dma.done [#allocation31], 8192
    $region157: #{tpu_custom_call.1} parent=1 // pred_fallthru
      _
    // Predicated region
    $region158: #{tpu_custom_call.1} parent=1 // pred_check
      _
    $region159: #{tpu_custom_call.1} parent=1 // pred_check_branch
      %5110 = sbr.rel (0) target = $region161
    $region160: #{tpu_custom_call.1} parent=1 // pred_region
      %5112 = dma.done [#allocation31], 256
    $region161: #{tpu_custom_call.1} parent=1 // pred_fallthru
      _
    %5113 = vsyncpa [#allocation3], 1
    %5114 = vsyncpa [#allocation6], 1
    %5115 = vsyncpa [#allocation9], 1
    %5116 = vsyncpa [#allocation12], 1
    %5117 = vsyncpa [#allocation15], 1
    %5118 = vsyncpa [#allocation18], 1
    %5119 = vsyncpa [#allocation4], 1
    %5120 = vsyncpa [#allocation22], 1
    %5121 = vsyncpa [#allocation25], 1
    %5122 = vsyncpa [#allocation28], 1
    %5123 = vsyncpa [#allocation31], 1

</llo_original>
